<compile_context>
chip_gen: v6e
topology: v6e:2x2x1
jax: 0.10.0
libtpu: 0.0.40
codegen_flags: <defaults>
</compile_context>

<pallas_src>
import functools

import jax
import jax.numpy as jnp
from jax.experimental import pallas as pl
from jax.experimental.pallas import tpu as pltpu


def _round_up(x, m):
    return ((x + m - 1) // m) * m


def _bottleneck_kernel(H, W, W_pad, base,
                       x_ref, w1_ref, b1_ref, w2_ref, b2_ref, w3_ref, b3_ref,
                       out_ref, pad_ref):
    """One image per grid step.

    x_ref:  (1, H*W, Cin)  bf16 flat lane-dense activations (also identity path)
    w*_ref: bf16 conv weights with the BN scale folded in
    b*_ref: f32 per-channel biases, shape (1, C)
    out_ref: (1, H*W, Cout) bf16 flat lane-dense output slab
    pad_ref: (R_slab, width) bf16 FLAT padded slab for the 3x3 conv.
             h1[i, j] lives at flat row base + i*W_pad + j; every other row
             that a valid tap can read is zero.
    """
    width = w1_ref.shape[1]
    HW = H * W
    HWp = H * W_pad

    x_bf = x_ref[0]                                       # (H*W, Cin) bf16

    # ---- conv1 (1x1, BN folded) + bias + relu: bf16 MXU operands, f32 acc ---
    h1 = jnp.dot(x_bf, w1_ref[...], preferred_element_type=jnp.float32)
    h1 = jnp.maximum(h1 + b1_ref[...], 0.0)
    h1_bf = h1.astype(jnp.bfloat16)                       # cast once, stage bf16

    # ---- stage h1 into the flat padded slab --------------------------------
    # One contiguous full-slab zero store (covers top/bottom halo rows and the
    # inter-row gap columns), then H sublane-aligned contiguous row writes.
    # Re-done every grid step, so it is megacore-safe under "parallel".
    pad_ref[...] = jnp.zeros(pad_ref.shape, pad_ref.dtype)
    for r in range(H):
        dst = base + r * W_pad                            # multiple of 8
        pad_ref[dst:dst + W, :] = h1_bf[r * W:(r + 1) * W, :]

    # ---- conv2 (3x3, stride=1, pad=1, BN folded) ----------------------------
    # Nine row-contiguous 2-D slices of the flat slab; the tap for kernel
    # position (kh, kw) is the slab shifted by kh*W_pad + kw rows.  Partial
    # sums stay in a traced value chain (no VMEM round trips).
    acc = None
    for kh in range(3):
        for kw in range(3):
            off = (base - W_pad - 1) + kh * W_pad + kw    # static Python int
            patch = pad_ref[off:off + HWp, :]             # (H*W_pad, width) bf16
            tap = jnp.dot(patch, w2_ref[kh, kw],
                          preferred_element_type=jnp.float32)
            acc = tap if acc is None else acc + tap

    # Extract the W valid columns of each W_pad-strided row once, then bias+relu.
    h2 = acc.reshape(H, W_pad, width)[:, :W, :].reshape(HW, width)
    h2 = jnp.maximum(h2 + b2_ref[...], 0.0).astype(jnp.bfloat16)

    # ---- conv3 (1x1, BN folded) + bias --------------------------------------
    h3 = jnp.dot(h2, w3_ref[...], preferred_element_type=jnp.float32) + b3_ref[...]

    # ---- residual add (downsample=None -> identity) + relu ------------------
    out = jnp.maximum(h3 + x_bf.astype(jnp.float32), 0.0)
    out_ref[0] = out.astype(out_ref.dtype)


def bottleneck_forward_nhwc(x_nhwc, folded_params):
    """Native NHWC path. x_nhwc: (N, H, W, Cin). Returns (N, H, W, Cout) bf16."""
    w1, b1, w2, b2, w3, b3 = folded_params
    N, H, W, Cin = x_nhwc.shape
    width = w1.shape[1]
    Cout = w3.shape[1]
    assert Cin == Cout, "identity path requires inplanes == planes * expansion"

    # Flat lane-dense bf16 activation layout in HBM (memory-roofline win).
    x_flat = x_nhwc.reshape(N, H * W, Cin).astype(jnp.bfloat16)

    # bf16 matmul operands; biases stay f32.
    w1b = w1.astype(jnp.bfloat16)
    w2b = w2.astype(jnp.bfloat16)
    w3b = w3.astype(jnp.bfloat16)
    b1f = b1.astype(jnp.float32)
    b2f = b2.astype(jnp.float32)
    b3f = b3.astype(jnp.float32)

    # Flat padded-slab geometry (sublane-aligned rows).
    W_pad = _round_up(W + 2, 8)          # padded row stride, multiple of 8
    base = W_pad + 8                     # aligned start of h1[0, 0] in the slab
    R_slab = (H + 2) * W_pad + 16        # covers max tap read, multiple of 8

    # Exact-ish VMEM footprint: pipelined activation tiles x2, weights x2
    # (compiler double-buffers them even with a constant index map), scratch x1.
    weight_bytes = (w1b.size + w2b.size + w3b.size) * 2 \
        + (b1f.size + b2f.size + b3f.size) * 4
    act_bytes = 2 * H * W * Cin * 2 + 2 * H * W * Cout * 2
    scratch_bytes = R_slab * width * 2
    footprint = act_bytes + 2 * weight_bytes + scratch_bytes
    vmem_limit = int(min(48 * 2**20, max(16 * 2**20, int(1.25 * footprint))))

    flops = 2 * N * (H * W * Cin * width
                     + 9 * H * W_pad * width * width
                     + H * W * width * Cout)
    bytes_accessed = int(2 * N * H * W * Cin + 2 * N * H * W * Cout + weight_bytes)

    kernel = functools.partial(_bottleneck_kernel, H, W, W_pad, base)

    out_flat = pl.pallas_call(
        kernel,
        out_shape=jax.ShapeDtypeStruct((N, H * W, Cout), jnp.bfloat16),
        grid=(N,),
        in_specs=[
            pl.BlockSpec((1, H * W, Cin), lambda n: (n, 0, 0)),           # x (bf16)
            pl.BlockSpec((Cin, width), lambda n: (0, 0)),                 # w1
            pl.BlockSpec((1, width), lambda n: (0, 0)),                   # b1
            pl.BlockSpec((3, 3, width, width), lambda n: (0, 0, 0, 0)),   # w2
            pl.BlockSpec((1, width), lambda n: (0, 0)),                   # b2
            pl.BlockSpec((width, Cout), lambda n: (0, 0)),                # w3
            pl.BlockSpec((1, Cout), lambda n: (0, 0)),                    # b3
        ],
        out_specs=pl.BlockSpec((1, H * W, Cout), lambda n: (n, 0, 0)),
        scratch_shapes=[
            pltpu.VMEM((R_slab, width), jnp.bfloat16),                    # padded slab
        ],
        compiler_params=pltpu.CompilerParams(
            dimension_semantics=("parallel",),
            vmem_limit_bytes=vmem_limit),
        cost_estimate=pl.CostEstimate(flops=flops, transcendentals=0,
                                      bytes_accessed=bytes_accessed),
    )(x_flat, w1b, b1f, w2b, b2f, w3b, b3f)

    return out_flat.reshape(N, H, W, Cout)


def bottleneck_forward(x_nchw, folded_params):
    """NCHW compatibility wrapper matching the PyTorch module interface.

    TODO(synk): in an end-to-end NHWC model these transposes disappear; they
    exist only to match the PyTorch NCHW spec at the boundary.
    """
    x_nhwc = jnp.transpose(x_nchw, (0, 2, 3, 1))
    y = bottleneck_forward_nhwc(x_nhwc, folded_params)
    return jnp.transpose(y, (0, 3, 1, 2))


# ----------------------------------------------------------------------------
# Parameter preparation (BN folding) and plain-JAX reference.
# ----------------------------------------------------------------------------

def _fold_bn(gamma, beta, mean, var, eps=1e-5):
    scale = gamma / jnp.sqrt(var + eps)
    bias = beta - mean * scale
    return scale.reshape(1, -1), bias.reshape(1, -1)


def fold_params(raw):
    """Fold the BN scales into the conv weights (inference-mode BN, exact)."""
    (w1, s1, b1, w2, s2, b2, w3, s3, b3) = raw
    w1f = w1 * s1                                  # (Cin, width) * (1, width)
    w2f = w2 * s2.reshape(1, 1, 1, -1)             # (3,3,width,width) * out-ch
    w3f = w3 * s3                                  # (width, Cout) * (1, Cout)
    return (w1f, b1, w2f, b2, w3f, b3)


def make_params(key, inplanes, planes, base_width=64, groups=1):
    """Deterministic synthetic parameters matching Bottleneck.__init__ shapes."""
    expansion = 4
    width = int(planes * (base_width / 64.0)) * groups
    cout = planes * expansion
    ks = jax.random.split(key, 12)

    # PyTorch conv weights (OIHW), converted to matmul layout.
    w1_oihw = 0.1 * jax.random.normal(ks[0], (width, inplanes, 1, 1), jnp.float32)
    w2_oihw = 0.1 * jax.random.normal(ks[1], (width, width, 3, 3), jnp.float32)
    w3_oihw = 0.1 * jax.random.normal(ks[2], (cout, width, 1, 1), jnp.float32)

    w1 = w1_oihw[:, :, 0, 0].T                      # (Cin, width)
    w2 = jnp.transpose(w2_oihw, (2, 3, 1, 0))       # (3, 3, width_in, width_out)
    w3 = w3_oihw[:, :, 0, 0].T                      # (width, Cout)

    def bn(kg, kb, km, kv, c):
        gamma = 1.0 + 0.1 * jax.random.normal(kg, (c,), jnp.float32)
        beta = 0.1 * jax.random.normal(kb, (c,), jnp.float32)
        mean = 0.1 * jax.random.normal(km, (c,), jnp.float32)
        var = 0.5 + jnp.abs(jax.random.normal(kv, (c,), jnp.float32))
        return _fold_bn(gamma, beta, mean, var)

    s1, b1 = bn(ks[3], ks[4], ks[5], ks[6], width)
    s2, b2 = bn(ks[7], ks[8], ks[9], ks[10], width)
    s3, b3 = bn(ks[11], ks[3], ks[5], ks[7], cout)   # reuse keys deterministically

    return (w1, s1, b1, w2, s2, b2, w3, s3, b3)


def _reference_nhwc(x_nhwc_bf16, folded_params):
    """Plain-JAX reference (NHWC) mirroring the kernel's bf16/f32 precision."""
    w1, b1, w2, b2, w3, b3 = folded_params
    N, H, W, Cin = x_nhwc_bf16.shape
    width = w1.shape[1]
    Cout = w3.shape[1]
    bf = lambda a: a.astype(jnp.bfloat16)

    x2 = x_nhwc_bf16.reshape(N, H * W, Cin)
    h1 = jnp.einsum('npc,cd->npd', x2, bf(w1),
                    preferred_element_type=jnp.float32)
    h1 = jnp.maximum(h1 + b1, 0.0).reshape(N, H, W, width).astype(jnp.bfloat16)
    h1p = jnp.pad(h1, ((0, 0), (1, 1), (1, 1), (0, 0)))
    acc = jnp.zeros((N, H, W, width), jnp.float32)
    for kh in range(3):
        for kw in range(3):
            acc = acc + jnp.einsum('nhwc,cd->nhwd',
                                   h1p[:, kh:kh + H, kw:kw + W, :],
                                   bf(w2[kh, kw]),
                                   preferred_element_type=jnp.float32)
    h2 = jnp.maximum(acc.reshape(N, H * W, width) + b2, 0.0).astype(jnp.bfloat16)
    h3 = jnp.einsum('npc,cd->npd', h2, bf(w3),
                    preferred_element_type=jnp.float32) + b3
    out = jnp.maximum(h3 + x2.astype(jnp.float32), 0.0)
    return out.reshape(N, H, W, Cout).astype(jnp.bfloat16)


if __name__ == "__main__":
    key = jax.random.PRNGKey(0)
    k_x, k_p = jax.random.split(key)

    # Small shapes: inplanes = planes * expansion so the identity path is valid.
    N, inplanes, planes, H, W = 2, 16, 4, 16, 16
    x = jax.random.normal(k_x, (N, inplanes, H, W), jnp.float32)
    raw_params = make_params(k_p, inplanes, planes)
    folded = fold_params(raw_params)

    fwd = jax.jit(bottleneck_forward)
    out = jax.block_until_ready(fwd(x, folded))

    # Verify against a plain-JAX reference with matching bf16 precision.
    x_nhwc_bf = jnp.transpose(x, (0, 2, 3, 1)).astype(jnp.bfloat16)
    ref = jnp.transpose(_reference_nhwc(x_nhwc_bf, folded), (0, 3, 1, 2))
    assert out.shape == (N, planes * 4, H, W)
    out_f = out.astype(jnp.float32)
    ref_f = ref.astype(jnp.float32)
    max_err = float(jnp.max(jnp.abs(out_f - ref_f)))
    assert jnp.allclose(out_f, ref_f, atol=3e-2, rtol=3e-2), \
        f"mismatch vs reference (max abs err {max_err})"

    print("KERNEL_OK")
</pallas_src>

<mosaic_0001>
module attributes {stable_mosaic.version = 11 : i64} {
  func.func @_bottleneck_kernel(%arg0: i32, %arg1: memref<1x256x16xbf16, #tpu.memory_space<vmem>>, %arg2: memref<16x4xbf16, #tpu.memory_space<vmem>>, %arg3: memref<1x4xf32, #tpu.memory_space<vmem>>, %arg4: memref<3x3x4x4xbf16, #tpu.memory_space<vmem>>, %arg5: memref<1x4xf32, #tpu.memory_space<vmem>>, %arg6: memref<4x16xbf16, #tpu.memory_space<vmem>>, %arg7: memref<1x16xf32, #tpu.memory_space<vmem>>, %arg8: memref<1x256x16xbf16, #tpu.memory_space<vmem>>, %arg9: memref<448x4xbf16, #tpu.memory_space<vmem>>) attributes {dimension_semantics = [#tpu.dimension_semantics<parallel>], iteration_bounds = array<i64: 2>, scalar_prefetch = 0 : i64, scratch_operands = 1 : i64, tpu.core_type = #tpu.core_type<tc>, window_params = [{transform_indices = @transform_0, window_bounds = array<i64: 1, 256, 16>}, {pipeline_mode = #tpu.pipeline_mode<synchronous>, transform_indices = @transform_1, window_bounds = array<i64: 16, 4>}, {pipeline_mode = #tpu.pipeline_mode<synchronous>, transform_indices = @transform_2, window_bounds = array<i64: 1, 4>}, {pipeline_mode = #tpu.pipeline_mode<synchronous>, transform_indices = @transform_3, window_bounds = array<i64: 3, 3, 4, 4>}, {pipeline_mode = #tpu.pipeline_mode<synchronous>, transform_indices = @transform_4, window_bounds = array<i64: 1, 4>}, {pipeline_mode = #tpu.pipeline_mode<synchronous>, transform_indices = @transform_5, window_bounds = array<i64: 4, 16>}, {pipeline_mode = #tpu.pipeline_mode<synchronous>, transform_indices = @transform_6, window_bounds = array<i64: 1, 16>}, {transform_indices = @transform_7, window_bounds = array<i64: 1, 256, 16>}]} {
    %c0 = arith.constant 0 : index
    %c0_0 = arith.constant 0 : index
    %c0_1 = arith.constant 0 : index
    %0 = vector.load %arg1[%c0, %c0_0, %c0_1] : memref<1x256x16xbf16, #tpu.memory_space<vmem>>, vector<1x256x16xbf16>
    %1 = vector.shape_cast %0 : vector<1x256x16xbf16> to vector<256x16xbf16>
    %c0_2 = arith.constant 0 : index
    %c0_3 = arith.constant 0 : index
    %2 = vector.load %arg2[%c0_2, %c0_3] : memref<16x4xbf16, #tpu.memory_space<vmem>>, vector<16x4xbf16>
    %cst = arith.constant dense<0.000000e+00> : vector<256x4xf32>
    %3 = tpu.matmul %1, %2, %cst {dimension_numbers = #tpu.dot_dimension_numbers<[1], [0], [0], [1], [0, 0, 1, 1], [], []>} : vector<256x16xbf16>, vector<16x4xbf16>, vector<256x4xf32> -> vector<256x4xf32>
    %c0_4 = arith.constant 0 : index
    %c0_5 = arith.constant 0 : index
    %4 = vector.load %arg3[%c0_4, %c0_5] : memref<1x4xf32, #tpu.memory_space<vmem>>, vector<1x4xf32>
    %5 = vector.broadcast %4 : vector<1x4xf32> to vector<256x4xf32>
    %6 = arith.addf %3, %5 : vector<256x4xf32>
    %cst_6 = arith.constant 0.000000e+00 : f32
    %7 = vector.broadcast %cst_6 : f32 to vector<256x4xf32>
    %8 = arith.maximumf %6, %7 : vector<256x4xf32>
    %9 = arith.truncf %8 : vector<256x4xf32> to vector<256x4xbf16>
    %cst_7 = arith.constant 0.000000e+00 : bf16
    %10 = vector.broadcast %cst_7 : bf16 to vector<448x4xbf16>
    %c0_8 = arith.constant 0 : index
    %c0_9 = arith.constant 0 : index
    %11 = vector.load %arg9[%c0_8, %c0_9] : memref<448x4xbf16, #tpu.memory_space<vmem>>, vector<448x4xbf16>
    tpu.vector_store %arg9[%c0_8, %c0_9], %10 {strides = array<i32>} : memref<448x4xbf16, #tpu.memory_space<vmem>>, vector<448x4xbf16>,
    %12 = vector.extract_strided_slice %9 {offsets = [0, 0], sizes = [16, 4], strides = [1, 1]} : vector<256x4xbf16> to vector<16x4xbf16>
    %c32 = arith.constant 32 : index
    %c0_10 = arith.constant 0 : index
    %13 = vector.load %arg9[%c32, %c0_10] : memref<448x4xbf16, #tpu.memory_space<vmem>>, vector<16x4xbf16>
    tpu.vector_store %arg9[%c32, %c0_10], %12 {strides = array<i32>} : memref<448x4xbf16, #tpu.memory_space<vmem>>, vector<16x4xbf16>,
    %14 = vector.extract_strided_slice %9 {offsets = [16, 0], sizes = [16, 4], strides = [1, 1]} : vector<256x4xbf16> to vector<16x4xbf16>
    %c56 = arith.constant 56 : index
    %c0_11 = arith.constant 0 : index
    %15 = vector.load %arg9[%c56, %c0_11] : memref<448x4xbf16, #tpu.memory_space<vmem>>, vector<16x4xbf16>
    tpu.vector_store %arg9[%c56, %c0_11], %14 {strides = array<i32>} : memref<448x4xbf16, #tpu.memory_space<vmem>>, vector<16x4xbf16>,
    %16 = vector.extract_strided_slice %9 {offsets = [32, 0], sizes = [16, 4], strides = [1, 1]} : vector<256x4xbf16> to vector<16x4xbf16>
    %c80 = arith.constant 80 : index
    %c0_12 = arith.constant 0 : index
    %17 = vector.load %arg9[%c80, %c0_12] : memref<448x4xbf16, #tpu.memory_space<vmem>>, vector<16x4xbf16>
    tpu.vector_store %arg9[%c80, %c0_12], %16 {strides = array<i32>} : memref<448x4xbf16, #tpu.memory_space<vmem>>, vector<16x4xbf16>,
    %18 = vector.extract_strided_slice %9 {offsets = [48, 0], sizes = [16, 4], strides = [1, 1]} : vector<256x4xbf16> to vector<16x4xbf16>
    %c104 = arith.constant 104 : index
    %c0_13 = arith.constant 0 : index
    %19 = vector.load %arg9[%c104, %c0_13] : memref<448x4xbf16, #tpu.memory_space<vmem>>, vector<16x4xbf16>
    tpu.vector_store %arg9[%c104, %c0_13], %18 {strides = array<i32>} : memref<448x4xbf16, #tpu.memory_space<vmem>>, vector<16x4xbf16>,
    %20 = vector.extract_strided_slice %9 {offsets = [64, 0], sizes = [16, 4], strides = [1, 1]} : vector<256x4xbf16> to vector<16x4xbf16>
    %c128 = arith.constant 128 : index
    %c0_14 = arith.constant 0 : index
    %21 = vector.load %arg9[%c128, %c0_14] : memref<448x4xbf16, #tpu.memory_space<vmem>>, vector<16x4xbf16>
    tpu.vector_store %arg9[%c128, %c0_14], %20 {strides = array<i32>} : memref<448x4xbf16, #tpu.memory_space<vmem>>, vector<16x4xbf16>,
    %22 = vector.extract_strided_slice %9 {offsets = [80, 0], sizes = [16, 4], strides = [1, 1]} : vector<256x4xbf16> to vector<16x4xbf16>
    %c152 = arith.constant 152 : index
    %c0_15 = arith.constant 0 : index
    %23 = vector.load %arg9[%c152, %c0_15] : memref<448x4xbf16, #tpu.memory_space<vmem>>, vector<16x4xbf16>
    tpu.vector_store %arg9[%c152, %c0_15], %22 {strides = array<i32>} : memref<448x4xbf16, #tpu.memory_space<vmem>>, vector<16x4xbf16>,
    %24 = vector.extract_strided_slice %9 {offsets = [96, 0], sizes = [16, 4], strides = [1, 1]} : vector<256x4xbf16> to vector<16x4xbf16>
    %c176 = arith.constant 176 : index
    %c0_16 = arith.constant 0 : index
    %25 = vector.load %arg9[%c176, %c0_16] : memref<448x4xbf16, #tpu.memory_space<vmem>>, vector<16x4xbf16>
    tpu.vector_store %arg9[%c176, %c0_16], %24 {strides = array<i32>} : memref<448x4xbf16, #tpu.memory_space<vmem>>, vector<16x4xbf16>,
    %26 = vector.extract_strided_slice %9 {offsets = [112, 0], sizes = [16, 4], strides = [1, 1]} : vector<256x4xbf16> to vector<16x4xbf16>
    %c200 = arith.constant 200 : index
    %c0_17 = arith.constant 0 : index
    %27 = vector.load %arg9[%c200, %c0_17] : memref<448x4xbf16, #tpu.memory_space<vmem>>, vector<16x4xbf16>
    tpu.vector_store %arg9[%c200, %c0_17], %26 {strides = array<i32>} : memref<448x4xbf16, #tpu.memory_space<vmem>>, vector<16x4xbf16>,
    %28 = vector.extract_strided_slice %9 {offsets = [128, 0], sizes = [16, 4], strides = [1, 1]} : vector<256x4xbf16> to vector<16x4xbf16>
    %c224 = arith.constant 224 : index
    %c0_18 = arith.constant 0 : index
    %29 = vector.load %arg9[%c224, %c0_18] : memref<448x4xbf16, #tpu.memory_space<vmem>>, vector<16x4xbf16>
    tpu.vector_store %arg9[%c224, %c0_18], %28 {strides = array<i32>} : memref<448x4xbf16, #tpu.memory_space<vmem>>, vector<16x4xbf16>,
    %30 = vector.extract_strided_slice %9 {offsets = [144, 0], sizes = [16, 4], strides = [1, 1]} : vector<256x4xbf16> to vector<16x4xbf16>
    %c248 = arith.constant 248 : index
    %c0_19 = arith.constant 0 : index
    %31 = vector.load %arg9[%c248, %c0_19] : memref<448x4xbf16, #tpu.memory_space<vmem>>, vector<16x4xbf16>
    tpu.vector_store %arg9[%c248, %c0_19], %30 {strides = array<i32>} : memref<448x4xbf16, #tpu.memory_space<vmem>>, vector<16x4xbf16>,
    %32 = vector.extract_strided_slice %9 {offsets = [160, 0], sizes = [16, 4], strides = [1, 1]} : vector<256x4xbf16> to vector<16x4xbf16>
    %c272 = arith.constant 272 : index
    %c0_20 = arith.constant 0 : index
    %33 = vector.load %arg9[%c272, %c0_20] : memref<448x4xbf16, #tpu.memory_space<vmem>>, vector<16x4xbf16>
    tpu.vector_store %arg9[%c272, %c0_20], %32 {strides = array<i32>} : memref<448x4xbf16, #tpu.memory_space<vmem>>, vector<16x4xbf16>,
    %34 = vector.extract_strided_slice %9 {offsets = [176, 0], sizes = [16, 4], strides = [1, 1]} : vector<256x4xbf16> to vector<16x4xbf16>
    %c296 = arith.constant 296 : index
    %c0_21 = arith.constant 0 : index
    %35 = vector.load %arg9[%c296, %c0_21] : memref<448x4xbf16, #tpu.memory_space<vmem>>, vector<16x4xbf16>
    tpu.vector_store %arg9[%c296, %c0_21], %34 {strides = array<i32>} : memref<448x4xbf16, #tpu.memory_space<vmem>>, vector<16x4xbf16>,
    %36 = vector.extract_strided_slice %9 {offsets = [192, 0], sizes = [16, 4], strides = [1, 1]} : vector<256x4xbf16> to vector<16x4xbf16>
    %c320 = arith.constant 320 : index
    %c0_22 = arith.constant 0 : index
    %37 = vector.load %arg9[%c320, %c0_22] : memref<448x4xbf16, #tpu.memory_space<vmem>>, vector<16x4xbf16>
    tpu.vector_store %arg9[%c320, %c0_22], %36 {strides = array<i32>} : memref<448x4xbf16, #tpu.memory_space<vmem>>, vector<16x4xbf16>,
    %38 = vector.extract_strided_slice %9 {offsets = [208, 0], sizes = [16, 4], strides = [1, 1]} : vector<256x4xbf16> to vector<16x4xbf16>
    %c344 = arith.constant 344 : index
    %c0_23 = arith.constant 0 : index
    %39 = vector.load %arg9[%c344, %c0_23] : memref<448x4xbf16, #tpu.memory_space<vmem>>, vector<16x4xbf16>
    tpu.vector_store %arg9[%c344, %c0_23], %38 {strides = array<i32>} : memref<448x4xbf16, #tpu.memory_space<vmem>>, vector<16x4xbf16>,
    %40 = vector.extract_strided_slice %9 {offsets = [224, 0], sizes = [16, 4], strides = [1, 1]} : vector<256x4xbf16> to vector<16x4xbf16>
    %c368 = arith.constant 368 : index
    %c0_24 = arith.constant 0 : index
    %41 = vector.load %arg9[%c368, %c0_24] : memref<448x4xbf16, #tpu.memory_space<vmem>>, vector<16x4xbf16>
    tpu.vector_store %arg9[%c368, %c0_24], %40 {strides = array<i32>} : memref<448x4xbf16, #tpu.memory_space<vmem>>, vector<16x4xbf16>,
    %42 = vector.extract_strided_slice %9 {offsets = [240, 0], sizes = [16, 4], strides = [1, 1]} : vector<256x4xbf16> to vector<16x4xbf16>
    %c392 = arith.constant 392 : index
    %c0_25 = arith.constant 0 : index
    %43 = vector.load %arg9[%c392, %c0_25] : memref<448x4xbf16, #tpu.memory_space<vmem>>, vector<16x4xbf16>
    tpu.vector_store %arg9[%c392, %c0_25], %42 {strides = array<i32>} : memref<448x4xbf16, #tpu.memory_space<vmem>>, vector<16x4xbf16>,
    %c7 = arith.constant 7 : index
    %c0_26 = arith.constant 0 : index
    %44 = vector.load %arg9[%c7, %c0_26] : memref<448x4xbf16, #tpu.memory_space<vmem>>, vector<384x4xbf16>
    %c0_27 = arith.constant 0 : index
    %c0_28 = arith.constant 0 : index
    %c0_29 = arith.constant 0 : index
    %c0_30 = arith.constant 0 : index
    %45 = vector.load %arg4[%c0_27, %c0_28, %c0_29, %c0_30] : memref<3x3x4x4xbf16, #tpu.memory_space<vmem>>, vector<1x1x4x4xbf16>
    %46 = vector.shape_cast %45 : vector<1x1x4x4xbf16> to vector<4x4xbf16>
    %cst_31 = arith.constant dense<0.000000e+00> : vector<384x4xf32>
    %47 = tpu.matmul %44, %46, %cst_31 {dimension_numbers = #tpu.dot_dimension_numbers<[1], [0], [0], [1], [0, 0, 1, 1], [], []>} : vector<384x4xbf16>, vector<4x4xbf16>, vector<384x4xf32> -> vector<384x4xf32>
    %c8 = arith.constant 8 : index
    %c0_32 = arith.constant 0 : index
    %48 = vector.load %arg9[%c8, %c0_32] : memref<448x4xbf16, #tpu.memory_space<vmem>>, vector<384x4xbf16>
    %c0_33 = arith.constant 0 : index
    %c1 = arith.constant 1 : index
    %c0_34 = arith.constant 0 : index
    %c0_35 = arith.constant 0 : index
    %49 = vector.load %arg4[%c0_33, %c1, %c0_34, %c0_35] : memref<3x3x4x4xbf16, #tpu.memory_space<vmem>>, vector<1x1x4x4xbf16>
    %50 = vector.shape_cast %49 : vector<1x1x4x4xbf16> to vector<4x4xbf16>
    %cst_36 = arith.constant dense<0.000000e+00> : vector<384x4xf32>
    %51 = tpu.matmul %48, %50, %cst_36 {dimension_numbers = #tpu.dot_dimension_numbers<[1], [0], [0], [1], [0, 0, 1, 1], [], []>} : vector<384x4xbf16>, vector<4x4xbf16>, vector<384x4xf32> -> vector<384x4xf32>
    %52 = arith.addf %47, %51 : vector<384x4xf32>
    %c9 = arith.constant 9 : index
    %c0_37 = arith.constant 0 : index
    %53 = vector.load %arg9[%c9, %c0_37] : memref<448x4xbf16, #tpu.memory_space<vmem>>, vector<384x4xbf16>
    %c0_38 = arith.constant 0 : index
    %c2 = arith.constant 2 : index
    %c0_39 = arith.constant 0 : index
    %c0_40 = arith.constant 0 : index
    %54 = vector.load %arg4[%c0_38, %c2, %c0_39, %c0_40] : memref<3x3x4x4xbf16, #tpu.memory_space<vmem>>, vector<1x1x4x4xbf16>
    %55 = vector.shape_cast %54 : vector<1x1x4x4xbf16> to vector<4x4xbf16>
    %cst_41 = arith.constant dense<0.000000e+00> : vector<384x4xf32>
    %56 = tpu.matmul %53, %55, %cst_41 {dimension_numbers = #tpu.dot_dimension_numbers<[1], [0], [0], [1], [0, 0, 1, 1], [], []>} : vector<384x4xbf16>, vector<4x4xbf16>, vector<384x4xf32> -> vector<384x4xf32>
    %57 = arith.addf %52, %56 : vector<384x4xf32>
    %c31 = arith.constant 31 : index
    %c0_42 = arith.constant 0 : index
    %58 = vector.load %arg9[%c31, %c0_42] : memref<448x4xbf16, #tpu.memory_space<vmem>>, vector<384x4xbf16>
    %c1_43 = arith.constant 1 : index
    %c0_44 = arith.constant 0 : index
    %c0_45 = arith.constant 0 : index
    %c0_46 = arith.constant 0 : index
    %59 = vector.load %arg4[%c1_43, %c0_44, %c0_45, %c0_46] : memref<3x3x4x4xbf16, #tpu.memory_space<vmem>>, vector<1x1x4x4xbf16>
    %60 = vector.shape_cast %59 : vector<1x1x4x4xbf16> to vector<4x4xbf16>
    %cst_47 = arith.constant dense<0.000000e+00> : vector<384x4xf32>
    %61 = tpu.matmul %58, %60, %cst_47 {dimension_numbers = #tpu.dot_dimension_numbers<[1], [0], [0], [1], [0, 0, 1, 1], [], []>} : vector<384x4xbf16>, vector<4x4xbf16>, vector<384x4xf32> -> vector<384x4xf32>
    %62 = arith.addf %57, %61 : vector<384x4xf32>
    %c32_48 = arith.constant 32 : index
    %c0_49 = arith.constant 0 : index
    %63 = vector.load %arg9[%c32_48, %c0_49] : memref<448x4xbf16, #tpu.memory_space<vmem>>, vector<384x4xbf16>
    %c1_50 = arith.constant 1 : index
    %c1_51 = arith.constant 1 : index
    %c0_52 = arith.constant 0 : index
    %c0_53 = arith.constant 0 : index
    %64 = vector.load %arg4[%c1_50, %c1_51, %c0_52, %c0_53] : memref<3x3x4x4xbf16, #tpu.memory_space<vmem>>, vector<1x1x4x4xbf16>
    %65 = vector.shape_cast %64 : vector<1x1x4x4xbf16> to vector<4x4xbf16>
    %cst_54 = arith.constant dense<0.000000e+00> : vector<384x4xf32>
    %66 = tpu.matmul %63, %65, %cst_54 {dimension_numbers = #tpu.dot_dimension_numbers<[1], [0], [0], [1], [0, 0, 1, 1], [], []>} : vector<384x4xbf16>, vector<4x4xbf16>, vector<384x4xf32> -> vector<384x4xf32>
    %67 = arith.addf %62, %66 : vector<384x4xf32>
    %c33 = arith.constant 33 : index
    %c0_55 = arith.constant 0 : index
    %68 = vector.load %arg9[%c33, %c0_55] : memref<448x4xbf16, #tpu.memory_space<vmem>>, vector<384x4xbf16>
    %c1_56 = arith.constant 1 : index
    %c2_57 = arith.constant 2 : index
    %c0_58 = arith.constant 0 : index
    %c0_59 = arith.constant 0 : index
    %69 = vector.load %arg4[%c1_56, %c2_57, %c0_58, %c0_59] : memref<3x3x4x4xbf16, #tpu.memory_space<vmem>>, vector<1x1x4x4xbf16>
    %70 = vector.shape_cast %69 : vector<1x1x4x4xbf16> to vector<4x4xbf16>
    %cst_60 = arith.constant dense<0.000000e+00> : vector<384x4xf32>
    %71 = tpu.matmul %68, %70, %cst_60 {dimension_numbers = #tpu.dot_dimension_numbers<[1], [0], [0], [1], [0, 0, 1, 1], [], []>} : vector<384x4xbf16>, vector<4x4xbf16>, vector<384x4xf32> -> vector<384x4xf32>
    %72 = arith.addf %67, %71 : vector<384x4xf32>
    %c55 = arith.constant 55 : index
    %c0_61 = arith.constant 0 : index
    %73 = vector.load %arg9[%c55, %c0_61] : memref<448x4xbf16, #tpu.memory_space<vmem>>, vector<384x4xbf16>
    %c2_62 = arith.constant 2 : index
    %c0_63 = arith.constant 0 : index
    %c0_64 = arith.constant 0 : index
    %c0_65 = arith.constant 0 : index
    %74 = vector.load %arg4[%c2_62, %c0_63, %c0_64, %c0_65] : memref<3x3x4x4xbf16, #tpu.memory_space<vmem>>, vector<1x1x4x4xbf16>
    %75 = vector.shape_cast %74 : vector<1x1x4x4xbf16> to vector<4x4xbf16>
    %cst_66 = arith.constant dense<0.000000e+00> : vector<384x4xf32>
    %76 = tpu.matmul %73, %75, %cst_66 {dimension_numbers = #tpu.dot_dimension_numbers<[1], [0], [0], [1], [0, 0, 1, 1], [], []>} : vector<384x4xbf16>, vector<4x4xbf16>, vector<384x4xf32> -> vector<384x4xf32>
    %77 = arith.addf %72, %76 : vector<384x4xf32>
    %c56_67 = arith.constant 56 : index
    %c0_68 = arith.constant 0 : index
    %78 = vector.load %arg9[%c56_67, %c0_68] : memref<448x4xbf16, #tpu.memory_space<vmem>>, vector<384x4xbf16>
    %c2_69 = arith.constant 2 : index
    %c1_70 = arith.constant 1 : index
    %c0_71 = arith.constant 0 : index
    %c0_72 = arith.constant 0 : index
    %79 = vector.load %arg4[%c2_69, %c1_70, %c0_71, %c0_72] : memref<3x3x4x4xbf16, #tpu.memory_space<vmem>>, vector<1x1x4x4xbf16>
    %80 = vector.shape_cast %79 : vector<1x1x4x4xbf16> to vector<4x4xbf16>
    %cst_73 = arith.constant dense<0.000000e+00> : vector<384x4xf32>
    %81 = tpu.matmul %78, %80, %cst_73 {dimension_numbers = #tpu.dot_dimension_numbers<[1], [0], [0], [1], [0, 0, 1, 1], [], []>} : vector<384x4xbf16>, vector<4x4xbf16>, vector<384x4xf32> -> vector<384x4xf32>
    %82 = arith.addf %77, %81 : vector<384x4xf32>
    %c57 = arith.constant 57 : index
    %c0_74 = arith.constant 0 : index
    %83 = vector.load %arg9[%c57, %c0_74] : memref<448x4xbf16, #tpu.memory_space<vmem>>, vector<384x4xbf16>
    %c2_75 = arith.constant 2 : index
    %c2_76 = arith.constant 2 : index
    %c0_77 = arith.constant 0 : index
    %c0_78 = arith.constant 0 : index
    %84 = vector.load %arg4[%c2_75, %c2_76, %c0_77, %c0_78] : memref<3x3x4x4xbf16, #tpu.memory_space<vmem>>, vector<1x1x4x4xbf16>
    %85 = vector.shape_cast %84 : vector<1x1x4x4xbf16> to vector<4x4xbf16>
    %cst_79 = arith.constant dense<0.000000e+00> : vector<384x4xf32>
    %86 = tpu.matmul %83, %85, %cst_79 {dimension_numbers = #tpu.dot_dimension_numbers<[1], [0], [0], [1], [0, 0, 1, 1], [], []>} : vector<384x4xbf16>, vector<4x4xbf16>, vector<384x4xf32> -> vector<384x4xf32>
    %87 = arith.addf %82, %86 : vector<384x4xf32>
    %88 = vector.shape_cast %87 : vector<384x4xf32> to vector<16x24x4xf32>
    %89 = vector.extract_strided_slice %88 {offsets = [0, 0, 0], sizes = [16, 16, 4], strides = [1, 1, 1]} : vector<16x24x4xf32> to vector<16x16x4xf32>
    %90 = vector.shape_cast %89 : vector<16x16x4xf32> to vector<256x4xf32>
    %c0_80 = arith.constant 0 : index
    %c0_81 = arith.constant 0 : index
    %91 = vector.load %arg5[%c0_80, %c0_81] : memref<1x4xf32, #tpu.memory_space<vmem>>, vector<1x4xf32>
    %92 = vector.broadcast %91 : vector<1x4xf32> to vector<256x4xf32>
    %93 = arith.addf %90, %92 : vector<256x4xf32>
    %cst_82 = arith.constant 0.000000e+00 : f32
    %94 = vector.broadcast %cst_82 : f32 to vector<256x4xf32>
    %95 = arith.maximumf %93, %94 : vector<256x4xf32>
    %96 = arith.truncf %95 : vector<256x4xf32> to vector<256x4xbf16>
    %c0_83 = arith.constant 0 : index
    %c0_84 = arith.constant 0 : index
    %97 = vector.load %arg6[%c0_83, %c0_84] : memref<4x16xbf16, #tpu.memory_space<vmem>>, vector<4x16xbf16>
    %cst_85 = arith.constant dense<0.000000e+00> : vector<256x16xf32>
    %98 = tpu.matmul %96, %97, %cst_85 {dimension_numbers = #tpu.dot_dimension_numbers<[1], [0], [0], [1], [0, 0, 1, 1], [], []>} : vector<256x4xbf16>, vector<4x16xbf16>, vector<256x16xf32> -> vector<256x16xf32>
    %c0_86 = arith.constant 0 : index
    %c0_87 = arith.constant 0 : index
    %99 = vector.load %arg7[%c0_86, %c0_87] : memref<1x16xf32, #tpu.memory_space<vmem>>, vector<1x16xf32>
    %100 = vector.broadcast %99 : vector<1x16xf32> to vector<256x16xf32>
    %101 = arith.addf %98, %100 : vector<256x16xf32>
    %102 = arith.extf %1 : vector<256x16xbf16> to vector<256x16xf32>
    %103 = arith.addf %101, %102 : vector<256x16xf32>
    %cst_88 = arith.constant 0.000000e+00 : f32
    %104 = vector.broadcast %cst_88 : f32 to vector<256x16xf32>
    %105 = arith.maximumf %103, %104 : vector<256x16xf32>
    %106 = arith.truncf %105 : vector<256x16xf32> to vector<256x16xbf16>
    %c0_89 = arith.constant 0 : index
    %c0_90 = arith.constant 0 : index
    %c0_91 = arith.constant 0 : index
    %107 = vector.load %arg8[%c0_89, %c0_90, %c0_91] : memref<1x256x16xbf16, #tpu.memory_space<vmem>>, vector<1x256x16xbf16>
    %108 = vector.shape_cast %107 : vector<1x256x16xbf16> to vector<256x16xbf16>
    %109 = vector.shape_cast %106 : vector<256x16xbf16> to vector<1x256x16xbf16>
    tpu.vector_store %arg8[%c0_89, %c0_90, %c0_91], %109 {strides = array<i32>} : memref<1x256x16xbf16, #tpu.memory_space<vmem>>, vector<1x256x16xbf16>,
    return
  }
  func.func @transform_0(%arg0: i32) -> (i32, i32, i32) {
    %c0_i32 = arith.constant 0 : i32
    %c0_i32_0 = arith.constant 0 : i32
    %c0_i32_1 = arith.constant 0 : i32
    return %arg0, %c0_i32, %c0_i32_0 : i32, i32, i32
  }
  func.func @transform_1(%arg0: i32) -> (i32, i32) {
    %c0_i32 = arith.constant 0 : i32
    %c0_i32_0 = arith.constant 0 : i32
    %c0_i32_1 = arith.constant 0 : i32
    return %c0_i32, %c0_i32_0 : i32, i32
  }
  func.func @transform_2(%arg0: i32) -> (i32, i32) {
    %c0_i32 = arith.constant 0 : i32
    %c0_i32_0 = arith.constant 0 : i32
    %c0_i32_1 = arith.constant 0 : i32
    return %c0_i32, %c0_i32_0 : i32, i32
  }
  func.func @transform_3(%arg0: i32) -> (i32, i32, i32, i32) {
    %c0_i32 = arith.constant 0 : i32
    %c0_i32_0 = arith.constant 0 : i32
    %c0_i32_1 = arith.constant 0 : i32
    %c0_i32_2 = arith.constant 0 : i32
    %c0_i32_3 = arith.constant 0 : i32
    return %c0_i32, %c0_i32_0, %c0_i32_1, %c0_i32_2 : i32, i32, i32, i32
  }
  func.func @transform_4(%arg0: i32) -> (i32, i32) {
    %c0_i32 = arith.constant 0 : i32
    %c0_i32_0 = arith.constant 0 : i32
    %c0_i32_1 = arith.constant 0 : i32
    return %c0_i32, %c0_i32_0 : i32, i32
  }
  func.func @transform_5(%arg0: i32) -> (i32, i32) {
    %c0_i32 = arith.constant 0 : i32
    %c0_i32_0 = arith.constant 0 : i32
    %c0_i32_1 = arith.constant 0 : i32
    return %c0_i32, %c0_i32_0 : i32, i32
  }
  func.func @transform_6(%arg0: i32) -> (i32, i32) {
    %c0_i32 = arith.constant 0 : i32
    %c0_i32_0 = arith.constant 0 : i32
    %c0_i32_1 = arith.constant 0 : i32
    return %c0_i32, %c0_i32_0 : i32, i32
  }
  func.func @transform_7(%arg0: i32) -> (i32, i32, i32) {
    %c0_i32 = arith.constant 0 : i32
    %c0_i32_0 = arith.constant 0 : i32
    %c0_i32_1 = arith.constant 0 : i32
    return %arg0, %c0_i32, %c0_i32_0 : i32, i32, i32
  }
}

</mosaic_0001>

<llo_original>
// kernel: bottleneck_forward.1
$region0: #{bottleneck_forward.1}
  #allocation0 [shape = 'u32[]', space=smem, size = 0x4, offset = 0x4, fixed_abs, tag = 'smem constant byte address 0x4 - core index']
  #allocation1 [shape = 'u32[144,128]{1,0:T(1,128)}', space=vmem, size = 0x12000, scoped, tag = 'internal scratch']
  #allocation2 [shape = 'bf16[448,4]{1,0:T(8,128)(2,1)}', space=vmem, size = 0x1c000, scoped, tag = 'scratch operand']
  %s0 = inlined_call_operand.vmem [shape: bf16[2,256,16], index: 0, kind: input, shape index: {}]
  %s1 = inlined_call_operand.vmem [shape: bf16[16,4], index: 1, kind: input, shape index: {}]
  %s2 = inlined_call_operand.vmem [shape: f32[1,4], index: 2, kind: input, shape index: {}]
  %s3 = inlined_call_operand.vmem [shape: bf16[3,3,4,4], index: 3, kind: input, shape index: {}]
  %s4 = inlined_call_operand.vmem [shape: f32[1,4], index: 4, kind: input, shape index: {}]
  %s5 = inlined_call_operand.vmem [shape: bf16[4,16], index: 5, kind: input, shape index: {}]
  %s6 = inlined_call_operand.vmem [shape: f32[1,16], index: 6, kind: input, shape index: {}]
  %s7 = inlined_call_operand.vmem [shape: bf16[2,256,16], index: 7, kind: output, shape index: {}]
  %s8 = sld [smem:[#allocation0]]
  $region61: #{bottleneck_forward.1} parent=0
    _
  %s10 = ssub.s32 1, %s8
  %s11 = scalar_select 0, %s10, %s8
  loop: start=0, step=1, limit=4
  $region2: #{bottleneck_forward.1} parent=0 // loop_pre_header
    _
  $region3: #{bottleneck_forward.1} parent=0 // loop_header
    %s13 = sphi 0, %s17
    %p14 = scmp.ge.s32.totalorder %s13, 4
    %s23 = sphi 0, %s25
    %s26 = sphi 0, %s23
    %s27 = sphi 0, %s26
    %s43 = sphi 0, %s27
    %s47 = sphi 0, %s47
    %s49 = sphi 0, %s47
    %s50 = sphi 0, %s49
    %s64 = sphi 0, %s50
    %s68 = sphi 0, %s68
    %s70 = sphi 0, %s68
    %s71 = sphi 0, %s70
    %s85 = sphi 0, %s71
    %s89 = sphi 0, %s89
    %s91 = sphi 0, %s89
    %s92 = sphi 0, %s91
    %s106 = sphi 0, %s92
    %s110 = sphi 0, %s110
    %s112 = sphi 0, %s110
    %s113 = sphi 0, %s112
    %s127 = sphi 0, %s113
    %s131 = sphi 0, %s131
    %s133 = sphi 0, %s131
    %s134 = sphi 0, %s133
    %s148 = sphi 0, %s134
    %s152 = sphi 0, %s152
    %s154 = sphi 0, %s152
    %s155 = sphi 0, %s154
    %s169 = sphi 0, %s155
    %s175 = sphi 0, %s177
    %s178 = sphi 0, %s175
    %s179 = sphi 0, %s178
    %s195 = sphi 0, %s179
  $region4: #{bottleneck_forward.1} parent=0 // loop_header_branch
    %16 = sbr.rel (%p14) target = $region8
  $region5: #{bottleneck_forward.1} parent=0 // loop_body
    %s18 = ssub.s32 %s13, 1
    %s19 = ssub.s32 %s13, 2
    %s20 = sadd.s32 %s13, 1
    %s21 = ssub.s32 %s13, %s20
    %p22 = scmp.eq.s32.totalorder %s21, 0
    %s24 = sadd.s32 %s23, 1
    %s25 = scalar_select %p22, %s23, %s24
    %p28 = pneg %p22
    %p29 = scmp.eq.s32.totalorder %s13, 1
    %p30 = por %p28, %p29
    %p31 = scmp.ne.s32.totalorder %s23, %s26
    %p32 = scmp.eq.s32.totalorder %s13, 0
    %p33 = por %p31, %p32
    %p34 = scmp.ne.s32.totalorder %s23, %s26
    %p35 = scmp.eq.s32.totalorder %s18, 1
    %p36 = por %p34, %p35
    %p37 = scmp.ne.s32.totalorder %s26, %s27
    %p38 = scmp.eq.s32.totalorder %s18, 0
    %p39 = por %p37, %p38
    %p40 = scmp.ne.s32.totalorder %s26, %s27
    %p41 = scmp.eq.s32.totalorder %s19, 1
    %p42 = por %p40, %p41
    %p44 = scmp.ne.s32.totalorder %s27, %s43
    %p45 = scmp.eq.s32.totalorder %s19, 0
    %p46 = por %p44, %p45
    %s48 = sadd.s32 %s47, 1
    %p51 = scmp.eq.s32.totalorder %s13, 1
    %p52 = scmp.ne.s32.totalorder %s47, %s49
    %p53 = scmp.eq.s32.totalorder %s13, 0
    %p54 = por %p52, %p53
    %p55 = scmp.ne.s32.totalorder %s47, %s49
    %p56 = scmp.eq.s32.totalorder %s18, 1
    %p57 = por %p55, %p56
    %p58 = scmp.ne.s32.totalorder %s49, %s50
    %p59 = scmp.eq.s32.totalorder %s18, 0
    %p60 = por %p58, %p59
    %p61 = scmp.ne.s32.totalorder %s49, %s50
    %p62 = scmp.eq.s32.totalorder %s19, 1
    %p63 = por %p61, %p62
    %p65 = scmp.ne.s32.totalorder %s50, %s64
    %p66 = scmp.eq.s32.totalorder %s19, 0
    %p67 = por %p65, %p66
    %s69 = sadd.s32 %s68, 1
    %p72 = scmp.eq.s32.totalorder %s13, 1
    %p73 = scmp.ne.s32.totalorder %s68, %s70
    %p74 = scmp.eq.s32.totalorder %s13, 0
    %p75 = por %p73, %p74
    %p76 = scmp.ne.s32.totalorder %s68, %s70
    %p77 = scmp.eq.s32.totalorder %s18, 1
    %p78 = por %p76, %p77
    %p79 = scmp.ne.s32.totalorder %s70, %s71
    %p80 = scmp.eq.s32.totalorder %s18, 0
    %p81 = por %p79, %p80
    %p82 = scmp.ne.s32.totalorder %s70, %s71
    %p83 = scmp.eq.s32.totalorder %s19, 1
    %p84 = por %p82, %p83
    %p86 = scmp.ne.s32.totalorder %s71, %s85
    %p87 = scmp.eq.s32.totalorder %s19, 0
    %p88 = por %p86, %p87
    %s90 = sadd.s32 %s89, 1
    %p93 = scmp.eq.s32.totalorder %s13, 1
    %p94 = scmp.ne.s32.totalorder %s89, %s91
    %p95 = scmp.eq.s32.totalorder %s13, 0
    %p96 = por %p94, %p95
    %p97 = scmp.ne.s32.totalorder %s89, %s91
    %p98 = scmp.eq.s32.totalorder %s18, 1
    %p99 = por %p97, %p98
    %p100 = scmp.ne.s32.totalorder %s91, %s92
    %p101 = scmp.eq.s32.totalorder %s18, 0
    %p102 = por %p100, %p101
    %p103 = scmp.ne.s32.totalorder %s91, %s92
    %p104 = scmp.eq.s32.totalorder %s19, 1
    %p105 = por %p103, %p104
    %p107 = scmp.ne.s32.totalorder %s92, %s106
    %p108 = scmp.eq.s32.totalorder %s19, 0
    %p109 = por %p107, %p108
    %s111 = sadd.s32 %s110, 1
    %p114 = scmp.eq.s32.totalorder %s13, 1
    %p115 = scmp.ne.s32.totalorder %s110, %s112
    %p116 = scmp.eq.s32.totalorder %s13, 0
    %p117 = por %p115, %p116
    %p118 = scmp.ne.s32.totalorder %s110, %s112
    %p119 = scmp.eq.s32.totalorder %s18, 1
    %p120 = por %p118, %p119
    %p121 = scmp.ne.s32.totalorder %s112, %s113
    %p122 = scmp.eq.s32.totalorder %s18, 0
    %p123 = por %p121, %p122
    %p124 = scmp.ne.s32.totalorder %s112, %s113
    %p125 = scmp.eq.s32.totalorder %s19, 1
    %p126 = por %p124, %p125
    %p128 = scmp.ne.s32.totalorder %s113, %s127
    %p129 = scmp.eq.s32.totalorder %s19, 0
    %p130 = por %p128, %p129
    %s132 = sadd.s32 %s131, 1
    %p135 = scmp.eq.s32.totalorder %s13, 1
    %p136 = scmp.ne.s32.totalorder %s131, %s133
    %p137 = scmp.eq.s32.totalorder %s13, 0
    %p138 = por %p136, %p137
    %p139 = scmp.ne.s32.totalorder %s131, %s133
    %p140 = scmp.eq.s32.totalorder %s18, 1
    %p141 = por %p139, %p140
    %p142 = scmp.ne.s32.totalorder %s133, %s134
    %p143 = scmp.eq.s32.totalorder %s18, 0
    %p144 = por %p142, %p143
    %p145 = scmp.ne.s32.totalorder %s133, %s134
    %p146 = scmp.eq.s32.totalorder %s19, 1
    %p147 = por %p145, %p146
    %p149 = scmp.ne.s32.totalorder %s134, %s148
    %p150 = scmp.eq.s32.totalorder %s19, 0
    %p151 = por %p149, %p150
    %s153 = sadd.s32 %s152, 1
    %p156 = scmp.eq.s32.totalorder %s13, 1
    %p157 = scmp.ne.s32.totalorder %s152, %s154
    %p158 = scmp.eq.s32.totalorder %s13, 0
    %p159 = por %p157, %p158
    %p160 = scmp.ne.s32.totalorder %s152, %s154
    %p161 = scmp.eq.s32.totalorder %s18, 1
    %p162 = por %p160, %p161
    %p163 = scmp.ne.s32.totalorder %s154, %s155
    %p164 = scmp.eq.s32.totalorder %s18, 0
    %p165 = por %p163, %p164
    %p166 = scmp.ne.s32.totalorder %s154, %s155
    %p167 = scmp.eq.s32.totalorder %s19, 1
    %p168 = por %p166, %p167
    %p170 = scmp.ne.s32.totalorder %s155, %s169
    %p171 = scmp.eq.s32.totalorder %s19, 0
    %p172 = por %p170, %p171
    %s173 = ssub.s32 %s13, %s20
    %p174 = scmp.eq.s32.totalorder %s173, 0
    %s176 = sadd.s32 %s175, 1
    %s177 = scalar_select %p174, %s175, %s176
    %p180 = pneg %p174
    %p181 = scmp.eq.s32.totalorder %s13, 1
    %p182 = por %p180, %p181
    %p183 = scmp.ne.s32.totalorder %s175, %s178
    %p184 = scmp.eq.s32.totalorder %s13, 0
    %p185 = por %p183, %p184
    %p186 = scmp.ne.s32.totalorder %s175, %s178
    %p187 = scmp.eq.s32.totalorder %s18, 1
    %p188 = por %p186, %p187
    %p189 = scmp.ne.s32.totalorder %s178, %s179
    %p190 = scmp.eq.s32.totalorder %s18, 0
    %p191 = por %p189, %p190
    %p192 = scmp.ne.s32.totalorder %s178, %s179
    %p193 = scmp.eq.s32.totalorder %s19, 1
    %p194 = por %p192, %p193
    %p196 = scmp.ne.s32.totalorder %s179, %s195
    %p197 = scmp.eq.s32.totalorder %s19, 0
    %p198 = por %p196, %p197
    %p199 = scmp.le.s32.totalorder 1, %s13
    %p200 = scmp.lt.s32.totalorder %s13, 3
    %p201 = pnand %p199, %p200
    %p202 = pneg %p201
    // Predicated region
    $region9: #{bottleneck_forward.1} parent=5 // pred_check
      _
    $region10: #{bottleneck_forward.1} parent=5 // pred_check_branch
      %204 = sbr.rel (%p201) target = $region12
    $region11: #{bottleneck_forward.1} parent=5 // pred_region
      %s205 = ssub.s32 %s13, 1
      // Predicated region
      $region13: #{bottleneck_forward.1} parent=11 // pred_check
        %p206 = pneg %p60
      $region14: #{bottleneck_forward.1} parent=11 // pred_check_branch
        %208 = sbr.rel (%p206) target = $region16
      $region15: #{bottleneck_forward.1} parent=11 // pred_region
        _
      $region16: #{bottleneck_forward.1} parent=11 // pred_fallthru
        _
      // Predicated region
      $region17: #{bottleneck_forward.1} parent=11 // pred_check
        %p209 = pneg %p81
      $region18: #{bottleneck_forward.1} parent=11 // pred_check_branch
        %211 = sbr.rel (%p209) target = $region20
      $region19: #{bottleneck_forward.1} parent=11 // pred_region
        _
      $region20: #{bottleneck_forward.1} parent=11 // pred_fallthru
        _
      // Predicated region
      $region21: #{bottleneck_forward.1} parent=11 // pred_check
        %p212 = pneg %p102
      $region22: #{bottleneck_forward.1} parent=11 // pred_check_branch
        %214 = sbr.rel (%p212) target = $region24
      $region23: #{bottleneck_forward.1} parent=11 // pred_region
        _
      $region24: #{bottleneck_forward.1} parent=11 // pred_fallthru
        _
      // Predicated region
      $region25: #{bottleneck_forward.1} parent=11 // pred_check
        %p215 = pneg %p123
      $region26: #{bottleneck_forward.1} parent=11 // pred_check_branch
        %217 = sbr.rel (%p215) target = $region28
      $region27: #{bottleneck_forward.1} parent=11 // pred_region
        _
      $region28: #{bottleneck_forward.1} parent=11 // pred_fallthru
        _
      // Predicated region
      $region29: #{bottleneck_forward.1} parent=11 // pred_check
        %p218 = pneg %p144
      $region30: #{bottleneck_forward.1} parent=11 // pred_check_branch
        %220 = sbr.rel (%p218) target = $region32
      $region31: #{bottleneck_forward.1} parent=11 // pred_region
        _
      $region32: #{bottleneck_forward.1} parent=11 // pred_fallthru
        _
      // Predicated region
      $region33: #{bottleneck_forward.1} parent=11 // pred_check
        %p221 = pneg %p165
      $region34: #{bottleneck_forward.1} parent=11 // pred_check_branch
        %223 = sbr.rel (%p221) target = $region36
      $region35: #{bottleneck_forward.1} parent=11 // pred_region
        _
      $region36: #{bottleneck_forward.1} parent=11 // pred_fallthru
        _
    $region12: #{bottleneck_forward.1} parent=5 // pred_fallthru
      _
    %p224 = scmp.lt.s32.totalorder %s13, 2
    // Predicated region
    $region37: #{bottleneck_forward.1} parent=5 // pred_check
      %p225 = pneg %p224
    $region38: #{bottleneck_forward.1} parent=5 // pred_check_branch
      %227 = sbr.rel (%p225) target = $region40
    $region39: #{bottleneck_forward.1} parent=5 // pred_region
      // Predicated region
      $region41: #{bottleneck_forward.1} parent=39 // pred_check
        %p228 = pneg %p33
      $region42: #{bottleneck_forward.1} parent=39 // pred_check_branch
        %230 = sbr.rel (%p228) target = $region44
      $region43: #{bottleneck_forward.1} parent=39 // pred_region
        %p231 = scmp.lt.s32.totalorder %s13, 1
        %s232 = scalar_select %p231, %s13, 1
        %s233 = smul.addr %s232, 32
        %s234 = smul.addr %s233, 4
        %s235 = scalar_lea.vmem %s0, %s234
      $region44: #{bottleneck_forward.1} parent=39 // pred_fallthru
        _
    $region40: #{bottleneck_forward.1} parent=5 // pred_fallthru
      _
    %p236 = scmp.le.s32.totalorder 1, %s13
    %p237 = scmp.lt.s32.totalorder %s13, 3
    %p238 = pnand %p236, %p237
    %p239 = pneg %p238
    // Predicated region
    $region45: #{bottleneck_forward.1} parent=5 // pred_check
      _
    $region46: #{bottleneck_forward.1} parent=5 // pred_check_branch
      %241 = sbr.rel (%p238) target = $region48
    $region47: #{bottleneck_forward.1} parent=5 // pred_region
      %s242 = ssub.s32 %s13, 1
      %p243 = scmp.lt.s32.totalorder %s18, 1
      %s244 = scalar_select %p243, %s18, 1
      %s245 = smul.addr %s244, 32
      %s246 = smul.addr %s245, 4
      %s247 = scalar_lea.vmem %s0, %s246
      %p248 = pneg %p39
      %p249 = pneg %p36
      %p250 = pneg %p60
      %p251 = pneg %p57
      %p252 = pneg %p81
      %p253 = pneg %p78
      %p254 = pneg %p102
      %p255 = pneg %p99
      %p256 = pneg %p123
      %p257 = pneg %p120
      %p258 = pneg %p144
      %p259 = pneg %p141
      %p260 = pneg %p165
      %p261 = pneg %p162
      %p262 = pneg %p191
      %p263 = pneg %p188
      %p264 = scmp.lt.s32.totalorder %s18, 1
      %s265 = scalar_select %p264, %s18, 1
      %s266 = smul.addr %s265, 32
      %s267 = smul.addr %s266, 4
      %s268 = scalar_lea.vmem %s7, %s267
      %p269 = scmp.lt.s32.totalorder %s18, 1
      %s270 = scalar_select %p269, %s18, 1
      %s271 = smul.addr %s270, 32
      %s272 = smul.addr %s271, 4
      %s273 = scalar_lea.vmem %s0, %s272
      %p274 = scmp.lt.s32.totalorder %s18, 1
      %s275 = scalar_select %p274, %s18, 1
      %s276 = smul.addr %s275, 32
      %s277 = smul.addr %s276, 4
      %s278 = scalar_lea.vmem %s7, %s277
      %v280 = vld [vmem:[%s273] sm:$0xf]
      %v281 = vld [vmem:[%s273 + $0x4] sm:$0xf]
      %v282 = vld [vmem:[%s273 + $0x8] sm:$0xf]
      %v283 = vld [vmem:[%s273 + $0xc] sm:$0xf]
      %v284 = vld [vmem:[%s273 + $0x10] sm:$0xf]
      %v285 = vld [vmem:[%s273 + $0x14] sm:$0xf]
      %v286 = vld [vmem:[%s273 + $0x18] sm:$0xf]
      %v287 = vld [vmem:[%s273 + $0x1c] sm:$0xf]
      %v288 = vld [vmem:[%s273 + $0x20] sm:$0xf]
      %v289 = vld [vmem:[%s273 + $0x24] sm:$0xf]
      %v290 = vld [vmem:[%s273 + $0x28] sm:$0xf]
      %v291 = vld [vmem:[%s273 + $0x2c] sm:$0xf]
      %v292 = vld [vmem:[%s273 + $0x30] sm:$0xf]
      %v293 = vld [vmem:[%s273 + $0x34] sm:$0xf]
      %v294 = vld [vmem:[%s273 + $0x38] sm:$0xf]
      %v295 = vld [vmem:[%s273 + $0x3c] sm:$0xf]
      %v296 = vld [vmem:[%s273 + $0x40] sm:$0xf]
      %v297 = vld [vmem:[%s273 + $0x44] sm:$0xf]
      %v298 = vld [vmem:[%s273 + $0x48] sm:$0xf]
      %v299 = vld [vmem:[%s273 + $0x4c] sm:$0xf]
      %v300 = vld [vmem:[%s273 + $0x50] sm:$0xf]
      %v301 = vld [vmem:[%s273 + $0x54] sm:$0xf]
      %v302 = vld [vmem:[%s273 + $0x58] sm:$0xf]
      %v303 = vld [vmem:[%s273 + $0x5c] sm:$0xf]
      %v304 = vld [vmem:[%s273 + $0x60] sm:$0xf]
      %v305 = vld [vmem:[%s273 + $0x64] sm:$0xf]
      %v306 = vld [vmem:[%s273 + $0x68] sm:$0xf]
      %v307 = vld [vmem:[%s273 + $0x6c] sm:$0xf]
      %v308 = vld [vmem:[%s273 + $0x70] sm:$0xf]
      %v309 = vld [vmem:[%s273 + $0x74] sm:$0xf]
      %v310 = vld [vmem:[%s273 + $0x78] sm:$0xf]
      %v311 = vld [vmem:[%s273 + $0x7c] sm:$0xf]
      %v312 = vld [vmem:[%s1] sm:$0xf]
      %v313 = vld [vmem:[%s1 + $0x4] sm:$0xf]
      %v314 = vld [vmem:[%s2] sm:$0x1]
      %v316 = vlaneseq
      %v317 = vshrl.u32 %v316, 7
      %v318 = vsub.s32 0, %v317
      %v319 = vrot.slane %v314, %v318
      %v353 = vunpack.c.l.b16 %v280
      %v354 = vunpack.c.l.b16 %v281
      %v355 = vunpack.c.l.b16 %v282
      %v356 = vunpack.c.l.b16 %v283
      %v357 = vunpack.c.l.b16 %v284
      %v358 = vunpack.c.l.b16 %v285
      %v359 = vunpack.c.l.b16 %v286
      %v360 = vunpack.c.l.b16 %v287
      %v361 = vunpack.c.l.b16 %v288
      %v362 = vunpack.c.l.b16 %v289
      %v363 = vunpack.c.l.b16 %v290
      %v364 = vunpack.c.l.b16 %v291
      %v365 = vunpack.c.l.b16 %v292
      %v366 = vunpack.c.l.b16 %v293
      %v367 = vunpack.c.l.b16 %v294
      %v368 = vunpack.c.l.b16 %v295
      %v369 = vunpack.c.l.b16 %v296
      %v370 = vunpack.c.l.b16 %v297
      %v371 = vunpack.c.l.b16 %v298
      %v372 = vunpack.c.l.b16 %v299
      %v373 = vunpack.c.l.b16 %v300
      %v374 = vunpack.c.l.b16 %v301
      %v375 = vunpack.c.l.b16 %v302
      %v376 = vunpack.c.l.b16 %v303
      %v377 = vunpack.c.l.b16 %v304
      %v378 = vunpack.c.l.b16 %v305
      %v379 = vunpack.c.l.b16 %v306
      %v380 = vunpack.c.l.b16 %v307
      %v381 = vunpack.c.l.b16 %v308
      %v382 = vunpack.c.l.b16 %v309
      %v383 = vunpack.c.l.b16 %v310
      %v384 = vunpack.c.l.b16 %v311
      %v385 = vpack.c.b16 %v354, %v353
      %v386 = vpack.c.b16 %v356, %v355
      %v387 = vpack.c.b16 %v358, %v357
      %v388 = vpack.c.b16 %v360, %v359
      %v389 = vpack.c.b16 %v362, %v361
      %v390 = vpack.c.b16 %v364, %v363
      %v391 = vpack.c.b16 %v366, %v365
      %v392 = vpack.c.b16 %v368, %v367
      %v393 = vpack.c.b16 %v370, %v369
      %v394 = vpack.c.b16 %v372, %v371
      %v395 = vpack.c.b16 %v374, %v373
      %v396 = vpack.c.b16 %v376, %v375
      %v397 = vpack.c.b16 %v378, %v377
      %v398 = vpack.c.b16 %v380, %v379
      %v399 = vpack.c.b16 %v382, %v381
      %v400 = vpack.c.b16 %v384, %v383
      %v403 = vunpack.c.l.b16 %v312
      %v404 = vunpack.c.l.b16 %v313
      %v405 = vpack.c.b16 %v404, %v403
      %vm407 = vcmask 130048
      %v409 = vsel %vm407, %v385, 0
      %v412 = vsel %vm407, %v386, 0
      %v415 = vsel %vm407, %v387, 0
      %v418 = vsel %vm407, %v388, 0
      %v421 = vsel %vm407, %v389, 0
      %v424 = vsel %vm407, %v390, 0
      %v427 = vsel %vm407, %v391, 0
      %v430 = vsel %vm407, %v392, 0
      %v433 = vsel %vm407, %v393, 0
      %v436 = vsel %vm407, %v394, 0
      %v439 = vsel %vm407, %v395, 0
      %v442 = vsel %vm407, %v396, 0
      %v445 = vsel %vm407, %v397, 0
      %v448 = vsel %vm407, %v398, 0
      %v451 = vsel %vm407, %v399, 0
      %v454 = vsel %vm407, %v400, 0
      %456 = vmatprep.subr.bf16.mxu0 0
      %457 = vmatpush1.bf16.msra.mxu0 0
      %458 = vmatprep.subr.bf16.mxu0 0
      %459 = vmatpush1.bf16.msra.mxu0 0
      %460 = vmatprep.subr.bf16.mxu0 0
      %461 = vmatpush1.bf16.msra.mxu0 0
      %462 = vmatprep.subr.bf16.mxu0 0
      %463 = vmatpush1.bf16.msra.mxu0 0
      %464 = vmatprep.subr.bf16.mxu0 0
      %465 = vmatpush1.bf16.msra.mxu0 0
      %466 = vmatprep.subr.bf16.mxu0 0
      %467 = vmatpush1.bf16.msra.mxu0 0
      %468 = vmatprep.subr.bf16.mxu0 0
      %469 = vmatpush1.bf16.msra.mxu0 0
      %470 = vmatprep.subr.bf16.mxu0 0
      %471 = vmatpush1.bf16.msra.mxu0 %v405
      %472 = vmatprep.subr.bf16.mxu0 0
      %473 = vmatpush2.bf16.msra.mxu0 0
      %474 = vmatprep.subr.bf16.mxu0 0
      %475 = vmatpush2.bf16.msra.mxu0 0
      %476 = vmatprep.subr.bf16.mxu0 0
      %477 = vmatpush2.bf16.msra.mxu0 0
      %478 = vmatprep.subr.bf16.mxu0 0
      %479 = vmatpush2.bf16.msra.mxu0 0
      %480 = vmatprep.subr.bf16.mxu0 0
      %481 = vmatpush2.bf16.msra.mxu0 0
      %482 = vmatprep.subr.bf16.mxu0 0
      %483 = vmatpush2.bf16.msra.mxu0 0
      %484 = vmatprep.subr.bf16.mxu0 0
      %485 = vmatpush2.bf16.msra.mxu0 0
      %486 = vmatprep.subr.bf16.mxu0 0
      %487 = vmatpush2.bf16.msra.mxu0 0
      %488 = vmatprep.mubr.bf16.mxu0 0
      %489 = vmatmul.mubr.bf16.gmra.mxu0 %v409
      %v490 = vpop.f32.mrf.mxu0
      %v491 = vadd.f32 %v319, %v490
      %v492 = vpop.f32.mrf.mxu0
      %v493 = vpop.f32.mrf.mxu0
      %v494 = vadd.f32 %v319, %v493
      %v495 = vpop.f32.mrf.mxu0
      %496 = vmatprep.mubr.bf16.mxu0 0
      %497 = vmatmul.mubr.bf16.gmra.mxu0 %v412
      %v498 = vpop.f32.mrf.mxu0
      %v499 = vadd.f32 %v319, %v498
      %v500 = vpop.f32.mrf.mxu0
      %v501 = vpop.f32.mrf.mxu0
      %v502 = vadd.f32 %v319, %v501
      %v503 = vpop.f32.mrf.mxu0
      %504 = vmatprep.mubr.bf16.mxu0 0
      %505 = vmatmul.mubr.bf16.gmra.mxu0 %v415
      %v506 = vpop.f32.mrf.mxu0
      %v507 = vadd.f32 %v319, %v506
      %v508 = vpop.f32.mrf.mxu0
      %v509 = vpop.f32.mrf.mxu0
      %v510 = vadd.f32 %v319, %v509
      %v511 = vpop.f32.mrf.mxu0
      %512 = vmatprep.mubr.bf16.mxu0 0
      %513 = vmatmul.mubr.bf16.gmra.mxu0 %v418
      %v514 = vpop.f32.mrf.mxu0
      %v515 = vadd.f32 %v319, %v514
      %v516 = vpop.f32.mrf.mxu0
      %v517 = vpop.f32.mrf.mxu0
      %v518 = vadd.f32 %v319, %v517
      %v519 = vpop.f32.mrf.mxu0
      %520 = vmatprep.mubr.bf16.mxu0 0
      %521 = vmatmul.mubr.bf16.gmra.mxu0 %v421
      %v522 = vpop.f32.mrf.mxu0
      %v523 = vadd.f32 %v319, %v522
      %v524 = vpop.f32.mrf.mxu0
      %v525 = vpop.f32.mrf.mxu0
      %v526 = vadd.f32 %v319, %v525
      %v527 = vpop.f32.mrf.mxu0
      %528 = vmatprep.mubr.bf16.mxu0 0
      %529 = vmatmul.mubr.bf16.gmra.mxu0 %v424
      %v530 = vpop.f32.mrf.mxu0
      %v531 = vadd.f32 %v319, %v530
      %v532 = vpop.f32.mrf.mxu0
      %v533 = vpop.f32.mrf.mxu0
      %v534 = vadd.f32 %v319, %v533
      %v535 = vpop.f32.mrf.mxu0
      %536 = vmatprep.mubr.bf16.mxu0 0
      %537 = vmatmul.mubr.bf16.gmra.mxu0 %v427
      %v538 = vpop.f32.mrf.mxu0
      %v539 = vadd.f32 %v319, %v538
      %v540 = vpop.f32.mrf.mxu0
      %v541 = vpop.f32.mrf.mxu0
      %v542 = vadd.f32 %v319, %v541
      %v543 = vpop.f32.mrf.mxu0
      %544 = vmatprep.mubr.bf16.mxu0 0
      %545 = vmatmul.mubr.bf16.gmra.mxu0 %v430
      %v546 = vpop.f32.mrf.mxu0
      %v547 = vadd.f32 %v319, %v546
      %v548 = vpop.f32.mrf.mxu0
      %v549 = vpop.f32.mrf.mxu0
      %v550 = vadd.f32 %v319, %v549
      %v551 = vpop.f32.mrf.mxu0
      %552 = vmatprep.mubr.bf16.mxu0 0
      %553 = vmatmul.mubr.bf16.gmra.mxu0 %v433
      %v554 = vpop.f32.mrf.mxu0
      %v555 = vadd.f32 %v319, %v554
      %v556 = vpop.f32.mrf.mxu0
      %v557 = vpop.f32.mrf.mxu0
      %v558 = vadd.f32 %v319, %v557
      %v559 = vpop.f32.mrf.mxu0
      %560 = vmatprep.mubr.bf16.mxu0 0
      %561 = vmatmul.mubr.bf16.gmra.mxu0 %v436
      %v562 = vpop.f32.mrf.mxu0
      %v563 = vadd.f32 %v319, %v562
      %v564 = vpop.f32.mrf.mxu0
      %v565 = vpop.f32.mrf.mxu0
      %v566 = vadd.f32 %v319, %v565
      %v567 = vpop.f32.mrf.mxu0
      %568 = vmatprep.mubr.bf16.mxu0 0
      %569 = vmatmul.mubr.bf16.gmra.mxu0 %v439
      %v570 = vpop.f32.mrf.mxu0
      %v571 = vadd.f32 %v319, %v570
      %v572 = vpop.f32.mrf.mxu0
      %v573 = vpop.f32.mrf.mxu0
      %v574 = vadd.f32 %v319, %v573
      %v575 = vpop.f32.mrf.mxu0
      %576 = vmatprep.mubr.bf16.mxu0 0
      %577 = vmatmul.mubr.bf16.gmra.mxu0 %v442
      %v578 = vpop.f32.mrf.mxu0
      %v579 = vadd.f32 %v319, %v578
      %v580 = vpop.f32.mrf.mxu0
      %v581 = vpop.f32.mrf.mxu0
      %v582 = vadd.f32 %v319, %v581
      %v583 = vpop.f32.mrf.mxu0
      %584 = vmatprep.mubr.bf16.mxu0 0
      %585 = vmatmul.mubr.bf16.gmra.mxu0 %v445
      %v586 = vpop.f32.mrf.mxu0
      %v587 = vadd.f32 %v319, %v586
      %v588 = vpop.f32.mrf.mxu0
      %v589 = vpop.f32.mrf.mxu0
      %v590 = vadd.f32 %v319, %v589
      %v591 = vpop.f32.mrf.mxu0
      %592 = vmatprep.mubr.bf16.mxu0 0
      %593 = vmatmul.mubr.bf16.gmra.mxu0 %v448
      %v594 = vpop.f32.mrf.mxu0
      %v595 = vadd.f32 %v319, %v594
      %v596 = vpop.f32.mrf.mxu0
      %v597 = vpop.f32.mrf.mxu0
      %v598 = vadd.f32 %v319, %v597
      %v599 = vpop.f32.mrf.mxu0
      %600 = vmatprep.mubr.bf16.mxu0 0
      %601 = vmatmul.mubr.bf16.gmra.mxu0 %v451
      %v602 = vpop.f32.mrf.mxu0
      %v603 = vadd.f32 %v319, %v602
      %v604 = vpop.f32.mrf.mxu0
      %v605 = vpop.f32.mrf.mxu0
      %v606 = vadd.f32 %v319, %v605
      %v607 = vpop.f32.mrf.mxu0
      %608 = vmatprep.mubr.bf16.mxu0 0
      %609 = vmatmul.mubr.bf16.gmra.mxu0 %v454
      %v610 = vpop.f32.mrf.mxu0
      %v611 = vadd.f32 %v319, %v610
      %v612 = vpop.f32.mrf.mxu0
      %v613 = vpop.f32.mrf.mxu0
      %v614 = vadd.f32 %v319, %v613
      %v615 = vpop.f32.mrf.mxu0
      %616 = vdwg.mxu0
      %v617 = vmax.f32 %v491, 0.0
      %v618 = vmax.f32 %v494, 0.0
      %v619 = vmax.f32 %v499, 0.0
      %v620 = vmax.f32 %v502, 0.0
      %v621 = vmax.f32 %v507, 0.0
      %v622 = vmax.f32 %v510, 0.0
      %v623 = vmax.f32 %v515, 0.0
      %v624 = vmax.f32 %v518, 0.0
      %v625 = vmax.f32 %v523, 0.0
      %v626 = vmax.f32 %v526, 0.0
      %v627 = vmax.f32 %v531, 0.0
      %v628 = vmax.f32 %v534, 0.0
      %v629 = vmax.f32 %v539, 0.0
      %v630 = vmax.f32 %v542, 0.0
      %v631 = vmax.f32 %v547, 0.0
      %v632 = vmax.f32 %v550, 0.0
      %v633 = vmax.f32 %v555, 0.0
      %v634 = vmax.f32 %v558, 0.0
      %v635 = vmax.f32 %v563, 0.0
      %v636 = vmax.f32 %v566, 0.0
      %v637 = vmax.f32 %v571, 0.0
      %v638 = vmax.f32 %v574, 0.0
      %v639 = vmax.f32 %v579, 0.0
      %v640 = vmax.f32 %v582, 0.0
      %v641 = vmax.f32 %v587, 0.0
      %v642 = vmax.f32 %v590, 0.0
      %v643 = vmax.f32 %v595, 0.0
      %v644 = vmax.f32 %v598, 0.0
      %v645 = vmax.f32 %v603, 0.0
      %v646 = vmax.f32 %v606, 0.0
      %v647 = vmax.f32 %v611, 0.0
      %v648 = vmax.f32 %v614, 0.0
      %v649 = vpack.c.bf16 %v618, %v617
      %v650 = vpack.c.bf16 %v620, %v619
      %v651 = vpack.c.bf16 %v622, %v621
      %v652 = vpack.c.bf16 %v624, %v623
      %v653 = vpack.c.bf16 %v626, %v625
      %v654 = vpack.c.bf16 %v628, %v627
      %v655 = vpack.c.bf16 %v630, %v629
      %v656 = vpack.c.bf16 %v632, %v631
      %v657 = vpack.c.bf16 %v634, %v633
      %v658 = vpack.c.bf16 %v636, %v635
      %v659 = vpack.c.bf16 %v638, %v637
      %v660 = vpack.c.bf16 %v640, %v639
      %v661 = vpack.c.bf16 %v642, %v641
      %v662 = vpack.c.bf16 %v644, %v643
      %v663 = vpack.c.bf16 %v646, %v645
      %v664 = vpack.c.bf16 %v648, %v647
      %vm665 = vcmask 27648
      %666 = vst.msk [vmem:[#allocation2] sm:$0xf] %vm665, 0
      %667 = vst.msk [vmem:[#allocation2 + $0x4] sm:$0xf] %vm665, 0
      %668 = vst.msk [vmem:[#allocation2 + $0x8] sm:$0xf] %vm665, 0
      %669 = vst.msk [vmem:[#allocation2 + $0xc] sm:$0xf] %vm665, 0
      %670 = vst.msk [vmem:[#allocation2 + $0x10] sm:$0xf] %vm665, 0
      %671 = vst.msk [vmem:[#allocation2 + $0x14] sm:$0xf] %vm665, 0
      %672 = vst.msk [vmem:[#allocation2 + $0x18] sm:$0xf] %vm665, 0
      %673 = vst.msk [vmem:[#allocation2 + $0x1c] sm:$0xf] %vm665, 0
      %674 = vst.msk [vmem:[#allocation2 + $0x20] sm:$0xf] %vm665, 0
      %675 = vst.msk [vmem:[#allocation2 + $0x24] sm:$0xf] %vm665, 0
      %676 = vst.msk [vmem:[#allocation2 + $0x28] sm:$0xf] %vm665, 0
      %677 = vst.msk [vmem:[#allocation2 + $0x2c] sm:$0xf] %vm665, 0
      %678 = vst.msk [vmem:[#allocation2 + $0x30] sm:$0xf] %vm665, 0
      %679 = vst.msk [vmem:[#allocation2 + $0x34] sm:$0xf] %vm665, 0
      %680 = vst.msk [vmem:[#allocation2 + $0x38] sm:$0xf] %vm665, 0
      %681 = vst.msk [vmem:[#allocation2 + $0x3c] sm:$0xf] %vm665, 0
      %682 = vst.msk [vmem:[#allocation2 + $0x40] sm:$0xf] %vm665, 0
      %683 = vst.msk [vmem:[#allocation2 + $0x44] sm:$0xf] %vm665, 0
      %684 = vst.msk [vmem:[#allocation2 + $0x48] sm:$0xf] %vm665, 0
      %685 = vst.msk [vmem:[#allocation2 + $0x4c] sm:$0xf] %vm665, 0
      %686 = vst.msk [vmem:[#allocation2 + $0x50] sm:$0xf] %vm665, 0
      %687 = vst.msk [vmem:[#allocation2 + $0x54] sm:$0xf] %vm665, 0
      %688 = vst.msk [vmem:[#allocation2 + $0x58] sm:$0xf] %vm665, 0
      %689 = vst.msk [vmem:[#allocation2 + $0x5c] sm:$0xf] %vm665, 0
      %690 = vst.msk [vmem:[#allocation2 + $0x60] sm:$0xf] %vm665, 0
      %691 = vst.msk [vmem:[#allocation2 + $0x64] sm:$0xf] %vm665, 0
      %692 = vst.msk [vmem:[#allocation2 + $0x68] sm:$0xf] %vm665, 0
      %693 = vst.msk [vmem:[#allocation2 + $0x6c] sm:$0xf] %vm665, 0
      %694 = vst.msk [vmem:[#allocation2 + $0x70] sm:$0xf] %vm665, 0
      %695 = vst.msk [vmem:[#allocation2 + $0x74] sm:$0xf] %vm665, 0
      %696 = vst.msk [vmem:[#allocation2 + $0x78] sm:$0xf] %vm665, 0
      %697 = vst.msk [vmem:[#allocation2 + $0x7c] sm:$0xf] %vm665, 0
      %698 = vst.msk [vmem:[#allocation2 + $0x80] sm:$0xf] %vm665, 0
      %699 = vst.msk [vmem:[#allocation2 + $0x84] sm:$0xf] %vm665, 0
      %700 = vst.msk [vmem:[#allocation2 + $0x88] sm:$0xf] %vm665, 0
      %701 = vst.msk [vmem:[#allocation2 + $0x8c] sm:$0xf] %vm665, 0
      %702 = vst.msk [vmem:[#allocation2 + $0x90] sm:$0xf] %vm665, 0
      %703 = vst.msk [vmem:[#allocation2 + $0x94] sm:$0xf] %vm665, 0
      %704 = vst.msk [vmem:[#allocation2 + $0x98] sm:$0xf] %vm665, 0
      %705 = vst.msk [vmem:[#allocation2 + $0x9c] sm:$0xf] %vm665, 0
      %706 = vst.msk [vmem:[#allocation2 + $0xa0] sm:$0xf] %vm665, 0
      %707 = vst.msk [vmem:[#allocation2 + $0xa4] sm:$0xf] %vm665, 0
      %708 = vst.msk [vmem:[#allocation2 + $0xa8] sm:$0xf] %vm665, 0
      %709 = vst.msk [vmem:[#allocation2 + $0xac] sm:$0xf] %vm665, 0
      %710 = vst.msk [vmem:[#allocation2 + $0xb0] sm:$0xf] %vm665, 0
      %711 = vst.msk [vmem:[#allocation2 + $0xb4] sm:$0xf] %vm665, 0
      %712 = vst.msk [vmem:[#allocation2 + $0xb8] sm:$0xf] %vm665, 0
      %713 = vst.msk [vmem:[#allocation2 + $0xbc] sm:$0xf] %vm665, 0
      %714 = vst.msk [vmem:[#allocation2 + $0xc0] sm:$0xf] %vm665, 0
      %715 = vst.msk [vmem:[#allocation2 + $0xc4] sm:$0xf] %vm665, 0
      %716 = vst.msk [vmem:[#allocation2 + $0xc8] sm:$0xf] %vm665, 0
      %717 = vst.msk [vmem:[#allocation2 + $0xcc] sm:$0xf] %vm665, 0
      %718 = vst.msk [vmem:[#allocation2 + $0xd0] sm:$0xf] %vm665, 0
      %719 = vst.msk [vmem:[#allocation2 + $0xd4] sm:$0xf] %vm665, 0
      %720 = vst.msk [vmem:[#allocation2 + $0xd8] sm:$0xf] %vm665, 0
      %721 = vst.msk [vmem:[#allocation2 + $0xdc] sm:$0xf] %vm665, 0
      %v723 = vunpack.c.l.b16 %v649
      %v724 = vunpack.c.h.b16 %v649
      %v725 = vpack.c.b16 %v723, %v723
      %v726 = vpack.c.b16 %v724, %v724
      %729 = vst.msk [vmem:[#allocation2 + $0x10] sm:$0xf] %vm665, %v725
      %730 = vst.msk [vmem:[#allocation2 + $0x14] sm:$0xf] %vm665, %v726
      %v732 = vunpack.c.l.b16 %v650
      %v733 = vunpack.c.h.b16 %v650
      %v734 = vpack.c.b16 %v732, %v732
      %v735 = vpack.c.b16 %v733, %v733
      %738 = vst.msk [vmem:[#allocation2 + $0x1c] sm:$0xf] %vm665, %v734
      %739 = vst.msk [vmem:[#allocation2 + $0x20] sm:$0xf] %vm665, %v735
      %v741 = vunpack.c.l.b16 %v651
      %v742 = vunpack.c.h.b16 %v651
      %v743 = vpack.c.b16 %v741, %v741
      %v744 = vpack.c.b16 %v742, %v742
      %747 = vst.msk [vmem:[#allocation2 + $0x28] sm:$0xf] %vm665, %v743
      %748 = vst.msk [vmem:[#allocation2 + $0x2c] sm:$0xf] %vm665, %v744
      %v750 = vunpack.c.l.b16 %v652
      %v751 = vunpack.c.h.b16 %v652
      %v752 = vpack.c.b16 %v750, %v750
      %v753 = vpack.c.b16 %v751, %v751
      %756 = vst.msk [vmem:[#allocation2 + $0x34] sm:$0xf] %vm665, %v752
      %757 = vst.msk [vmem:[#allocation2 + $0x38] sm:$0xf] %vm665, %v753
      %v759 = vunpack.c.l.b16 %v653
      %v760 = vunpack.c.h.b16 %v653
      %v761 = vpack.c.b16 %v759, %v759
      %v762 = vpack.c.b16 %v760, %v760
      %765 = vst.msk [vmem:[#allocation2 + $0x40] sm:$0xf] %vm665, %v761
      %766 = vst.msk [vmem:[#allocation2 + $0x44] sm:$0xf] %vm665, %v762
      %v768 = vunpack.c.l.b16 %v654
      %v769 = vunpack.c.h.b16 %v654
      %v770 = vpack.c.b16 %v768, %v768
      %v771 = vpack.c.b16 %v769, %v769
      %774 = vst.msk [vmem:[#allocation2 + $0x4c] sm:$0xf] %vm665, %v770
      %775 = vst.msk [vmem:[#allocation2 + $0x50] sm:$0xf] %vm665, %v771
      %v777 = vunpack.c.l.b16 %v655
      %v778 = vunpack.c.h.b16 %v655
      %v779 = vpack.c.b16 %v777, %v777
      %v780 = vpack.c.b16 %v778, %v778
      %783 = vst.msk [vmem:[#allocation2 + $0x58] sm:$0xf] %vm665, %v779
      %784 = vst.msk [vmem:[#allocation2 + $0x5c] sm:$0xf] %vm665, %v780
      %v786 = vunpack.c.l.b16 %v656
      %v787 = vunpack.c.h.b16 %v656
      %v788 = vpack.c.b16 %v786, %v786
      %v789 = vpack.c.b16 %v787, %v787
      %792 = vst.msk [vmem:[#allocation2 + $0x64] sm:$0xf] %vm665, %v788
      %793 = vst.msk [vmem:[#allocation2 + $0x68] sm:$0xf] %vm665, %v789
      %v795 = vunpack.c.l.b16 %v657
      %v796 = vunpack.c.h.b16 %v657
      %v797 = vpack.c.b16 %v795, %v795
      %v798 = vpack.c.b16 %v796, %v796
      %801 = vst.msk [vmem:[#allocation2 + $0x70] sm:$0xf] %vm665, %v797
      %802 = vst.msk [vmem:[#allocation2 + $0x74] sm:$0xf] %vm665, %v798
      %v804 = vunpack.c.l.b16 %v658
      %v805 = vunpack.c.h.b16 %v658
      %v806 = vpack.c.b16 %v804, %v804
      %v807 = vpack.c.b16 %v805, %v805
      %810 = vst.msk [vmem:[#allocation2 + $0x7c] sm:$0xf] %vm665, %v806
      %811 = vst.msk [vmem:[#allocation2 + $0x80] sm:$0xf] %vm665, %v807
      %v813 = vunpack.c.l.b16 %v659
      %v814 = vunpack.c.h.b16 %v659
      %v815 = vpack.c.b16 %v813, %v813
      %v816 = vpack.c.b16 %v814, %v814
      %819 = vst.msk [vmem:[#allocation2 + $0x88] sm:$0xf] %vm665, %v815
      %820 = vst.msk [vmem:[#allocation2 + $0x8c] sm:$0xf] %vm665, %v816
      %v822 = vunpack.c.l.b16 %v660
      %v823 = vunpack.c.h.b16 %v660
      %v824 = vpack.c.b16 %v822, %v822
      %v825 = vpack.c.b16 %v823, %v823
      %828 = vst.msk [vmem:[#allocation2 + $0x94] sm:$0xf] %vm665, %v824
      %829 = vst.msk [vmem:[#allocation2 + $0x98] sm:$0xf] %vm665, %v825
      %v831 = vunpack.c.l.b16 %v661
      %v832 = vunpack.c.h.b16 %v661
      %v833 = vpack.c.b16 %v831, %v831
      %v834 = vpack.c.b16 %v832, %v832
      %837 = vst.msk [vmem:[#allocation2 + $0xa0] sm:$0xf] %vm665, %v833
      %838 = vst.msk [vmem:[#allocation2 + $0xa4] sm:$0xf] %vm665, %v834
      %v840 = vunpack.c.l.b16 %v662
      %v841 = vunpack.c.h.b16 %v662
      %v842 = vpack.c.b16 %v840, %v840
      %v843 = vpack.c.b16 %v841, %v841
      %846 = vst.msk [vmem:[#allocation2 + $0xac] sm:$0xf] %vm665, %v842
      %847 = vst.msk [vmem:[#allocation2 + $0xb0] sm:$0xf] %vm665, %v843
      %v849 = vunpack.c.l.b16 %v663
      %v850 = vunpack.c.h.b16 %v663
      %v851 = vpack.c.b16 %v849, %v849
      %v852 = vpack.c.b16 %v850, %v850
      %855 = vst.msk [vmem:[#allocation2 + $0xb8] sm:$0xf] %vm665, %v851
      %856 = vst.msk [vmem:[#allocation2 + $0xbc] sm:$0xf] %vm665, %v852
      %v858 = vunpack.c.l.b16 %v664
      %v859 = vunpack.c.h.b16 %v664
      %v860 = vpack.c.b16 %v858, %v858
      %v861 = vpack.c.b16 %v859, %v859
      %864 = vst.msk [vmem:[#allocation2 + $0xc4] sm:$0xf] %vm665, %v860
      %865 = vst.msk [vmem:[#allocation2 + $0xc8] sm:$0xf] %vm665, %v861
      %v866 = vld [vmem:[#allocation2] sm:$0x8]
      %v867 = vld [vmem:[#allocation2 + $0x4] sm:$0xf]
      %v868 = vld [vmem:[#allocation2 + $0x8] sm:$0xf]
      %v869 = vld [vmem:[#allocation2 + $0xc] sm:$0xf]
      %v870 = vld [vmem:[#allocation2 + $0x10] sm:$0xf]
      %v871 = vld [vmem:[#allocation2 + $0x14] sm:$0xf]
      %v872 = vld [vmem:[#allocation2 + $0x18] sm:$0xf]
      %v873 = vld [vmem:[#allocation2 + $0x1c] sm:$0xf]
      %v874 = vld [vmem:[#allocation2 + $0x20] sm:$0xf]
      %v875 = vld [vmem:[#allocation2 + $0x24] sm:$0xf]
      %v876 = vld [vmem:[#allocation2 + $0x28] sm:$0xf]
      %v877 = vld [vmem:[#allocation2 + $0x2c] sm:$0xf]
      %v878 = vld [vmem:[#allocation2 + $0x30] sm:$0xf]
      %v879 = vld [vmem:[#allocation2 + $0x34] sm:$0xf]
      %v880 = vld [vmem:[#allocation2 + $0x38] sm:$0xf]
      %v881 = vld [vmem:[#allocation2 + $0x3c] sm:$0xf]
      %v882 = vld [vmem:[#allocation2 + $0x40] sm:$0xf]
      %v883 = vld [vmem:[#allocation2 + $0x44] sm:$0xf]
      %v884 = vld [vmem:[#allocation2 + $0x48] sm:$0xf]
      %v885 = vld [vmem:[#allocation2 + $0x4c] sm:$0xf]
      %v886 = vld [vmem:[#allocation2 + $0x50] sm:$0xf]
      %v887 = vld [vmem:[#allocation2 + $0x54] sm:$0xf]
      %v888 = vld [vmem:[#allocation2 + $0x58] sm:$0xf]
      %v889 = vld [vmem:[#allocation2 + $0x5c] sm:$0xf]
      %v890 = vld [vmem:[#allocation2 + $0x60] sm:$0xf]
      %v891 = vld [vmem:[#allocation2 + $0x64] sm:$0xf]
      %v892 = vld [vmem:[#allocation2 + $0x68] sm:$0xf]
      %v893 = vld [vmem:[#allocation2 + $0x6c] sm:$0xf]
      %v894 = vld [vmem:[#allocation2 + $0x70] sm:$0xf]
      %v895 = vld [vmem:[#allocation2 + $0x74] sm:$0xf]
      %v896 = vld [vmem:[#allocation2 + $0x78] sm:$0xf]
      %v897 = vld [vmem:[#allocation2 + $0x7c] sm:$0xf]
      %v898 = vld [vmem:[#allocation2 + $0x80] sm:$0xf]
      %v899 = vld [vmem:[#allocation2 + $0x84] sm:$0xf]
      %v900 = vld [vmem:[#allocation2 + $0x88] sm:$0xf]
      %v901 = vld [vmem:[#allocation2 + $0x8c] sm:$0xf]
      %v902 = vld [vmem:[#allocation2 + $0x90] sm:$0xf]
      %v903 = vld [vmem:[#allocation2 + $0x94] sm:$0xf]
      %v904 = vld [vmem:[#allocation2 + $0x98] sm:$0xf]
      %v905 = vld [vmem:[#allocation2 + $0x9c] sm:$0xf]
      %v906 = vld [vmem:[#allocation2 + $0xa0] sm:$0xf]
      %v907 = vld [vmem:[#allocation2 + $0xa4] sm:$0xf]
      %v908 = vld [vmem:[#allocation2 + $0xa8] sm:$0xf]
      %v909 = vld [vmem:[#allocation2 + $0xac] sm:$0xf]
      %v910 = vld [vmem:[#allocation2 + $0xb0] sm:$0xf]
      %v911 = vld [vmem:[#allocation2 + $0xb4] sm:$0xf]
      %v912 = vld [vmem:[#allocation2 + $0xb8] sm:$0xf]
      %v913 = vld [vmem:[#allocation2 + $0xbc] sm:$0xf]
      %v914 = vld [vmem:[#allocation2 + $0xc0] sm:$0xf]
      %v915 = vld [vmem:[%s3] sm:$0x3]
      %s916 = scalar_lea.vmem %s3, 2
      %v917 = vld [vmem:[%s916] sm:$0x3]
      %v966 = vunpack.c.l.b16 %v867
      %v967 = vunpack.c.l.b16 %v868
      %v968 = vunpack.c.l.b16 %v869
      %v969 = vunpack.c.l.b16 %v870
      %v970 = vunpack.c.l.b16 %v871
      %v971 = vunpack.c.l.b16 %v872
      %v972 = vunpack.c.l.b16 %v873
      %v973 = vunpack.c.l.b16 %v874
      %v974 = vunpack.c.l.b16 %v875
      %v975 = vunpack.c.l.b16 %v876
      %v976 = vunpack.c.l.b16 %v877
      %v977 = vunpack.c.l.b16 %v878
      %v978 = vunpack.c.l.b16 %v879
      %v979 = vunpack.c.l.b16 %v880
      %v980 = vunpack.c.l.b16 %v881
      %v981 = vunpack.c.l.b16 %v882
      %v982 = vunpack.c.l.b16 %v883
      %v983 = vunpack.c.l.b16 %v884
      %v984 = vunpack.c.l.b16 %v885
      %v985 = vunpack.c.l.b16 %v886
      %v986 = vunpack.c.l.b16 %v887
      %v987 = vunpack.c.l.b16 %v888
      %v988 = vunpack.c.l.b16 %v889
      %v989 = vunpack.c.l.b16 %v890
      %v990 = vunpack.c.l.b16 %v891
      %v991 = vunpack.c.l.b16 %v892
      %v992 = vunpack.c.l.b16 %v893
      %v993 = vunpack.c.l.b16 %v894
      %v994 = vunpack.c.l.b16 %v895
      %v995 = vunpack.c.l.b16 %v896
      %v996 = vunpack.c.l.b16 %v897
      %v997 = vunpack.c.l.b16 %v898
      %v998 = vunpack.c.l.b16 %v899
      %v999 = vunpack.c.l.b16 %v900
      %v1000 = vunpack.c.l.b16 %v901
      %v1001 = vunpack.c.l.b16 %v902
      %v1002 = vunpack.c.l.b16 %v903
      %v1003 = vunpack.c.l.b16 %v904
      %v1004 = vunpack.c.l.b16 %v905
      %v1005 = vunpack.c.l.b16 %v906
      %v1006 = vunpack.c.l.b16 %v907
      %v1007 = vunpack.c.l.b16 %v908
      %v1008 = vunpack.c.l.b16 %v909
      %v1009 = vunpack.c.l.b16 %v910
      %v1010 = vunpack.c.l.b16 %v911
      %v1011 = vunpack.c.l.b16 %v912
      %v1012 = vunpack.c.l.b16 %v913
      %v1013 = vunpack.c.l.b16 %v914
      %v1014 = vpack.c.b16 %v967, %v966
      %v1015 = vpack.c.b16 %v969, %v968
      %v1016 = vpack.c.b16 %v971, %v970
      %v1017 = vpack.c.b16 %v973, %v972
      %v1018 = vpack.c.b16 %v975, %v974
      %v1019 = vpack.c.b16 %v977, %v976
      %v1020 = vpack.c.b16 %v979, %v978
      %v1021 = vpack.c.b16 %v981, %v980
      %v1022 = vpack.c.b16 %v983, %v982
      %v1023 = vpack.c.b16 %v985, %v984
      %v1024 = vpack.c.b16 %v987, %v986
      %v1025 = vpack.c.b16 %v989, %v988
      %v1026 = vpack.c.b16 %v991, %v990
      %v1027 = vpack.c.b16 %v993, %v992
      %v1028 = vpack.c.b16 %v995, %v994
      %v1029 = vpack.c.b16 %v997, %v996
      %v1030 = vpack.c.b16 %v999, %v998
      %v1031 = vpack.c.b16 %v1001, %v1000
      %v1032 = vpack.c.b16 %v1003, %v1002
      %v1033 = vpack.c.b16 %v1005, %v1004
      %v1034 = vpack.c.b16 %v1007, %v1006
      %v1035 = vpack.c.b16 %v1009, %v1008
      %v1036 = vpack.c.b16 %v1011, %v1010
      %v1037 = vpack.c.b16 %v1013, %v1012
      %vm1038 = vcmask 31744
      %v1040 = vsel %vm1038, %v1014, 0
      %v1043 = vsel %vm1038, %v1015, 0
      %v1046 = vsel %vm1038, %v1016, 0
      %v1049 = vsel %vm1038, %v1017, 0
      %v1052 = vsel %vm1038, %v1018, 0
      %v1055 = vsel %vm1038, %v1019, 0
      %v1058 = vsel %vm1038, %v1020, 0
      %v1061 = vsel %vm1038, %v1021, 0
      %v1064 = vsel %vm1038, %v1022, 0
      %v1067 = vsel %vm1038, %v1023, 0
      %v1070 = vsel %vm1038, %v1024, 0
      %v1073 = vsel %vm1038, %v1025, 0
      %v1076 = vsel %vm1038, %v1026, 0
      %v1079 = vsel %vm1038, %v1027, 0
      %v1082 = vsel %vm1038, %v1028, 0
      %v1085 = vsel %vm1038, %v1029, 0
      %v1088 = vsel %vm1038, %v1030, 0
      %v1091 = vsel %vm1038, %v1031, 0
      %v1094 = vsel %vm1038, %v1032, 0
      %v1097 = vsel %vm1038, %v1033, 0
      %v1100 = vsel %vm1038, %v1034, 0
      %v1103 = vsel %vm1038, %v1035, 0
      %v1106 = vsel %vm1038, %v1036, 0
      %v1109 = vsel %vm1038, %v1037, 0
      %vm1111 = vcmask 1041408
      %v1113 = vsel %vm1111, %v917, 0
      %1115 = vmatprep.subr.bf16.mxu0 0
      %1116 = vmatpush1.bf16.msra.mxu0 0
      %1117 = vmatprep.subr.bf16.mxu0 0
      %1118 = vmatpush1.bf16.msra.mxu0 0
      %1119 = vmatprep.subr.bf16.mxu0 0
      %1120 = vmatpush1.bf16.msra.mxu0 0
      %1121 = vmatprep.subr.bf16.mxu0 0
      %1122 = vmatpush1.bf16.msra.mxu0 0
      %1123 = vmatprep.subr.bf16.mxu0 0
      %1124 = vmatpush1.bf16.msra.mxu0 0
      %1125 = vmatprep.subr.bf16.mxu0 0
      %1126 = vmatpush1.bf16.msra.mxu0 0
      %1127 = vmatprep.subr.bf16.mxu0 0
      %1128 = vmatpush1.bf16.msra.mxu0 0
      %1129 = vmatprep.subr.bf16.mxu0 0
      %1130 = vmatpush1.bf16.msra.mxu0 %v1113
      %1131 = vmatprep.subr.bf16.mxu0 0
      %1132 = vmatpush2.bf16.msra.mxu0 0
      %1133 = vmatprep.subr.bf16.mxu0 0
      %1134 = vmatpush2.bf16.msra.mxu0 0
      %1135 = vmatprep.subr.bf16.mxu0 0
      %1136 = vmatpush2.bf16.msra.mxu0 0
      %1137 = vmatprep.subr.bf16.mxu0 0
      %1138 = vmatpush2.bf16.msra.mxu0 0
      %1139 = vmatprep.subr.bf16.mxu0 0
      %1140 = vmatpush2.bf16.msra.mxu0 0
      %1141 = vmatprep.subr.bf16.mxu0 0
      %1142 = vmatpush2.bf16.msra.mxu0 0
      %1143 = vmatprep.subr.bf16.mxu0 0
      %1144 = vmatpush2.bf16.msra.mxu0 0
      %1145 = vmatprep.subr.bf16.mxu0 0
      %1146 = vmatpush2.bf16.msra.mxu0 0
      %1147 = vmatprep.mubr.bf16.mxu0 0
      %1148 = vmatmul.mubr.bf16.gmra.mxu0 %v1040
      %v1149 = vpop.f32.mrf.mxu0
      %v1150 = vadd.f32 0.0, %v1149
      %v1151 = vpop.f32.mrf.mxu0
      %v1152 = vpop.f32.mrf.mxu0
      %v1153 = vadd.f32 0.0, %v1152
      %v1154 = vpop.f32.mrf.mxu0
      %1155 = vmatprep.mubr.bf16.mxu0 0
      %1156 = vmatmul.mubr.bf16.gmra.mxu0 %v1043
      %v1157 = vpop.f32.mrf.mxu0
      %v1158 = vpop.f32.mrf.mxu0
      %v1159 = vpop.f32.mrf.mxu0
      %v1160 = vadd.f32 0.0, %v1159
      %v1161 = vpop.f32.mrf.mxu0
      %1162 = vmatprep.mubr.bf16.mxu0 0
      %1163 = vmatmul.mubr.bf16.gmra.mxu0 %v1046
      %v1164 = vpop.f32.mrf.mxu0
      %v1165 = vadd.f32 0.0, %v1164
      %v1166 = vpop.f32.mrf.mxu0
      %v1167 = vpop.f32.mrf.mxu0
      %v1168 = vpop.f32.mrf.mxu0
      %1169 = vmatprep.mubr.bf16.mxu0 0
      %1170 = vmatmul.mubr.bf16.gmra.mxu0 %v1049
      %v1171 = vpop.f32.mrf.mxu0
      %v1172 = vadd.f32 0.0, %v1171
      %v1173 = vpop.f32.mrf.mxu0
      %v1174 = vpop.f32.mrf.mxu0
      %v1175 = vadd.f32 0.0, %v1174
      %v1176 = vpop.f32.mrf.mxu0
      %1177 = vmatprep.mubr.bf16.mxu0 0
      %1178 = vmatmul.mubr.bf16.gmra.mxu0 %v1052
      %v1179 = vpop.f32.mrf.mxu0
      %v1180 = vpop.f32.mrf.mxu0
      %v1181 = vpop.f32.mrf.mxu0
      %v1182 = vadd.f32 0.0, %v1181
      %v1183 = vpop.f32.mrf.mxu0
      %1184 = vmatprep.mubr.bf16.mxu0 0
      %1185 = vmatmul.mubr.bf16.gmra.mxu0 %v1055
      %v1186 = vpop.f32.mrf.mxu0
      %v1187 = vadd.f32 0.0, %v1186
      %v1188 = vpop.f32.mrf.mxu0
      %v1189 = vpop.f32.mrf.mxu0
      %v1190 = vpop.f32.mrf.mxu0
      %1191 = vmatprep.mubr.bf16.mxu0 0
      %1192 = vmatmul.mubr.bf16.gmra.mxu0 %v1058
      %v1193 = vpop.f32.mrf.mxu0
      %v1194 = vadd.f32 0.0, %v1193
      %v1195 = vpop.f32.mrf.mxu0
      %v1196 = vpop.f32.mrf.mxu0
      %v1197 = vadd.f32 0.0, %v1196
      %v1198 = vpop.f32.mrf.mxu0
      %1199 = vmatprep.mubr.bf16.mxu0 0
      %1200 = vmatmul.mubr.bf16.gmra.mxu0 %v1061
      %v1201 = vpop.f32.mrf.mxu0
      %v1202 = vpop.f32.mrf.mxu0
      %v1203 = vpop.f32.mrf.mxu0
      %v1204 = vadd.f32 0.0, %v1203
      %v1205 = vpop.f32.mrf.mxu0
      %1206 = vmatprep.mubr.bf16.mxu0 0
      %1207 = vmatmul.mubr.bf16.gmra.mxu0 %v1064
      %v1208 = vpop.f32.mrf.mxu0
      %v1209 = vadd.f32 0.0, %v1208
      %v1210 = vpop.f32.mrf.mxu0
      %v1211 = vpop.f32.mrf.mxu0
      %v1212 = vpop.f32.mrf.mxu0
      %1213 = vmatprep.mubr.bf16.mxu0 0
      %1214 = vmatmul.mubr.bf16.gmra.mxu0 %v1067
      %v1215 = vpop.f32.mrf.mxu0
      %v1216 = vadd.f32 0.0, %v1215
      %v1217 = vpop.f32.mrf.mxu0
      %v1218 = vpop.f32.mrf.mxu0
      %v1219 = vadd.f32 0.0, %v1218
      %v1220 = vpop.f32.mrf.mxu0
      %1221 = vmatprep.mubr.bf16.mxu0 0
      %1222 = vmatmul.mubr.bf16.gmra.mxu0 %v1070
      %v1223 = vpop.f32.mrf.mxu0
      %v1224 = vpop.f32.mrf.mxu0
      %v1225 = vpop.f32.mrf.mxu0
      %v1226 = vadd.f32 0.0, %v1225
      %v1227 = vpop.f32.mrf.mxu0
      %1228 = vmatprep.mubr.bf16.mxu0 0
      %1229 = vmatmul.mubr.bf16.gmra.mxu0 %v1073
      %v1230 = vpop.f32.mrf.mxu0
      %v1231 = vadd.f32 0.0, %v1230
      %v1232 = vpop.f32.mrf.mxu0
      %v1233 = vpop.f32.mrf.mxu0
      %v1234 = vpop.f32.mrf.mxu0
      %1235 = vmatprep.mubr.bf16.mxu0 0
      %1236 = vmatmul.mubr.bf16.gmra.mxu0 %v1076
      %v1237 = vpop.f32.mrf.mxu0
      %v1238 = vadd.f32 0.0, %v1237
      %v1239 = vpop.f32.mrf.mxu0
      %v1240 = vpop.f32.mrf.mxu0
      %v1241 = vadd.f32 0.0, %v1240
      %v1242 = vpop.f32.mrf.mxu0
      %1243 = vmatprep.mubr.bf16.mxu0 0
      %1244 = vmatmul.mubr.bf16.gmra.mxu0 %v1079
      %v1245 = vpop.f32.mrf.mxu0
      %v1246 = vpop.f32.mrf.mxu0
      %v1247 = vpop.f32.mrf.mxu0
      %v1248 = vadd.f32 0.0, %v1247
      %v1249 = vpop.f32.mrf.mxu0
      %1250 = vmatprep.mubr.bf16.mxu0 0
      %1251 = vmatmul.mubr.bf16.gmra.mxu0 %v1082
      %v1252 = vpop.f32.mrf.mxu0
      %v1253 = vadd.f32 0.0, %v1252
      %v1254 = vpop.f32.mrf.mxu0
      %v1255 = vpop.f32.mrf.mxu0
      %v1256 = vpop.f32.mrf.mxu0
      %1257 = vmatprep.mubr.bf16.mxu0 0
      %1258 = vmatmul.mubr.bf16.gmra.mxu0 %v1085
      %v1259 = vpop.f32.mrf.mxu0
      %v1260 = vadd.f32 0.0, %v1259
      %v1261 = vpop.f32.mrf.mxu0
      %v1262 = vpop.f32.mrf.mxu0
      %v1263 = vadd.f32 0.0, %v1262
      %v1264 = vpop.f32.mrf.mxu0
      %1265 = vmatprep.mubr.bf16.mxu0 0
      %1266 = vmatmul.mubr.bf16.gmra.mxu0 %v1088
      %v1267 = vpop.f32.mrf.mxu0
      %v1268 = vpop.f32.mrf.mxu0
      %v1269 = vpop.f32.mrf.mxu0
      %v1270 = vadd.f32 0.0, %v1269
      %v1271 = vpop.f32.mrf.mxu0
      %1272 = vmatprep.mubr.bf16.mxu0 0
      %1273 = vmatmul.mubr.bf16.gmra.mxu0 %v1091
      %v1274 = vpop.f32.mrf.mxu0
      %v1275 = vadd.f32 0.0, %v1274
      %v1276 = vpop.f32.mrf.mxu0
      %v1277 = vpop.f32.mrf.mxu0
      %v1278 = vpop.f32.mrf.mxu0
      %1279 = vmatprep.mubr.bf16.mxu0 0
      %1280 = vmatmul.mubr.bf16.gmra.mxu0 %v1094
      %v1281 = vpop.f32.mrf.mxu0
      %v1282 = vadd.f32 0.0, %v1281
      %v1283 = vpop.f32.mrf.mxu0
      %v1284 = vpop.f32.mrf.mxu0
      %v1285 = vadd.f32 0.0, %v1284
      %v1286 = vpop.f32.mrf.mxu0
      %1287 = vmatprep.mubr.bf16.mxu0 0
      %1288 = vmatmul.mubr.bf16.gmra.mxu0 %v1097
      %v1289 = vpop.f32.mrf.mxu0
      %v1290 = vpop.f32.mrf.mxu0
      %v1291 = vpop.f32.mrf.mxu0
      %v1292 = vadd.f32 0.0, %v1291
      %v1293 = vpop.f32.mrf.mxu0
      %1294 = vmatprep.mubr.bf16.mxu0 0
      %1295 = vmatmul.mubr.bf16.gmra.mxu0 %v1100
      %v1296 = vpop.f32.mrf.mxu0
      %v1297 = vadd.f32 0.0, %v1296
      %v1298 = vpop.f32.mrf.mxu0
      %v1299 = vpop.f32.mrf.mxu0
      %v1300 = vpop.f32.mrf.mxu0
      %1301 = vmatprep.mubr.bf16.mxu0 0
      %1302 = vmatmul.mubr.bf16.gmra.mxu0 %v1103
      %v1303 = vpop.f32.mrf.mxu0
      %v1304 = vadd.f32 0.0, %v1303
      %v1305 = vpop.f32.mrf.mxu0
      %v1306 = vpop.f32.mrf.mxu0
      %v1307 = vadd.f32 0.0, %v1306
      %v1308 = vpop.f32.mrf.mxu0
      %1309 = vmatprep.mubr.bf16.mxu0 0
      %1310 = vmatmul.mubr.bf16.gmra.mxu0 %v1106
      %v1311 = vpop.f32.mrf.mxu0
      %v1312 = vpop.f32.mrf.mxu0
      %v1313 = vpop.f32.mrf.mxu0
      %v1314 = vadd.f32 0.0, %v1313
      %v1315 = vpop.f32.mrf.mxu0
      %1316 = vmatprep.mubr.bf16.mxu0 0
      %1317 = vmatmul.mubr.bf16.gmra.mxu0 %v1109
      %v1318 = vpop.f32.mrf.mxu0
      %v1319 = vadd.f32 0.0, %v1318
      %v1320 = vpop.f32.mrf.mxu0
      %v1321 = vpop.f32.mrf.mxu0
      %v1322 = vpop.f32.mrf.mxu0
      %1323 = vdwg.mxu0
      %v1325 = vunpack.c.l.b16 %v866
      %v1326 = vpack.c.b16 %v966, %v1325
      %v1327 = vpack.c.b16 %v968, %v967
      %v1328 = vpack.c.b16 %v970, %v969
      %v1329 = vpack.c.b16 %v972, %v971
      %v1330 = vpack.c.b16 %v974, %v973
      %v1331 = vpack.c.b16 %v976, %v975
      %v1332 = vpack.c.b16 %v978, %v977
      %v1333 = vpack.c.b16 %v980, %v979
      %v1334 = vpack.c.b16 %v982, %v981
      %v1335 = vpack.c.b16 %v984, %v983
      %v1336 = vpack.c.b16 %v986, %v985
      %v1337 = vpack.c.b16 %v988, %v987
      %v1338 = vpack.c.b16 %v990, %v989
      %v1339 = vpack.c.b16 %v992, %v991
      %v1340 = vpack.c.b16 %v994, %v993
      %v1341 = vpack.c.b16 %v996, %v995
      %v1342 = vpack.c.b16 %v998, %v997
      %v1343 = vpack.c.b16 %v1000, %v999
      %v1344 = vpack.c.b16 %v1002, %v1001
      %v1345 = vpack.c.b16 %v1004, %v1003
      %v1346 = vpack.c.b16 %v1006, %v1005
      %v1347 = vpack.c.b16 %v1008, %v1007
      %v1348 = vpack.c.b16 %v1010, %v1009
      %v1349 = vpack.c.b16 %v1012, %v1011
      %v1350 = vpack.c.b16 %v1013, %v1013
      %vm1351 = vsmask.f32 4352
      %v1353 = vshrl.u32 %v1326, 16
      %v1355 = vrot.slane %v1353, 3
      %v1356 = vshll.u32 %v1326, 16
      %v1358 = vrot.slane %v1356, 4
      %v1359 = vor.u32 %v1355, %v1358
      %v1361 = vshrl.u32 %v1327, 16
      %v1363 = vrot.slane %v1361, 3
      %v1364 = vshll.u32 %v1327, 16
      %v1366 = vrot.slane %v1364, 4
      %v1367 = vor.u32 %v1363, %v1366
      %v1368 = vsel %vm1351, %v1359, %v1367
      %v1370 = vshrl.u32 %v1328, 16
      %v1372 = vrot.slane %v1370, 3
      %v1373 = vshll.u32 %v1328, 16
      %v1375 = vrot.slane %v1373, 4
      %v1376 = vor.u32 %v1372, %v1375
      %v1377 = vsel %vm1351, %v1367, %v1376
      %v1379 = vshrl.u32 %v1329, 16
      %v1381 = vrot.slane %v1379, 3
      %v1382 = vshll.u32 %v1329, 16
      %v1384 = vrot.slane %v1382, 4
      %v1385 = vor.u32 %v1381, %v1384
      %v1386 = vsel %vm1351, %v1376, %v1385
      %v1388 = vshrl.u32 %v1330, 16
      %v1390 = vrot.slane %v1388, 3
      %v1391 = vshll.u32 %v1330, 16
      %v1393 = vrot.slane %v1391, 4
      %v1394 = vor.u32 %v1390, %v1393
      %v1395 = vsel %vm1351, %v1385, %v1394
      %v1397 = vshrl.u32 %v1331, 16
      %v1399 = vrot.slane %v1397, 3
      %v1400 = vshll.u32 %v1331, 16
      %v1402 = vrot.slane %v1400, 4
      %v1403 = vor.u32 %v1399, %v1402
      %v1404 = vsel %vm1351, %v1394, %v1403
      %v1406 = vshrl.u32 %v1332, 16
      %v1408 = vrot.slane %v1406, 3
      %v1409 = vshll.u32 %v1332, 16
      %v1411 = vrot.slane %v1409, 4
      %v1412 = vor.u32 %v1408, %v1411
      %v1413 = vsel %vm1351, %v1403, %v1412
      %v1415 = vshrl.u32 %v1333, 16
      %v1417 = vrot.slane %v1415, 3
      %v1418 = vshll.u32 %v1333, 16
      %v1420 = vrot.slane %v1418, 4
      %v1421 = vor.u32 %v1417, %v1420
      %v1422 = vsel %vm1351, %v1412, %v1421
      %v1424 = vshrl.u32 %v1334, 16
      %v1426 = vrot.slane %v1424, 3
      %v1427 = vshll.u32 %v1334, 16
      %v1429 = vrot.slane %v1427, 4
      %v1430 = vor.u32 %v1426, %v1429
      %v1431 = vsel %vm1351, %v1421, %v1430
      %v1433 = vshrl.u32 %v1335, 16
      %v1435 = vrot.slane %v1433, 3
      %v1436 = vshll.u32 %v1335, 16
      %v1438 = vrot.slane %v1436, 4
      %v1439 = vor.u32 %v1435, %v1438
      %v1440 = vsel %vm1351, %v1430, %v1439
      %v1442 = vshrl.u32 %v1336, 16
      %v1444 = vrot.slane %v1442, 3
      %v1445 = vshll.u32 %v1336, 16
      %v1447 = vrot.slane %v1445, 4
      %v1448 = vor.u32 %v1444, %v1447
      %v1449 = vsel %vm1351, %v1439, %v1448
      %v1451 = vshrl.u32 %v1337, 16
      %v1453 = vrot.slane %v1451, 3
      %v1454 = vshll.u32 %v1337, 16
      %v1456 = vrot.slane %v1454, 4
      %v1457 = vor.u32 %v1453, %v1456
      %v1458 = vsel %vm1351, %v1448, %v1457
      %v1460 = vshrl.u32 %v1338, 16
      %v1462 = vrot.slane %v1460, 3
      %v1463 = vshll.u32 %v1338, 16
      %v1465 = vrot.slane %v1463, 4
      %v1466 = vor.u32 %v1462, %v1465
      %v1467 = vsel %vm1351, %v1457, %v1466
      %v1469 = vshrl.u32 %v1339, 16
      %v1471 = vrot.slane %v1469, 3
      %v1472 = vshll.u32 %v1339, 16
      %v1474 = vrot.slane %v1472, 4
      %v1475 = vor.u32 %v1471, %v1474
      %v1476 = vsel %vm1351, %v1466, %v1475
      %v1478 = vshrl.u32 %v1340, 16
      %v1480 = vrot.slane %v1478, 3
      %v1481 = vshll.u32 %v1340, 16
      %v1483 = vrot.slane %v1481, 4
      %v1484 = vor.u32 %v1480, %v1483
      %v1485 = vsel %vm1351, %v1475, %v1484
      %v1487 = vshrl.u32 %v1341, 16
      %v1489 = vrot.slane %v1487, 3
      %v1490 = vshll.u32 %v1341, 16
      %v1492 = vrot.slane %v1490, 4
      %v1493 = vor.u32 %v1489, %v1492
      %v1494 = vsel %vm1351, %v1484, %v1493
      %v1496 = vshrl.u32 %v1342, 16
      %v1498 = vrot.slane %v1496, 3
      %v1499 = vshll.u32 %v1342, 16
      %v1501 = vrot.slane %v1499, 4
      %v1502 = vor.u32 %v1498, %v1501
      %v1503 = vsel %vm1351, %v1493, %v1502
      %v1505 = vshrl.u32 %v1343, 16
      %v1507 = vrot.slane %v1505, 3
      %v1508 = vshll.u32 %v1343, 16
      %v1510 = vrot.slane %v1508, 4
      %v1511 = vor.u32 %v1507, %v1510
      %v1512 = vsel %vm1351, %v1502, %v1511
      %v1514 = vshrl.u32 %v1344, 16
      %v1516 = vrot.slane %v1514, 3
      %v1517 = vshll.u32 %v1344, 16
      %v1519 = vrot.slane %v1517, 4
      %v1520 = vor.u32 %v1516, %v1519
      %v1521 = vsel %vm1351, %v1511, %v1520
      %v1523 = vshrl.u32 %v1345, 16
      %v1525 = vrot.slane %v1523, 3
      %v1526 = vshll.u32 %v1345, 16
      %v1528 = vrot.slane %v1526, 4
      %v1529 = vor.u32 %v1525, %v1528
      %v1530 = vsel %vm1351, %v1520, %v1529
      %v1532 = vshrl.u32 %v1346, 16
      %v1534 = vrot.slane %v1532, 3
      %v1535 = vshll.u32 %v1346, 16
      %v1537 = vrot.slane %v1535, 4
      %v1538 = vor.u32 %v1534, %v1537
      %v1539 = vsel %vm1351, %v1529, %v1538
      %v1541 = vshrl.u32 %v1347, 16
      %v1543 = vrot.slane %v1541, 3
      %v1544 = vshll.u32 %v1347, 16
      %v1546 = vrot.slane %v1544, 4
      %v1547 = vor.u32 %v1543, %v1546
      %v1548 = vsel %vm1351, %v1538, %v1547
      %v1550 = vshrl.u32 %v1348, 16
      %v1552 = vrot.slane %v1550, 3
      %v1553 = vshll.u32 %v1348, 16
      %v1555 = vrot.slane %v1553, 4
      %v1556 = vor.u32 %v1552, %v1555
      %v1557 = vsel %vm1351, %v1547, %v1556
      %v1559 = vshrl.u32 %v1349, 16
      %v1561 = vrot.slane %v1559, 3
      %v1562 = vshll.u32 %v1349, 16
      %v1564 = vrot.slane %v1562, 4
      %v1565 = vor.u32 %v1561, %v1564
      %v1566 = vsel %vm1351, %v1556, %v1565
      %v1568 = vshrl.u32 %v1350, 16
      %v1570 = vrot.slane %v1568, 3
      %v1571 = vshll.u32 %v1350, 16
      %v1573 = vrot.slane %v1571, 4
      %v1574 = vor.u32 %v1570, %v1573
      %v1575 = vsel %vm1351, %v1565, %v1574
      %v1577 = vsel %vm1038, %v1368, 0
      %v1580 = vsel %vm1038, %v1377, 0
      %v1583 = vsel %vm1038, %v1386, 0
      %v1586 = vsel %vm1038, %v1395, 0
      %v1589 = vsel %vm1038, %v1404, 0
      %v1592 = vsel %vm1038, %v1413, 0
      %v1595 = vsel %vm1038, %v1422, 0
      %v1598 = vsel %vm1038, %v1431, 0
      %v1601 = vsel %vm1038, %v1440, 0
      %v1604 = vsel %vm1038, %v1449, 0
      %v1607 = vsel %vm1038, %v1458, 0
      %v1610 = vsel %vm1038, %v1467, 0
      %v1613 = vsel %vm1038, %v1476, 0
      %v1616 = vsel %vm1038, %v1485, 0
      %v1619 = vsel %vm1038, %v1494, 0
      %v1622 = vsel %vm1038, %v1503, 0
      %v1625 = vsel %vm1038, %v1512, 0
      %v1628 = vsel %vm1038, %v1521, 0
      %v1631 = vsel %vm1038, %v1530, 0
      %v1634 = vsel %vm1038, %v1539, 0
      %v1637 = vsel %vm1038, %v1548, 0
      %v1640 = vsel %vm1038, %v1557, 0
      %v1643 = vsel %vm1038, %v1566, 0
      %v1646 = vsel %vm1038, %v1575, 0
      %v1649 = vsel %vm1111, %v915, 0
      %1651 = vmatprep.subr.bf16.mxu0 0
      %1652 = vmatpush1.bf16.msra.mxu0 0
      %1653 = vmatprep.subr.bf16.mxu0 0
      %1654 = vmatpush1.bf16.msra.mxu0 0
      %1655 = vmatprep.subr.bf16.mxu0 0
      %1656 = vmatpush1.bf16.msra.mxu0 0
      %1657 = vmatprep.subr.bf16.mxu0 0
      %1658 = vmatpush1.bf16.msra.mxu0 0
      %1659 = vmatprep.subr.bf16.mxu0 0
      %1660 = vmatpush1.bf16.msra.mxu0 0
      %1661 = vmatprep.subr.bf16.mxu0 0
      %1662 = vmatpush1.bf16.msra.mxu0 0
      %1663 = vmatprep.subr.bf16.mxu0 0
      %1664 = vmatpush1.bf16.msra.mxu0 0
      %1665 = vmatprep.subr.bf16.mxu0 0
      %1666 = vmatpush1.bf16.msra.mxu0 %v1649
      %1667 = vmatprep.subr.bf16.mxu0 0
      %1668 = vmatpush2.bf16.msra.mxu0 0
      %1669 = vmatprep.subr.bf16.mxu0 0
      %1670 = vmatpush2.bf16.msra.mxu0 0
      %1671 = vmatprep.subr.bf16.mxu0 0
      %1672 = vmatpush2.bf16.msra.mxu0 0
      %1673 = vmatprep.subr.bf16.mxu0 0
      %1674 = vmatpush2.bf16.msra.mxu0 0
      %1675 = vmatprep.subr.bf16.mxu0 0
      %1676 = vmatpush2.bf16.msra.mxu0 0
      %1677 = vmatprep.subr.bf16.mxu0 0
      %1678 = vmatpush2.bf16.msra.mxu0 0
      %1679 = vmatprep.subr.bf16.mxu0 0
      %1680 = vmatpush2.bf16.msra.mxu0 0
      %1681 = vmatprep.subr.bf16.mxu0 0
      %1682 = vmatpush2.bf16.msra.mxu0 0
      %1683 = vmatprep.mubr.bf16.mxu0 0
      %1684 = vmatmul.mubr.bf16.gmra.mxu0 %v1577
      %v1685 = vpop.f32.mrf.mxu0
      %v1686 = vadd.f32 %v1150, %v1685
      %v1687 = vpop.f32.mrf.mxu0
      %v1688 = vpop.f32.mrf.mxu0
      %v1689 = vadd.f32 %v1153, %v1688
      %v1690 = vpop.f32.mrf.mxu0
      %1691 = vmatprep.mubr.bf16.mxu0 0
      %1692 = vmatmul.mubr.bf16.gmra.mxu0 %v1580
      %v1693 = vpop.f32.mrf.mxu0
      %v1694 = vpop.f32.mrf.mxu0
      %v1695 = vpop.f32.mrf.mxu0
      %v1696 = vadd.f32 %v1160, %v1695
      %v1697 = vpop.f32.mrf.mxu0
      %1698 = vmatprep.mubr.bf16.mxu0 0
      %1699 = vmatmul.mubr.bf16.gmra.mxu0 %v1583
      %v1700 = vpop.f32.mrf.mxu0
      %v1701 = vadd.f32 %v1165, %v1700
      %v1702 = vpop.f32.mrf.mxu0
      %v1703 = vpop.f32.mrf.mxu0
      %v1704 = vpop.f32.mrf.mxu0
      %1705 = vmatprep.mubr.bf16.mxu0 0
      %1706 = vmatmul.mubr.bf16.gmra.mxu0 %v1586
      %v1707 = vpop.f32.mrf.mxu0
      %v1708 = vadd.f32 %v1172, %v1707
      %v1709 = vpop.f32.mrf.mxu0
      %v1710 = vpop.f32.mrf.mxu0
      %v1711 = vadd.f32 %v1175, %v1710
      %v1712 = vpop.f32.mrf.mxu0
      %1713 = vmatprep.mubr.bf16.mxu0 0
      %1714 = vmatmul.mubr.bf16.gmra.mxu0 %v1589
      %v1715 = vpop.f32.mrf.mxu0
      %v1716 = vpop.f32.mrf.mxu0
      %v1717 = vpop.f32.mrf.mxu0
      %v1718 = vadd.f32 %v1182, %v1717
      %v1719 = vpop.f32.mrf.mxu0
      %1720 = vmatprep.mubr.bf16.mxu0 0
      %1721 = vmatmul.mubr.bf16.gmra.mxu0 %v1592
      %v1722 = vpop.f32.mrf.mxu0
      %v1723 = vadd.f32 %v1187, %v1722
      %v1724 = vpop.f32.mrf.mxu0
      %v1725 = vpop.f32.mrf.mxu0
      %v1726 = vpop.f32.mrf.mxu0
      %1727 = vmatprep.mubr.bf16.mxu0 0
      %1728 = vmatmul.mubr.bf16.gmra.mxu0 %v1595
      %v1729 = vpop.f32.mrf.mxu0
      %v1730 = vadd.f32 %v1194, %v1729
      %v1731 = vpop.f32.mrf.mxu0
      %v1732 = vpop.f32.mrf.mxu0
      %v1733 = vadd.f32 %v1197, %v1732
      %v1734 = vpop.f32.mrf.mxu0
      %1735 = vmatprep.mubr.bf16.mxu0 0
      %1736 = vmatmul.mubr.bf16.gmra.mxu0 %v1598
      %v1737 = vpop.f32.mrf.mxu0
      %v1738 = vpop.f32.mrf.mxu0
      %v1739 = vpop.f32.mrf.mxu0
      %v1740 = vadd.f32 %v1204, %v1739
      %v1741 = vpop.f32.mrf.mxu0
      %1742 = vmatprep.mubr.bf16.mxu0 0
      %1743 = vmatmul.mubr.bf16.gmra.mxu0 %v1601
      %v1744 = vpop.f32.mrf.mxu0
      %v1745 = vadd.f32 %v1209, %v1744
      %v1746 = vpop.f32.mrf.mxu0
      %v1747 = vpop.f32.mrf.mxu0
      %v1748 = vpop.f32.mrf.mxu0
      %1749 = vmatprep.mubr.bf16.mxu0 0
      %1750 = vmatmul.mubr.bf16.gmra.mxu0 %v1604
      %v1751 = vpop.f32.mrf.mxu0
      %v1752 = vadd.f32 %v1216, %v1751
      %v1753 = vpop.f32.mrf.mxu0
      %v1754 = vpop.f32.mrf.mxu0
      %v1755 = vadd.f32 %v1219, %v1754
      %v1756 = vpop.f32.mrf.mxu0
      %1757 = vmatprep.mubr.bf16.mxu0 0
      %1758 = vmatmul.mubr.bf16.gmra.mxu0 %v1607
      %v1759 = vpop.f32.mrf.mxu0
      %v1760 = vpop.f32.mrf.mxu0
      %v1761 = vpop.f32.mrf.mxu0
      %v1762 = vadd.f32 %v1226, %v1761
      %v1763 = vpop.f32.mrf.mxu0
      %1764 = vmatprep.mubr.bf16.mxu0 0
      %1765 = vmatmul.mubr.bf16.gmra.mxu0 %v1610
      %v1766 = vpop.f32.mrf.mxu0
      %v1767 = vadd.f32 %v1231, %v1766
      %v1768 = vpop.f32.mrf.mxu0
      %v1769 = vpop.f32.mrf.mxu0
      %v1770 = vpop.f32.mrf.mxu0
      %1771 = vmatprep.mubr.bf16.mxu0 0
      %1772 = vmatmul.mubr.bf16.gmra.mxu0 %v1613
      %v1773 = vpop.f32.mrf.mxu0
      %v1774 = vadd.f32 %v1238, %v1773
      %v1775 = vpop.f32.mrf.mxu0
      %v1776 = vpop.f32.mrf.mxu0
      %v1777 = vadd.f32 %v1241, %v1776
      %v1778 = vpop.f32.mrf.mxu0
      %1779 = vmatprep.mubr.bf16.mxu0 0
      %1780 = vmatmul.mubr.bf16.gmra.mxu0 %v1616
      %v1781 = vpop.f32.mrf.mxu0
      %v1782 = vpop.f32.mrf.mxu0
      %v1783 = vpop.f32.mrf.mxu0
      %v1784 = vadd.f32 %v1248, %v1783
      %v1785 = vpop.f32.mrf.mxu0
      %1786 = vmatprep.mubr.bf16.mxu0 0
      %1787 = vmatmul.mubr.bf16.gmra.mxu0 %v1619
      %v1788 = vpop.f32.mrf.mxu0
      %v1789 = vadd.f32 %v1253, %v1788
      %v1790 = vpop.f32.mrf.mxu0
      %v1791 = vpop.f32.mrf.mxu0
      %v1792 = vpop.f32.mrf.mxu0
      %1793 = vmatprep.mubr.bf16.mxu0 0
      %1794 = vmatmul.mubr.bf16.gmra.mxu0 %v1622
      %v1795 = vpop.f32.mrf.mxu0
      %v1796 = vadd.f32 %v1260, %v1795
      %v1797 = vpop.f32.mrf.mxu0
      %v1798 = vpop.f32.mrf.mxu0
      %v1799 = vadd.f32 %v1263, %v1798
      %v1800 = vpop.f32.mrf.mxu0
      %1801 = vmatprep.mubr.bf16.mxu0 0
      %1802 = vmatmul.mubr.bf16.gmra.mxu0 %v1625
      %v1803 = vpop.f32.mrf.mxu0
      %v1804 = vpop.f32.mrf.mxu0
      %v1805 = vpop.f32.mrf.mxu0
      %v1806 = vadd.f32 %v1270, %v1805
      %v1807 = vpop.f32.mrf.mxu0
      %1808 = vmatprep.mubr.bf16.mxu0 0
      %1809 = vmatmul.mubr.bf16.gmra.mxu0 %v1628
      %v1810 = vpop.f32.mrf.mxu0
      %v1811 = vadd.f32 %v1275, %v1810
      %v1812 = vpop.f32.mrf.mxu0
      %v1813 = vpop.f32.mrf.mxu0
      %v1814 = vpop.f32.mrf.mxu0
      %1815 = vmatprep.mubr.bf16.mxu0 0
      %1816 = vmatmul.mubr.bf16.gmra.mxu0 %v1631
      %v1817 = vpop.f32.mrf.mxu0
      %v1818 = vadd.f32 %v1282, %v1817
      %v1819 = vpop.f32.mrf.mxu0
      %v1820 = vpop.f32.mrf.mxu0
      %v1821 = vadd.f32 %v1285, %v1820
      %v1822 = vpop.f32.mrf.mxu0
      %1823 = vmatprep.mubr.bf16.mxu0 0
      %1824 = vmatmul.mubr.bf16.gmra.mxu0 %v1634
      %v1825 = vpop.f32.mrf.mxu0
      %v1826 = vpop.f32.mrf.mxu0
      %v1827 = vpop.f32.mrf.mxu0
      %v1828 = vadd.f32 %v1292, %v1827
      %v1829 = vpop.f32.mrf.mxu0
      %1830 = vmatprep.mubr.bf16.mxu0 0
      %1831 = vmatmul.mubr.bf16.gmra.mxu0 %v1637
      %v1832 = vpop.f32.mrf.mxu0
      %v1833 = vadd.f32 %v1297, %v1832
      %v1834 = vpop.f32.mrf.mxu0
      %v1835 = vpop.f32.mrf.mxu0
      %v1836 = vpop.f32.mrf.mxu0
      %1837 = vmatprep.mubr.bf16.mxu0 0
      %1838 = vmatmul.mubr.bf16.gmra.mxu0 %v1640
      %v1839 = vpop.f32.mrf.mxu0
      %v1840 = vadd.f32 %v1304, %v1839
      %v1841 = vpop.f32.mrf.mxu0
      %v1842 = vpop.f32.mrf.mxu0
      %v1843 = vadd.f32 %v1307, %v1842
      %v1844 = vpop.f32.mrf.mxu0
      %1845 = vmatprep.mubr.bf16.mxu0 0
      %1846 = vmatmul.mubr.bf16.gmra.mxu0 %v1643
      %v1847 = vpop.f32.mrf.mxu0
      %v1848 = vpop.f32.mrf.mxu0
      %v1849 = vpop.f32.mrf.mxu0
      %v1850 = vadd.f32 %v1314, %v1849
      %v1851 = vpop.f32.mrf.mxu0
      %1852 = vmatprep.mubr.bf16.mxu0 0
      %1853 = vmatmul.mubr.bf16.gmra.mxu0 %v1646
      %v1854 = vpop.f32.mrf.mxu0
      %v1855 = vadd.f32 %v1319, %v1854
      %v1856 = vpop.f32.mrf.mxu0
      %v1857 = vpop.f32.mrf.mxu0
      %v1858 = vpop.f32.mrf.mxu0
      %1859 = vdwg.mxu0
      %v1860 = vld [vmem:[#allocation2 + $0x4] sm:$0xf]
      %v1861 = vld [vmem:[#allocation2 + $0x8] sm:$0xf]
      %v1862 = vld [vmem:[#allocation2 + $0xc] sm:$0xf]
      %v1863 = vld [vmem:[#allocation2 + $0x10] sm:$0xf]
      %v1864 = vld [vmem:[#allocation2 + $0x14] sm:$0xf]
      %v1865 = vld [vmem:[#allocation2 + $0x18] sm:$0xf]
      %v1866 = vld [vmem:[#allocation2 + $0x1c] sm:$0xf]
      %v1867 = vld [vmem:[#allocation2 + $0x20] sm:$0xf]
      %v1868 = vld [vmem:[#allocation2 + $0x24] sm:$0xf]
      %v1869 = vld [vmem:[#allocation2 + $0x28] sm:$0xf]
      %v1870 = vld [vmem:[#allocation2 + $0x2c] sm:$0xf]
      %v1871 = vld [vmem:[#allocation2 + $0x30] sm:$0xf]
      %v1872 = vld [vmem:[#allocation2 + $0x34] sm:$0xf]
      %v1873 = vld [vmem:[#allocation2 + $0x38] sm:$0xf]
      %v1874 = vld [vmem:[#allocation2 + $0x3c] sm:$0xf]
      %v1875 = vld [vmem:[#allocation2 + $0x40] sm:$0xf]
      %v1876 = vld [vmem:[#allocation2 + $0x44] sm:$0xf]
      %v1877 = vld [vmem:[#allocation2 + $0x48] sm:$0xf]
      %v1878 = vld [vmem:[#allocation2 + $0x4c] sm:$0xf]
      %v1879 = vld [vmem:[#allocation2 + $0x50] sm:$0xf]
      %v1880 = vld [vmem:[#allocation2 + $0x54] sm:$0xf]
      %v1881 = vld [vmem:[#allocation2 + $0x58] sm:$0xf]
      %v1882 = vld [vmem:[#allocation2 + $0x5c] sm:$0xf]
      %v1883 = vld [vmem:[#allocation2 + $0x60] sm:$0xf]
      %v1884 = vld [vmem:[#allocation2 + $0x64] sm:$0xf]
      %v1885 = vld [vmem:[#allocation2 + $0x68] sm:$0xf]
      %v1886 = vld [vmem:[#allocation2 + $0x6c] sm:$0xf]
      %v1887 = vld [vmem:[#allocation2 + $0x70] sm:$0xf]
      %v1888 = vld [vmem:[#allocation2 + $0x74] sm:$0xf]
      %v1889 = vld [vmem:[#allocation2 + $0x78] sm:$0xf]
      %v1890 = vld [vmem:[#allocation2 + $0x7c] sm:$0xf]
      %v1891 = vld [vmem:[#allocation2 + $0x80] sm:$0xf]
      %v1892 = vld [vmem:[#allocation2 + $0x84] sm:$0xf]
      %v1893 = vld [vmem:[#allocation2 + $0x88] sm:$0xf]
      %v1894 = vld [vmem:[#allocation2 + $0x8c] sm:$0xf]
      %v1895 = vld [vmem:[#allocation2 + $0x90] sm:$0xf]
      %v1896 = vld [vmem:[#allocation2 + $0x94] sm:$0xf]
      %v1897 = vld [vmem:[#allocation2 + $0x98] sm:$0xf]
      %v1898 = vld [vmem:[#allocation2 + $0x9c] sm:$0xf]
      %v1899 = vld [vmem:[#allocation2 + $0xa0] sm:$0xf]
      %v1900 = vld [vmem:[#allocation2 + $0xa4] sm:$0xf]
      %v1901 = vld [vmem:[#allocation2 + $0xa8] sm:$0xf]
      %v1902 = vld [vmem:[#allocation2 + $0xac] sm:$0xf]
      %v1903 = vld [vmem:[#allocation2 + $0xb0] sm:$0xf]
      %v1904 = vld [vmem:[#allocation2 + $0xb4] sm:$0xf]
      %v1905 = vld [vmem:[#allocation2 + $0xb8] sm:$0xf]
      %v1906 = vld [vmem:[#allocation2 + $0xbc] sm:$0xf]
      %v1907 = vld [vmem:[#allocation2 + $0xc0] sm:$0xf]
      %v1908 = vld [vmem:[#allocation2 + $0xc4] sm:$0x1]
      %s1909 = scalar_lea.vmem %s3, 4
      %v1910 = vld [vmem:[%s1909] sm:$0x3]
      %v1960 = vunpack.c.l.b16 %v1860
      %v1961 = vunpack.c.l.b16 %v1861
      %v1962 = vunpack.c.l.b16 %v1862
      %v1963 = vunpack.c.l.b16 %v1863
      %v1964 = vunpack.c.l.b16 %v1864
      %v1965 = vunpack.c.l.b16 %v1865
      %v1966 = vunpack.c.l.b16 %v1866
      %v1967 = vunpack.c.l.b16 %v1867
      %v1968 = vunpack.c.l.b16 %v1868
      %v1969 = vunpack.c.l.b16 %v1869
      %v1970 = vunpack.c.l.b16 %v1870
      %v1971 = vunpack.c.l.b16 %v1871
      %v1972 = vunpack.c.l.b16 %v1872
      %v1973 = vunpack.c.l.b16 %v1873
      %v1974 = vunpack.c.l.b16 %v1874
      %v1975 = vunpack.c.l.b16 %v1875
      %v1976 = vunpack.c.l.b16 %v1876
      %v1977 = vunpack.c.l.b16 %v1877
      %v1978 = vunpack.c.l.b16 %v1878
      %v1979 = vunpack.c.l.b16 %v1879
      %v1980 = vunpack.c.l.b16 %v1880
      %v1981 = vunpack.c.l.b16 %v1881
      %v1982 = vunpack.c.l.b16 %v1882
      %v1983 = vunpack.c.l.b16 %v1883
      %v1984 = vunpack.c.l.b16 %v1884
      %v1985 = vunpack.c.l.b16 %v1885
      %v1986 = vunpack.c.l.b16 %v1886
      %v1987 = vunpack.c.l.b16 %v1887
      %v1988 = vunpack.c.l.b16 %v1888
      %v1989 = vunpack.c.l.b16 %v1889
      %v1990 = vunpack.c.l.b16 %v1890
      %v1991 = vunpack.c.l.b16 %v1891
      %v1992 = vunpack.c.l.b16 %v1892
      %v1993 = vunpack.c.l.b16 %v1893
      %v1994 = vunpack.c.l.b16 %v1894
      %v1995 = vunpack.c.l.b16 %v1895
      %v1996 = vunpack.c.l.b16 %v1896
      %v1997 = vunpack.c.l.b16 %v1897
      %v1998 = vunpack.c.l.b16 %v1898
      %v1999 = vunpack.c.l.b16 %v1899
      %v2000 = vunpack.c.l.b16 %v1900
      %v2001 = vunpack.c.l.b16 %v1901
      %v2002 = vunpack.c.l.b16 %v1902
      %v2003 = vunpack.c.l.b16 %v1903
      %v2004 = vunpack.c.l.b16 %v1904
      %v2005 = vunpack.c.l.b16 %v1905
      %v2006 = vunpack.c.l.b16 %v1906
      %v2007 = vunpack.c.l.b16 %v1907
      %v2008 = vunpack.c.l.b16 %v1908
      %v2009 = vpack.c.b16 %v1961, %v1960
      %v2010 = vpack.c.b16 %v1963, %v1962
      %v2011 = vpack.c.b16 %v1965, %v1964
      %v2012 = vpack.c.b16 %v1967, %v1966
      %v2013 = vpack.c.b16 %v1969, %v1968
      %v2014 = vpack.c.b16 %v1971, %v1970
      %v2015 = vpack.c.b16 %v1973, %v1972
      %v2016 = vpack.c.b16 %v1975, %v1974
      %v2017 = vpack.c.b16 %v1977, %v1976
      %v2018 = vpack.c.b16 %v1979, %v1978
      %v2019 = vpack.c.b16 %v1981, %v1980
      %v2020 = vpack.c.b16 %v1983, %v1982
      %v2021 = vpack.c.b16 %v1985, %v1984
      %v2022 = vpack.c.b16 %v1987, %v1986
      %v2023 = vpack.c.b16 %v1989, %v1988
      %v2024 = vpack.c.b16 %v1991, %v1990
      %v2025 = vpack.c.b16 %v1993, %v1992
      %v2026 = vpack.c.b16 %v1995, %v1994
      %v2027 = vpack.c.b16 %v1997, %v1996
      %v2028 = vpack.c.b16 %v1999, %v1998
      %v2029 = vpack.c.b16 %v2001, %v2000
      %v2030 = vpack.c.b16 %v2003, %v2002
      %v2031 = vpack.c.b16 %v2005, %v2004
      %v2032 = vpack.c.b16 %v2007, %v2006
      %v2033 = vpack.c.b16 %v2008, %v2008
      %vm2034 = vsmask.f32 7424
      %v2036 = vshrl.u32 %v2009, 16
      %v2038 = vshll.u32 %v2009, 16
      %v2040 = vrot.slane %v2038, 1
      %v2041 = vor.u32 %v2036, %v2040
      %v2043 = vshll.u32 %v2010, 16
      %v2045 = vrot.slane %v2043, 1
      %v2046 = vsel %vm2034, %v2041, %v2045
      %v2047 = vshrl.u32 %v2010, 16
      %v2049 = vor.u32 %v2047, %v2045
      %v2051 = vshll.u32 %v2011, 16
      %v2053 = vrot.slane %v2051, 1
      %v2054 = vsel %vm2034, %v2049, %v2053
      %v2055 = vshrl.u32 %v2011, 16
      %v2057 = vor.u32 %v2055, %v2053
      %v2059 = vshll.u32 %v2012, 16
      %v2061 = vrot.slane %v2059, 1
      %v2062 = vsel %vm2034, %v2057, %v2061
      %v2063 = vshrl.u32 %v2012, 16
      %v2065 = vor.u32 %v2063, %v2061
      %v2067 = vshll.u32 %v2013, 16
      %v2069 = vrot.slane %v2067, 1
      %v2070 = vsel %vm2034, %v2065, %v2069
      %v2071 = vshrl.u32 %v2013, 16
      %v2073 = vor.u32 %v2071, %v2069
      %v2075 = vshll.u32 %v2014, 16
      %v2077 = vrot.slane %v2075, 1
      %v2078 = vsel %vm2034, %v2073, %v2077
      %v2079 = vshrl.u32 %v2014, 16
      %v2081 = vor.u32 %v2079, %v2077
      %v2083 = vshll.u32 %v2015, 16
      %v2085 = vrot.slane %v2083, 1
      %v2086 = vsel %vm2034, %v2081, %v2085
      %v2087 = vshrl.u32 %v2015, 16
      %v2089 = vor.u32 %v2087, %v2085
      %v2091 = vshll.u32 %v2016, 16
      %v2093 = vrot.slane %v2091, 1
      %v2094 = vsel %vm2034, %v2089, %v2093
      %v2095 = vshrl.u32 %v2016, 16
      %v2097 = vor.u32 %v2095, %v2093
      %v2099 = vshll.u32 %v2017, 16
      %v2101 = vrot.slane %v2099, 1
      %v2102 = vsel %vm2034, %v2097, %v2101
      %v2103 = vshrl.u32 %v2017, 16
      %v2105 = vor.u32 %v2103, %v2101
      %v2107 = vshll.u32 %v2018, 16
      %v2109 = vrot.slane %v2107, 1
      %v2110 = vsel %vm2034, %v2105, %v2109
      %v2111 = vshrl.u32 %v2018, 16
      %v2113 = vor.u32 %v2111, %v2109
      %v2115 = vshll.u32 %v2019, 16
      %v2117 = vrot.slane %v2115, 1
      %v2118 = vsel %vm2034, %v2113, %v2117
      %v2119 = vshrl.u32 %v2019, 16
      %v2121 = vor.u32 %v2119, %v2117
      %v2123 = vshll.u32 %v2020, 16
      %v2125 = vrot.slane %v2123, 1
      %v2126 = vsel %vm2034, %v2121, %v2125
      %v2127 = vshrl.u32 %v2020, 16
      %v2129 = vor.u32 %v2127, %v2125
      %v2131 = vshll.u32 %v2021, 16
      %v2133 = vrot.slane %v2131, 1
      %v2134 = vsel %vm2034, %v2129, %v2133
      %v2135 = vshrl.u32 %v2021, 16
      %v2137 = vor.u32 %v2135, %v2133
      %v2139 = vshll.u32 %v2022, 16
      %v2141 = vrot.slane %v2139, 1
      %v2142 = vsel %vm2034, %v2137, %v2141
      %v2143 = vshrl.u32 %v2022, 16
      %v2145 = vor.u32 %v2143, %v2141
      %v2147 = vshll.u32 %v2023, 16
      %v2149 = vrot.slane %v2147, 1
      %v2150 = vsel %vm2034, %v2145, %v2149
      %v2151 = vshrl.u32 %v2023, 16
      %v2153 = vor.u32 %v2151, %v2149
      %v2155 = vshll.u32 %v2024, 16
      %v2157 = vrot.slane %v2155, 1
      %v2158 = vsel %vm2034, %v2153, %v2157
      %v2159 = vshrl.u32 %v2024, 16
      %v2161 = vor.u32 %v2159, %v2157
      %v2163 = vshll.u32 %v2025, 16
      %v2165 = vrot.slane %v2163, 1
      %v2166 = vsel %vm2034, %v2161, %v2165
      %v2167 = vshrl.u32 %v2025, 16
      %v2169 = vor.u32 %v2167, %v2165
      %v2171 = vshll.u32 %v2026, 16
      %v2173 = vrot.slane %v2171, 1
      %v2174 = vsel %vm2034, %v2169, %v2173
      %v2175 = vshrl.u32 %v2026, 16
      %v2177 = vor.u32 %v2175, %v2173
      %v2179 = vshll.u32 %v2027, 16
      %v2181 = vrot.slane %v2179, 1
      %v2182 = vsel %vm2034, %v2177, %v2181
      %v2183 = vshrl.u32 %v2027, 16
      %v2185 = vor.u32 %v2183, %v2181
      %v2187 = vshll.u32 %v2028, 16
      %v2189 = vrot.slane %v2187, 1
      %v2190 = vsel %vm2034, %v2185, %v2189
      %v2191 = vshrl.u32 %v2028, 16
      %v2193 = vor.u32 %v2191, %v2189
      %v2195 = vshll.u32 %v2029, 16
      %v2197 = vrot.slane %v2195, 1
      %v2198 = vsel %vm2034, %v2193, %v2197
      %v2199 = vshrl.u32 %v2029, 16
      %v2201 = vor.u32 %v2199, %v2197
      %v2203 = vshll.u32 %v2030, 16
      %v2205 = vrot.slane %v2203, 1
      %v2206 = vsel %vm2034, %v2201, %v2205
      %v2207 = vshrl.u32 %v2030, 16
      %v2209 = vor.u32 %v2207, %v2205
      %v2211 = vshll.u32 %v2031, 16
      %v2213 = vrot.slane %v2211, 1
      %v2214 = vsel %vm2034, %v2209, %v2213
      %v2215 = vshrl.u32 %v2031, 16
      %v2217 = vor.u32 %v2215, %v2213
      %v2219 = vshll.u32 %v2032, 16
      %v2221 = vrot.slane %v2219, 1
      %v2222 = vsel %vm2034, %v2217, %v2221
      %v2223 = vshrl.u32 %v2032, 16
      %v2225 = vor.u32 %v2223, %v2221
      %v2227 = vshll.u32 %v2033, 16
      %v2229 = vrot.slane %v2227, 1
      %v2230 = vsel %vm2034, %v2225, %v2229
      %v2232 = vsel %vm1038, %v2046, 0
      %v2235 = vsel %vm1038, %v2054, 0
      %v2238 = vsel %vm1038, %v2062, 0
      %v2241 = vsel %vm1038, %v2070, 0
      %v2244 = vsel %vm1038, %v2078, 0
      %v2247 = vsel %vm1038, %v2086, 0
      %v2250 = vsel %vm1038, %v2094, 0
      %v2253 = vsel %vm1038, %v2102, 0
      %v2256 = vsel %vm1038, %v2110, 0
      %v2259 = vsel %vm1038, %v2118, 0
      %v2262 = vsel %vm1038, %v2126, 0
      %v2265 = vsel %vm1038, %v2134, 0
      %v2268 = vsel %vm1038, %v2142, 0
      %v2271 = vsel %vm1038, %v2150, 0
      %v2274 = vsel %vm1038, %v2158, 0
      %v2277 = vsel %vm1038, %v2166, 0
      %v2280 = vsel %vm1038, %v2174, 0
      %v2283 = vsel %vm1038, %v2182, 0
      %v2286 = vsel %vm1038, %v2190, 0
      %v2289 = vsel %vm1038, %v2198, 0
      %v2292 = vsel %vm1038, %v2206, 0
      %v2295 = vsel %vm1038, %v2214, 0
      %v2298 = vsel %vm1038, %v2222, 0
      %v2301 = vsel %vm1038, %v2230, 0
      %v2304 = vsel %vm1111, %v1910, 0
      %2306 = vmatprep.subr.bf16.mxu0 0
      %2307 = vmatpush1.bf16.msra.mxu0 0
      %2308 = vmatprep.subr.bf16.mxu0 0
      %2309 = vmatpush1.bf16.msra.mxu0 0
      %2310 = vmatprep.subr.bf16.mxu0 0
      %2311 = vmatpush1.bf16.msra.mxu0 0
      %2312 = vmatprep.subr.bf16.mxu0 0
      %2313 = vmatpush1.bf16.msra.mxu0 0
      %2314 = vmatprep.subr.bf16.mxu0 0
      %2315 = vmatpush1.bf16.msra.mxu0 0
      %2316 = vmatprep.subr.bf16.mxu0 0
      %2317 = vmatpush1.bf16.msra.mxu0 0
      %2318 = vmatprep.subr.bf16.mxu0 0
      %2319 = vmatpush1.bf16.msra.mxu0 0
      %2320 = vmatprep.subr.bf16.mxu0 0
      %2321 = vmatpush1.bf16.msra.mxu0 %v2304
      %2322 = vmatprep.subr.bf16.mxu0 0
      %2323 = vmatpush2.bf16.msra.mxu0 0
      %2324 = vmatprep.subr.bf16.mxu0 0
      %2325 = vmatpush2.bf16.msra.mxu0 0
      %2326 = vmatprep.subr.bf16.mxu0 0
      %2327 = vmatpush2.bf16.msra.mxu0 0
      %2328 = vmatprep.subr.bf16.mxu0 0
      %2329 = vmatpush2.bf16.msra.mxu0 0
      %2330 = vmatprep.subr.bf16.mxu0 0
      %2331 = vmatpush2.bf16.msra.mxu0 0
      %2332 = vmatprep.subr.bf16.mxu0 0
      %2333 = vmatpush2.bf16.msra.mxu0 0
      %2334 = vmatprep.subr.bf16.mxu0 0
      %2335 = vmatpush2.bf16.msra.mxu0 0
      %2336 = vmatprep.subr.bf16.mxu0 0
      %2337 = vmatpush2.bf16.msra.mxu0 0
      %2338 = vmatprep.mubr.bf16.mxu0 0
      %2339 = vmatmul.mubr.bf16.gmra.mxu0 %v2232
      %v2340 = vpop.f32.mrf.mxu0
      %v2341 = vadd.f32 0.0, %v2340
      %v2342 = vpop.f32.mrf.mxu0
      %v2343 = vpop.f32.mrf.mxu0
      %v2344 = vadd.f32 0.0, %v2343
      %v2345 = vpop.f32.mrf.mxu0
      %2346 = vmatprep.mubr.bf16.mxu0 0
      %2347 = vmatmul.mubr.bf16.gmra.mxu0 %v2235
      %v2348 = vpop.f32.mrf.mxu0
      %v2349 = vpop.f32.mrf.mxu0
      %v2350 = vpop.f32.mrf.mxu0
      %v2351 = vadd.f32 0.0, %v2350
      %v2352 = vpop.f32.mrf.mxu0
      %2353 = vmatprep.mubr.bf16.mxu0 0
      %2354 = vmatmul.mubr.bf16.gmra.mxu0 %v2238
      %v2355 = vpop.f32.mrf.mxu0
      %v2356 = vadd.f32 0.0, %v2355
      %v2357 = vpop.f32.mrf.mxu0
      %v2358 = vpop.f32.mrf.mxu0
      %v2359 = vpop.f32.mrf.mxu0
      %2360 = vmatprep.mubr.bf16.mxu0 0
      %2361 = vmatmul.mubr.bf16.gmra.mxu0 %v2241
      %v2362 = vpop.f32.mrf.mxu0
      %v2363 = vadd.f32 0.0, %v2362
      %v2364 = vpop.f32.mrf.mxu0
      %v2365 = vpop.f32.mrf.mxu0
      %v2366 = vadd.f32 0.0, %v2365
      %v2367 = vpop.f32.mrf.mxu0
      %2368 = vmatprep.mubr.bf16.mxu0 0
      %2369 = vmatmul.mubr.bf16.gmra.mxu0 %v2244
      %v2370 = vpop.f32.mrf.mxu0
      %v2371 = vpop.f32.mrf.mxu0
      %v2372 = vpop.f32.mrf.mxu0
      %v2373 = vadd.f32 0.0, %v2372
      %v2374 = vpop.f32.mrf.mxu0
      %2375 = vmatprep.mubr.bf16.mxu0 0
      %2376 = vmatmul.mubr.bf16.gmra.mxu0 %v2247
      %v2377 = vpop.f32.mrf.mxu0
      %v2378 = vadd.f32 0.0, %v2377
      %v2379 = vpop.f32.mrf.mxu0
      %v2380 = vpop.f32.mrf.mxu0
      %v2381 = vpop.f32.mrf.mxu0
      %2382 = vmatprep.mubr.bf16.mxu0 0
      %2383 = vmatmul.mubr.bf16.gmra.mxu0 %v2250
      %v2384 = vpop.f32.mrf.mxu0
      %v2385 = vadd.f32 0.0, %v2384
      %v2386 = vpop.f32.mrf.mxu0
      %v2387 = vpop.f32.mrf.mxu0
      %v2388 = vadd.f32 0.0, %v2387
      %v2389 = vpop.f32.mrf.mxu0
      %2390 = vmatprep.mubr.bf16.mxu0 0
      %2391 = vmatmul.mubr.bf16.gmra.mxu0 %v2253
      %v2392 = vpop.f32.mrf.mxu0
      %v2393 = vpop.f32.mrf.mxu0
      %v2394 = vpop.f32.mrf.mxu0
      %v2395 = vadd.f32 0.0, %v2394
      %v2396 = vpop.f32.mrf.mxu0
      %2397 = vmatprep.mubr.bf16.mxu0 0
      %2398 = vmatmul.mubr.bf16.gmra.mxu0 %v2256
      %v2399 = vpop.f32.mrf.mxu0
      %v2400 = vadd.f32 0.0, %v2399
      %v2401 = vpop.f32.mrf.mxu0
      %v2402 = vpop.f32.mrf.mxu0
      %v2403 = vpop.f32.mrf.mxu0
      %2404 = vmatprep.mubr.bf16.mxu0 0
      %2405 = vmatmul.mubr.bf16.gmra.mxu0 %v2259
      %v2406 = vpop.f32.mrf.mxu0
      %v2407 = vadd.f32 0.0, %v2406
      %v2408 = vpop.f32.mrf.mxu0
      %v2409 = vpop.f32.mrf.mxu0
      %v2410 = vadd.f32 0.0, %v2409
      %v2411 = vpop.f32.mrf.mxu0
      %2412 = vmatprep.mubr.bf16.mxu0 0
      %2413 = vmatmul.mubr.bf16.gmra.mxu0 %v2262
      %v2414 = vpop.f32.mrf.mxu0
      %v2415 = vpop.f32.mrf.mxu0
      %v2416 = vpop.f32.mrf.mxu0
      %v2417 = vadd.f32 0.0, %v2416
      %v2418 = vpop.f32.mrf.mxu0
      %2419 = vmatprep.mubr.bf16.mxu0 0
      %2420 = vmatmul.mubr.bf16.gmra.mxu0 %v2265
      %v2421 = vpop.f32.mrf.mxu0
      %v2422 = vadd.f32 0.0, %v2421
      %v2423 = vpop.f32.mrf.mxu0
      %v2424 = vpop.f32.mrf.mxu0
      %v2425 = vpop.f32.mrf.mxu0
      %2426 = vmatprep.mubr.bf16.mxu0 0
      %2427 = vmatmul.mubr.bf16.gmra.mxu0 %v2268
      %v2428 = vpop.f32.mrf.mxu0
      %v2429 = vadd.f32 0.0, %v2428
      %v2430 = vpop.f32.mrf.mxu0
      %v2431 = vpop.f32.mrf.mxu0
      %v2432 = vadd.f32 0.0, %v2431
      %v2433 = vpop.f32.mrf.mxu0
      %2434 = vmatprep.mubr.bf16.mxu0 0
      %2435 = vmatmul.mubr.bf16.gmra.mxu0 %v2271
      %v2436 = vpop.f32.mrf.mxu0
      %v2437 = vpop.f32.mrf.mxu0
      %v2438 = vpop.f32.mrf.mxu0
      %v2439 = vadd.f32 0.0, %v2438
      %v2440 = vpop.f32.mrf.mxu0
      %2441 = vmatprep.mubr.bf16.mxu0 0
      %2442 = vmatmul.mubr.bf16.gmra.mxu0 %v2274
      %v2443 = vpop.f32.mrf.mxu0
      %v2444 = vadd.f32 0.0, %v2443
      %v2445 = vpop.f32.mrf.mxu0
      %v2446 = vpop.f32.mrf.mxu0
      %v2447 = vpop.f32.mrf.mxu0
      %2448 = vmatprep.mubr.bf16.mxu0 0
      %2449 = vmatmul.mubr.bf16.gmra.mxu0 %v2277
      %v2450 = vpop.f32.mrf.mxu0
      %v2451 = vadd.f32 0.0, %v2450
      %v2452 = vpop.f32.mrf.mxu0
      %v2453 = vpop.f32.mrf.mxu0
      %v2454 = vadd.f32 0.0, %v2453
      %v2455 = vpop.f32.mrf.mxu0
      %2456 = vmatprep.mubr.bf16.mxu0 0
      %2457 = vmatmul.mubr.bf16.gmra.mxu0 %v2280
      %v2458 = vpop.f32.mrf.mxu0
      %v2459 = vpop.f32.mrf.mxu0
      %v2460 = vpop.f32.mrf.mxu0
      %v2461 = vadd.f32 0.0, %v2460
      %v2462 = vpop.f32.mrf.mxu0
      %2463 = vmatprep.mubr.bf16.mxu0 0
      %2464 = vmatmul.mubr.bf16.gmra.mxu0 %v2283
      %v2465 = vpop.f32.mrf.mxu0
      %v2466 = vadd.f32 0.0, %v2465
      %v2467 = vpop.f32.mrf.mxu0
      %v2468 = vpop.f32.mrf.mxu0
      %v2469 = vpop.f32.mrf.mxu0
      %2470 = vmatprep.mubr.bf16.mxu0 0
      %2471 = vmatmul.mubr.bf16.gmra.mxu0 %v2286
      %v2472 = vpop.f32.mrf.mxu0
      %v2473 = vadd.f32 0.0, %v2472
      %v2474 = vpop.f32.mrf.mxu0
      %v2475 = vpop.f32.mrf.mxu0
      %v2476 = vadd.f32 0.0, %v2475
      %v2477 = vpop.f32.mrf.mxu0
      %2478 = vmatprep.mubr.bf16.mxu0 0
      %2479 = vmatmul.mubr.bf16.gmra.mxu0 %v2289
      %v2480 = vpop.f32.mrf.mxu0
      %v2481 = vpop.f32.mrf.mxu0
      %v2482 = vpop.f32.mrf.mxu0
      %v2483 = vadd.f32 0.0, %v2482
      %v2484 = vpop.f32.mrf.mxu0
      %2485 = vmatprep.mubr.bf16.mxu0 0
      %2486 = vmatmul.mubr.bf16.gmra.mxu0 %v2292
      %v2487 = vpop.f32.mrf.mxu0
      %v2488 = vadd.f32 0.0, %v2487
      %v2489 = vpop.f32.mrf.mxu0
      %v2490 = vpop.f32.mrf.mxu0
      %v2491 = vpop.f32.mrf.mxu0
      %2492 = vmatprep.mubr.bf16.mxu0 0
      %2493 = vmatmul.mubr.bf16.gmra.mxu0 %v2295
      %v2494 = vpop.f32.mrf.mxu0
      %v2495 = vadd.f32 0.0, %v2494
      %v2496 = vpop.f32.mrf.mxu0
      %v2497 = vpop.f32.mrf.mxu0
      %v2498 = vadd.f32 0.0, %v2497
      %v2499 = vpop.f32.mrf.mxu0
      %2500 = vmatprep.mubr.bf16.mxu0 0
      %2501 = vmatmul.mubr.bf16.gmra.mxu0 %v2298
      %v2502 = vpop.f32.mrf.mxu0
      %v2503 = vpop.f32.mrf.mxu0
      %v2504 = vpop.f32.mrf.mxu0
      %v2505 = vadd.f32 0.0, %v2504
      %v2506 = vpop.f32.mrf.mxu0
      %2507 = vmatprep.mubr.bf16.mxu0 0
      %2508 = vmatmul.mubr.bf16.gmra.mxu0 %v2301
      %v2509 = vpop.f32.mrf.mxu0
      %v2510 = vadd.f32 0.0, %v2509
      %v2511 = vpop.f32.mrf.mxu0
      %v2512 = vpop.f32.mrf.mxu0
      %v2513 = vpop.f32.mrf.mxu0
      %2514 = vdwg.mxu0
      %v2515 = vadd.f32 %v1686, %v2341
      %v2516 = vadd.f32 %v1689, %v2344
      %v2517 = vadd.f32 %v1696, %v2351
      %v2518 = vadd.f32 %v1701, %v2356
      %v2519 = vadd.f32 %v1708, %v2363
      %v2520 = vadd.f32 %v1711, %v2366
      %v2521 = vadd.f32 %v1718, %v2373
      %v2522 = vadd.f32 %v1723, %v2378
      %v2523 = vadd.f32 %v1730, %v2385
      %v2524 = vadd.f32 %v1733, %v2388
      %v2525 = vadd.f32 %v1740, %v2395
      %v2526 = vadd.f32 %v1745, %v2400
      %v2527 = vadd.f32 %v1752, %v2407
      %v2528 = vadd.f32 %v1755, %v2410
      %v2529 = vadd.f32 %v1762, %v2417
      %v2530 = vadd.f32 %v1767, %v2422
      %v2531 = vadd.f32 %v1774, %v2429
      %v2532 = vadd.f32 %v1777, %v2432
      %v2533 = vadd.f32 %v1784, %v2439
      %v2534 = vadd.f32 %v1789, %v2444
      %v2535 = vadd.f32 %v1796, %v2451
      %v2536 = vadd.f32 %v1799, %v2454
      %v2537 = vadd.f32 %v1806, %v2461
      %v2538 = vadd.f32 %v1811, %v2466
      %v2539 = vadd.f32 %v1818, %v2473
      %v2540 = vadd.f32 %v1821, %v2476
      %v2541 = vadd.f32 %v1828, %v2483
      %v2542 = vadd.f32 %v1833, %v2488
      %v2543 = vadd.f32 %v1840, %v2495
      %v2544 = vadd.f32 %v1843, %v2498
      %v2545 = vadd.f32 %v1850, %v2505
      %v2546 = vadd.f32 %v1855, %v2510
      %v2547 = vld [vmem:[#allocation2 + $0xc] sm:$0x8]
      %v2548 = vld [vmem:[#allocation2 + $0x10] sm:$0xf]
      %v2549 = vld [vmem:[#allocation2 + $0x14] sm:$0xf]
      %v2550 = vld [vmem:[#allocation2 + $0x18] sm:$0xf]
      %v2551 = vld [vmem:[#allocation2 + $0x1c] sm:$0xf]
      %v2552 = vld [vmem:[#allocation2 + $0x20] sm:$0xf]
      %v2553 = vld [vmem:[#allocation2 + $0x24] sm:$0xf]
      %v2554 = vld [vmem:[#allocation2 + $0x28] sm:$0xf]
      %v2555 = vld [vmem:[#allocation2 + $0x2c] sm:$0xf]
      %v2556 = vld [vmem:[#allocation2 + $0x30] sm:$0xf]
      %v2557 = vld [vmem:[#allocation2 + $0x34] sm:$0xf]
      %v2558 = vld [vmem:[#allocation2 + $0x38] sm:$0xf]
      %v2559 = vld [vmem:[#allocation2 + $0x3c] sm:$0xf]
      %v2560 = vld [vmem:[#allocation2 + $0x40] sm:$0xf]
      %v2561 = vld [vmem:[#allocation2 + $0x44] sm:$0xf]
      %v2562 = vld [vmem:[#allocation2 + $0x48] sm:$0xf]
      %v2563 = vld [vmem:[#allocation2 + $0x4c] sm:$0xf]
      %v2564 = vld [vmem:[#allocation2 + $0x50] sm:$0xf]
      %v2565 = vld [vmem:[#allocation2 + $0x54] sm:$0xf]
      %v2566 = vld [vmem:[#allocation2 + $0x58] sm:$0xf]
      %v2567 = vld [vmem:[#allocation2 + $0x5c] sm:$0xf]
      %v2568 = vld [vmem:[#allocation2 + $0x60] sm:$0xf]
      %v2569 = vld [vmem:[#allocation2 + $0x64] sm:$0xf]
      %v2570 = vld [vmem:[#allocation2 + $0x68] sm:$0xf]
      %v2571 = vld [vmem:[#allocation2 + $0x6c] sm:$0xf]
      %v2572 = vld [vmem:[#allocation2 + $0x70] sm:$0xf]
      %v2573 = vld [vmem:[#allocation2 + $0x74] sm:$0xf]
      %v2574 = vld [vmem:[#allocation2 + $0x78] sm:$0xf]
      %v2575 = vld [vmem:[#allocation2 + $0x7c] sm:$0xf]
      %v2576 = vld [vmem:[#allocation2 + $0x80] sm:$0xf]
      %v2577 = vld [vmem:[#allocation2 + $0x84] sm:$0xf]
      %v2578 = vld [vmem:[#allocation2 + $0x88] sm:$0xf]
      %v2579 = vld [vmem:[#allocation2 + $0x8c] sm:$0xf]
      %v2580 = vld [vmem:[#allocation2 + $0x90] sm:$0xf]
      %v2581 = vld [vmem:[#allocation2 + $0x94] sm:$0xf]
      %v2582 = vld [vmem:[#allocation2 + $0x98] sm:$0xf]
      %v2583 = vld [vmem:[#allocation2 + $0x9c] sm:$0xf]
      %v2584 = vld [vmem:[#allocation2 + $0xa0] sm:$0xf]
      %v2585 = vld [vmem:[#allocation2 + $0xa4] sm:$0xf]
      %v2586 = vld [vmem:[#allocation2 + $0xa8] sm:$0xf]
      %v2587 = vld [vmem:[#allocation2 + $0xac] sm:$0xf]
      %v2588 = vld [vmem:[#allocation2 + $0xb0] sm:$0xf]
      %v2589 = vld [vmem:[#allocation2 + $0xb4] sm:$0xf]
      %v2590 = vld [vmem:[#allocation2 + $0xb8] sm:$0xf]
      %v2591 = vld [vmem:[#allocation2 + $0xbc] sm:$0xf]
      %v2592 = vld [vmem:[#allocation2 + $0xc0] sm:$0xf]
      %v2593 = vld [vmem:[#allocation2 + $0xc4] sm:$0xf]
      %v2594 = vld [vmem:[#allocation2 + $0xc8] sm:$0xf]
      %v2595 = vld [vmem:[#allocation2 + $0xcc] sm:$0xf]
      %s2596 = scalar_lea.vmem %s3, 6
      %v2597 = vld [vmem:[%s2596] sm:$0x3]
      %v2647 = vunpack.c.l.b16 %v2547
      %v2648 = vunpack.c.l.b16 %v2548
      %v2649 = vunpack.c.l.b16 %v2549
      %v2650 = vunpack.c.l.b16 %v2550
      %v2651 = vunpack.c.l.b16 %v2551
      %v2652 = vunpack.c.l.b16 %v2552
      %v2653 = vunpack.c.l.b16 %v2553
      %v2654 = vunpack.c.l.b16 %v2554
      %v2655 = vunpack.c.l.b16 %v2555
      %v2656 = vunpack.c.l.b16 %v2556
      %v2657 = vunpack.c.l.b16 %v2557
      %v2658 = vunpack.c.l.b16 %v2558
      %v2659 = vunpack.c.l.b16 %v2559
      %v2660 = vunpack.c.l.b16 %v2560
      %v2661 = vunpack.c.l.b16 %v2561
      %v2662 = vunpack.c.l.b16 %v2562
      %v2663 = vunpack.c.l.b16 %v2563
      %v2664 = vunpack.c.l.b16 %v2564
      %v2665 = vunpack.c.l.b16 %v2565
      %v2666 = vunpack.c.l.b16 %v2566
      %v2667 = vunpack.c.l.b16 %v2567
      %v2668 = vunpack.c.l.b16 %v2568
      %v2669 = vunpack.c.l.b16 %v2569
      %v2670 = vunpack.c.l.b16 %v2570
      %v2671 = vunpack.c.l.b16 %v2571
      %v2672 = vunpack.c.l.b16 %v2572
      %v2673 = vunpack.c.l.b16 %v2573
      %v2674 = vunpack.c.l.b16 %v2574
      %v2675 = vunpack.c.l.b16 %v2575
      %v2676 = vunpack.c.l.b16 %v2576
      %v2677 = vunpack.c.l.b16 %v2577
      %v2678 = vunpack.c.l.b16 %v2578
      %v2679 = vunpack.c.l.b16 %v2579
      %v2680 = vunpack.c.l.b16 %v2580
      %v2681 = vunpack.c.l.b16 %v2581
      %v2682 = vunpack.c.l.b16 %v2582
      %v2683 = vunpack.c.l.b16 %v2583
      %v2684 = vunpack.c.l.b16 %v2584
      %v2685 = vunpack.c.l.b16 %v2585
      %v2686 = vunpack.c.l.b16 %v2586
      %v2687 = vunpack.c.l.b16 %v2587
      %v2688 = vunpack.c.l.b16 %v2588
      %v2689 = vunpack.c.l.b16 %v2589
      %v2690 = vunpack.c.l.b16 %v2590
      %v2691 = vunpack.c.l.b16 %v2591
      %v2692 = vunpack.c.l.b16 %v2592
      %v2693 = vunpack.c.l.b16 %v2593
      %v2694 = vunpack.c.l.b16 %v2594
      %v2695 = vunpack.c.l.b16 %v2595
      %v2696 = vpack.c.b16 %v2648, %v2647
      %v2697 = vpack.c.b16 %v2650, %v2649
      %v2698 = vpack.c.b16 %v2652, %v2651
      %v2699 = vpack.c.b16 %v2654, %v2653
      %v2700 = vpack.c.b16 %v2656, %v2655
      %v2701 = vpack.c.b16 %v2658, %v2657
      %v2702 = vpack.c.b16 %v2660, %v2659
      %v2703 = vpack.c.b16 %v2662, %v2661
      %v2704 = vpack.c.b16 %v2664, %v2663
      %v2705 = vpack.c.b16 %v2666, %v2665
      %v2706 = vpack.c.b16 %v2668, %v2667
      %v2707 = vpack.c.b16 %v2670, %v2669
      %v2708 = vpack.c.b16 %v2672, %v2671
      %v2709 = vpack.c.b16 %v2674, %v2673
      %v2710 = vpack.c.b16 %v2676, %v2675
      %v2711 = vpack.c.b16 %v2678, %v2677
      %v2712 = vpack.c.b16 %v2680, %v2679
      %v2713 = vpack.c.b16 %v2682, %v2681
      %v2714 = vpack.c.b16 %v2684, %v2683
      %v2715 = vpack.c.b16 %v2686, %v2685
      %v2716 = vpack.c.b16 %v2688, %v2687
      %v2717 = vpack.c.b16 %v2690, %v2689
      %v2718 = vpack.c.b16 %v2692, %v2691
      %v2719 = vpack.c.b16 %v2694, %v2693
      %v2720 = vpack.c.b16 %v2695, %v2695
      %v2722 = vshrl.u32 %v2696, 16
      %v2724 = vrot.slane %v2722, 3
      %v2725 = vshll.u32 %v2696, 16
      %v2727 = vrot.slane %v2725, 4
      %v2728 = vor.u32 %v2724, %v2727
      %v2730 = vshrl.u32 %v2697, 16
      %v2732 = vrot.slane %v2730, 3
      %v2733 = vshll.u32 %v2697, 16
      %v2735 = vrot.slane %v2733, 4
      %v2736 = vor.u32 %v2732, %v2735
      %v2737 = vsel %vm1351, %v2728, %v2736
      %v2739 = vshrl.u32 %v2698, 16
      %v2741 = vrot.slane %v2739, 3
      %v2742 = vshll.u32 %v2698, 16
      %v2744 = vrot.slane %v2742, 4
      %v2745 = vor.u32 %v2741, %v2744
      %v2746 = vsel %vm1351, %v2736, %v2745
      %v2748 = vshrl.u32 %v2699, 16
      %v2750 = vrot.slane %v2748, 3
      %v2751 = vshll.u32 %v2699, 16
      %v2753 = vrot.slane %v2751, 4
      %v2754 = vor.u32 %v2750, %v2753
      %v2755 = vsel %vm1351, %v2745, %v2754
      %v2757 = vshrl.u32 %v2700, 16
      %v2759 = vrot.slane %v2757, 3
      %v2760 = vshll.u32 %v2700, 16
      %v2762 = vrot.slane %v2760, 4
      %v2763 = vor.u32 %v2759, %v2762
      %v2764 = vsel %vm1351, %v2754, %v2763
      %v2766 = vshrl.u32 %v2701, 16
      %v2768 = vrot.slane %v2766, 3
      %v2769 = vshll.u32 %v2701, 16
      %v2771 = vrot.slane %v2769, 4
      %v2772 = vor.u32 %v2768, %v2771
      %v2773 = vsel %vm1351, %v2763, %v2772
      %v2775 = vshrl.u32 %v2702, 16
      %v2777 = vrot.slane %v2775, 3
      %v2778 = vshll.u32 %v2702, 16
      %v2780 = vrot.slane %v2778, 4
      %v2781 = vor.u32 %v2777, %v2780
      %v2782 = vsel %vm1351, %v2772, %v2781
      %v2784 = vshrl.u32 %v2703, 16
      %v2786 = vrot.slane %v2784, 3
      %v2787 = vshll.u32 %v2703, 16
      %v2789 = vrot.slane %v2787, 4
      %v2790 = vor.u32 %v2786, %v2789
      %v2791 = vsel %vm1351, %v2781, %v2790
      %v2793 = vshrl.u32 %v2704, 16
      %v2795 = vrot.slane %v2793, 3
      %v2796 = vshll.u32 %v2704, 16
      %v2798 = vrot.slane %v2796, 4
      %v2799 = vor.u32 %v2795, %v2798
      %v2800 = vsel %vm1351, %v2790, %v2799
      %v2802 = vshrl.u32 %v2705, 16
      %v2804 = vrot.slane %v2802, 3
      %v2805 = vshll.u32 %v2705, 16
      %v2807 = vrot.slane %v2805, 4
      %v2808 = vor.u32 %v2804, %v2807
      %v2809 = vsel %vm1351, %v2799, %v2808
      %v2811 = vshrl.u32 %v2706, 16
      %v2813 = vrot.slane %v2811, 3
      %v2814 = vshll.u32 %v2706, 16
      %v2816 = vrot.slane %v2814, 4
      %v2817 = vor.u32 %v2813, %v2816
      %v2818 = vsel %vm1351, %v2808, %v2817
      %v2820 = vshrl.u32 %v2707, 16
      %v2822 = vrot.slane %v2820, 3
      %v2823 = vshll.u32 %v2707, 16
      %v2825 = vrot.slane %v2823, 4
      %v2826 = vor.u32 %v2822, %v2825
      %v2827 = vsel %vm1351, %v2817, %v2826
      %v2829 = vshrl.u32 %v2708, 16
      %v2831 = vrot.slane %v2829, 3
      %v2832 = vshll.u32 %v2708, 16
      %v2834 = vrot.slane %v2832, 4
      %v2835 = vor.u32 %v2831, %v2834
      %v2836 = vsel %vm1351, %v2826, %v2835
      %v2838 = vshrl.u32 %v2709, 16
      %v2840 = vrot.slane %v2838, 3
      %v2841 = vshll.u32 %v2709, 16
      %v2843 = vrot.slane %v2841, 4
      %v2844 = vor.u32 %v2840, %v2843
      %v2845 = vsel %vm1351, %v2835, %v2844
      %v2847 = vshrl.u32 %v2710, 16
      %v2849 = vrot.slane %v2847, 3
      %v2850 = vshll.u32 %v2710, 16
      %v2852 = vrot.slane %v2850, 4
      %v2853 = vor.u32 %v2849, %v2852
      %v2854 = vsel %vm1351, %v2844, %v2853
      %v2856 = vshrl.u32 %v2711, 16
      %v2858 = vrot.slane %v2856, 3
      %v2859 = vshll.u32 %v2711, 16
      %v2861 = vrot.slane %v2859, 4
      %v2862 = vor.u32 %v2858, %v2861
      %v2863 = vsel %vm1351, %v2853, %v2862
      %v2865 = vshrl.u32 %v2712, 16
      %v2867 = vrot.slane %v2865, 3
      %v2868 = vshll.u32 %v2712, 16
      %v2870 = vrot.slane %v2868, 4
      %v2871 = vor.u32 %v2867, %v2870
      %v2872 = vsel %vm1351, %v2862, %v2871
      %v2874 = vshrl.u32 %v2713, 16
      %v2876 = vrot.slane %v2874, 3
      %v2877 = vshll.u32 %v2713, 16
      %v2879 = vrot.slane %v2877, 4
      %v2880 = vor.u32 %v2876, %v2879
      %v2881 = vsel %vm1351, %v2871, %v2880
      %v2883 = vshrl.u32 %v2714, 16
      %v2885 = vrot.slane %v2883, 3
      %v2886 = vshll.u32 %v2714, 16
      %v2888 = vrot.slane %v2886, 4
      %v2889 = vor.u32 %v2885, %v2888
      %v2890 = vsel %vm1351, %v2880, %v2889
      %v2892 = vshrl.u32 %v2715, 16
      %v2894 = vrot.slane %v2892, 3
      %v2895 = vshll.u32 %v2715, 16
      %v2897 = vrot.slane %v2895, 4
      %v2898 = vor.u32 %v2894, %v2897
      %v2899 = vsel %vm1351, %v2889, %v2898
      %v2901 = vshrl.u32 %v2716, 16
      %v2903 = vrot.slane %v2901, 3
      %v2904 = vshll.u32 %v2716, 16
      %v2906 = vrot.slane %v2904, 4
      %v2907 = vor.u32 %v2903, %v2906
      %v2908 = vsel %vm1351, %v2898, %v2907
      %v2910 = vshrl.u32 %v2717, 16
      %v2912 = vrot.slane %v2910, 3
      %v2913 = vshll.u32 %v2717, 16
      %v2915 = vrot.slane %v2913, 4
      %v2916 = vor.u32 %v2912, %v2915
      %v2917 = vsel %vm1351, %v2907, %v2916
      %v2919 = vshrl.u32 %v2718, 16
      %v2921 = vrot.slane %v2919, 3
      %v2922 = vshll.u32 %v2718, 16
      %v2924 = vrot.slane %v2922, 4
      %v2925 = vor.u32 %v2921, %v2924
      %v2926 = vsel %vm1351, %v2916, %v2925
      %v2928 = vshrl.u32 %v2719, 16
      %v2930 = vrot.slane %v2928, 3
      %v2931 = vshll.u32 %v2719, 16
      %v2933 = vrot.slane %v2931, 4
      %v2934 = vor.u32 %v2930, %v2933
      %v2935 = vsel %vm1351, %v2925, %v2934
      %v2937 = vshrl.u32 %v2720, 16
      %v2939 = vrot.slane %v2937, 3
      %v2940 = vshll.u32 %v2720, 16
      %v2942 = vrot.slane %v2940, 4
      %v2943 = vor.u32 %v2939, %v2942
      %v2944 = vsel %vm1351, %v2934, %v2943
      %v2946 = vsel %vm1038, %v2737, 0
      %v2949 = vsel %vm1038, %v2746, 0
      %v2952 = vsel %vm1038, %v2755, 0
      %v2955 = vsel %vm1038, %v2764, 0
      %v2958 = vsel %vm1038, %v2773, 0
      %v2961 = vsel %vm1038, %v2782, 0
      %v2964 = vsel %vm1038, %v2791, 0
      %v2967 = vsel %vm1038, %v2800, 0
      %v2970 = vsel %vm1038, %v2809, 0
      %v2973 = vsel %vm1038, %v2818, 0
      %v2976 = vsel %vm1038, %v2827, 0
      %v2979 = vsel %vm1038, %v2836, 0
      %v2982 = vsel %vm1038, %v2845, 0
      %v2985 = vsel %vm1038, %v2854, 0
      %v2988 = vsel %vm1038, %v2863, 0
      %v2991 = vsel %vm1038, %v2872, 0
      %v2994 = vsel %vm1038, %v2881, 0
      %v2997 = vsel %vm1038, %v2890, 0
      %v3000 = vsel %vm1038, %v2899, 0
      %v3003 = vsel %vm1038, %v2908, 0
      %v3006 = vsel %vm1038, %v2917, 0
      %v3009 = vsel %vm1038, %v2926, 0
      %v3012 = vsel %vm1038, %v2935, 0
      %v3015 = vsel %vm1038, %v2944, 0
      %v3018 = vsel %vm1111, %v2597, 0
      %3020 = vmatprep.subr.bf16.mxu0 0
      %3021 = vmatpush1.bf16.msra.mxu0 0
      %3022 = vmatprep.subr.bf16.mxu0 0
      %3023 = vmatpush1.bf16.msra.mxu0 0
      %3024 = vmatprep.subr.bf16.mxu0 0
      %3025 = vmatpush1.bf16.msra.mxu0 0
      %3026 = vmatprep.subr.bf16.mxu0 0
      %3027 = vmatpush1.bf16.msra.mxu0 0
      %3028 = vmatprep.subr.bf16.mxu0 0
      %3029 = vmatpush1.bf16.msra.mxu0 0
      %3030 = vmatprep.subr.bf16.mxu0 0
      %3031 = vmatpush1.bf16.msra.mxu0 0
      %3032 = vmatprep.subr.bf16.mxu0 0
      %3033 = vmatpush1.bf16.msra.mxu0 0
      %3034 = vmatprep.subr.bf16.mxu0 0
      %3035 = vmatpush1.bf16.msra.mxu0 %v3018
      %3036 = vmatprep.subr.bf16.mxu0 0
      %3037 = vmatpush2.bf16.msra.mxu0 0
      %3038 = vmatprep.subr.bf16.mxu0 0
      %3039 = vmatpush2.bf16.msra.mxu0 0
      %3040 = vmatprep.subr.bf16.mxu0 0
      %3041 = vmatpush2.bf16.msra.mxu0 0
      %3042 = vmatprep.subr.bf16.mxu0 0
      %3043 = vmatpush2.bf16.msra.mxu0 0
      %3044 = vmatprep.subr.bf16.mxu0 0
      %3045 = vmatpush2.bf16.msra.mxu0 0
      %3046 = vmatprep.subr.bf16.mxu0 0
      %3047 = vmatpush2.bf16.msra.mxu0 0
      %3048 = vmatprep.subr.bf16.mxu0 0
      %3049 = vmatpush2.bf16.msra.mxu0 0
      %3050 = vmatprep.subr.bf16.mxu0 0
      %3051 = vmatpush2.bf16.msra.mxu0 0
      %3052 = vmatprep.mubr.bf16.mxu0 0
      %3053 = vmatmul.mubr.bf16.gmra.mxu0 %v2946
      %v3054 = vpop.f32.mrf.mxu0
      %v3055 = vadd.f32 0.0, %v3054
      %v3056 = vpop.f32.mrf.mxu0
      %v3057 = vpop.f32.mrf.mxu0
      %v3058 = vadd.f32 0.0, %v3057
      %v3059 = vpop.f32.mrf.mxu0
      %3060 = vmatprep.mubr.bf16.mxu0 0
      %3061 = vmatmul.mubr.bf16.gmra.mxu0 %v2949
      %v3062 = vpop.f32.mrf.mxu0
      %v3063 = vpop.f32.mrf.mxu0
      %v3064 = vpop.f32.mrf.mxu0
      %v3065 = vadd.f32 0.0, %v3064
      %v3066 = vpop.f32.mrf.mxu0
      %3067 = vmatprep.mubr.bf16.mxu0 0
      %3068 = vmatmul.mubr.bf16.gmra.mxu0 %v2952
      %v3069 = vpop.f32.mrf.mxu0
      %v3070 = vadd.f32 0.0, %v3069
      %v3071 = vpop.f32.mrf.mxu0
      %v3072 = vpop.f32.mrf.mxu0
      %v3073 = vpop.f32.mrf.mxu0
      %3074 = vmatprep.mubr.bf16.mxu0 0
      %3075 = vmatmul.mubr.bf16.gmra.mxu0 %v2955
      %v3076 = vpop.f32.mrf.mxu0
      %v3077 = vadd.f32 0.0, %v3076
      %v3078 = vpop.f32.mrf.mxu0
      %v3079 = vpop.f32.mrf.mxu0
      %v3080 = vadd.f32 0.0, %v3079
      %v3081 = vpop.f32.mrf.mxu0
      %3082 = vmatprep.mubr.bf16.mxu0 0
      %3083 = vmatmul.mubr.bf16.gmra.mxu0 %v2958
      %v3084 = vpop.f32.mrf.mxu0
      %v3085 = vpop.f32.mrf.mxu0
      %v3086 = vpop.f32.mrf.mxu0
      %v3087 = vadd.f32 0.0, %v3086
      %v3088 = vpop.f32.mrf.mxu0
      %3089 = vmatprep.mubr.bf16.mxu0 0
      %3090 = vmatmul.mubr.bf16.gmra.mxu0 %v2961
      %v3091 = vpop.f32.mrf.mxu0
      %v3092 = vadd.f32 0.0, %v3091
      %v3093 = vpop.f32.mrf.mxu0
      %v3094 = vpop.f32.mrf.mxu0
      %v3095 = vpop.f32.mrf.mxu0
      %3096 = vmatprep.mubr.bf16.mxu0 0
      %3097 = vmatmul.mubr.bf16.gmra.mxu0 %v2964
      %v3098 = vpop.f32.mrf.mxu0
      %v3099 = vadd.f32 0.0, %v3098
      %v3100 = vpop.f32.mrf.mxu0
      %v3101 = vpop.f32.mrf.mxu0
      %v3102 = vadd.f32 0.0, %v3101
      %v3103 = vpop.f32.mrf.mxu0
      %3104 = vmatprep.mubr.bf16.mxu0 0
      %3105 = vmatmul.mubr.bf16.gmra.mxu0 %v2967
      %v3106 = vpop.f32.mrf.mxu0
      %v3107 = vpop.f32.mrf.mxu0
      %v3108 = vpop.f32.mrf.mxu0
      %v3109 = vadd.f32 0.0, %v3108
      %v3110 = vpop.f32.mrf.mxu0
      %3111 = vmatprep.mubr.bf16.mxu0 0
      %3112 = vmatmul.mubr.bf16.gmra.mxu0 %v2970
      %v3113 = vpop.f32.mrf.mxu0
      %v3114 = vadd.f32 0.0, %v3113
      %v3115 = vpop.f32.mrf.mxu0
      %v3116 = vpop.f32.mrf.mxu0
      %v3117 = vpop.f32.mrf.mxu0
      %3118 = vmatprep.mubr.bf16.mxu0 0
      %3119 = vmatmul.mubr.bf16.gmra.mxu0 %v2973
      %v3120 = vpop.f32.mrf.mxu0
      %v3121 = vadd.f32 0.0, %v3120
      %v3122 = vpop.f32.mrf.mxu0
      %v3123 = vpop.f32.mrf.mxu0
      %v3124 = vadd.f32 0.0, %v3123
      %v3125 = vpop.f32.mrf.mxu0
      %3126 = vmatprep.mubr.bf16.mxu0 0
      %3127 = vmatmul.mubr.bf16.gmra.mxu0 %v2976
      %v3128 = vpop.f32.mrf.mxu0
      %v3129 = vpop.f32.mrf.mxu0
      %v3130 = vpop.f32.mrf.mxu0
      %v3131 = vadd.f32 0.0, %v3130
      %v3132 = vpop.f32.mrf.mxu0
      %3133 = vmatprep.mubr.bf16.mxu0 0
      %3134 = vmatmul.mubr.bf16.gmra.mxu0 %v2979
      %v3135 = vpop.f32.mrf.mxu0
      %v3136 = vadd.f32 0.0, %v3135
      %v3137 = vpop.f32.mrf.mxu0
      %v3138 = vpop.f32.mrf.mxu0
      %v3139 = vpop.f32.mrf.mxu0
      %3140 = vmatprep.mubr.bf16.mxu0 0
      %3141 = vmatmul.mubr.bf16.gmra.mxu0 %v2982
      %v3142 = vpop.f32.mrf.mxu0
      %v3143 = vadd.f32 0.0, %v3142
      %v3144 = vpop.f32.mrf.mxu0
      %v3145 = vpop.f32.mrf.mxu0
      %v3146 = vadd.f32 0.0, %v3145
      %v3147 = vpop.f32.mrf.mxu0
      %3148 = vmatprep.mubr.bf16.mxu0 0
      %3149 = vmatmul.mubr.bf16.gmra.mxu0 %v2985
      %v3150 = vpop.f32.mrf.mxu0
      %v3151 = vpop.f32.mrf.mxu0
      %v3152 = vpop.f32.mrf.mxu0
      %v3153 = vadd.f32 0.0, %v3152
      %v3154 = vpop.f32.mrf.mxu0
      %3155 = vmatprep.mubr.bf16.mxu0 0
      %3156 = vmatmul.mubr.bf16.gmra.mxu0 %v2988
      %v3157 = vpop.f32.mrf.mxu0
      %v3158 = vadd.f32 0.0, %v3157
      %v3159 = vpop.f32.mrf.mxu0
      %v3160 = vpop.f32.mrf.mxu0
      %v3161 = vpop.f32.mrf.mxu0
      %3162 = vmatprep.mubr.bf16.mxu0 0
      %3163 = vmatmul.mubr.bf16.gmra.mxu0 %v2991
      %v3164 = vpop.f32.mrf.mxu0
      %v3165 = vadd.f32 0.0, %v3164
      %v3166 = vpop.f32.mrf.mxu0
      %v3167 = vpop.f32.mrf.mxu0
      %v3168 = vadd.f32 0.0, %v3167
      %v3169 = vpop.f32.mrf.mxu0
      %3170 = vmatprep.mubr.bf16.mxu0 0
      %3171 = vmatmul.mubr.bf16.gmra.mxu0 %v2994
      %v3172 = vpop.f32.mrf.mxu0
      %v3173 = vpop.f32.mrf.mxu0
      %v3174 = vpop.f32.mrf.mxu0
      %v3175 = vadd.f32 0.0, %v3174
      %v3176 = vpop.f32.mrf.mxu0
      %3177 = vmatprep.mubr.bf16.mxu0 0
      %3178 = vmatmul.mubr.bf16.gmra.mxu0 %v2997
      %v3179 = vpop.f32.mrf.mxu0
      %v3180 = vadd.f32 0.0, %v3179
      %v3181 = vpop.f32.mrf.mxu0
      %v3182 = vpop.f32.mrf.mxu0
      %v3183 = vpop.f32.mrf.mxu0
      %3184 = vmatprep.mubr.bf16.mxu0 0
      %3185 = vmatmul.mubr.bf16.gmra.mxu0 %v3000
      %v3186 = vpop.f32.mrf.mxu0
      %v3187 = vadd.f32 0.0, %v3186
      %v3188 = vpop.f32.mrf.mxu0
      %v3189 = vpop.f32.mrf.mxu0
      %v3190 = vadd.f32 0.0, %v3189
      %v3191 = vpop.f32.mrf.mxu0
      %3192 = vmatprep.mubr.bf16.mxu0 0
      %3193 = vmatmul.mubr.bf16.gmra.mxu0 %v3003
      %v3194 = vpop.f32.mrf.mxu0
      %v3195 = vpop.f32.mrf.mxu0
      %v3196 = vpop.f32.mrf.mxu0
      %v3197 = vadd.f32 0.0, %v3196
      %v3198 = vpop.f32.mrf.mxu0
      %3199 = vmatprep.mubr.bf16.mxu0 0
      %3200 = vmatmul.mubr.bf16.gmra.mxu0 %v3006
      %v3201 = vpop.f32.mrf.mxu0
      %v3202 = vadd.f32 0.0, %v3201
      %v3203 = vpop.f32.mrf.mxu0
      %v3204 = vpop.f32.mrf.mxu0
      %v3205 = vpop.f32.mrf.mxu0
      %3206 = vmatprep.mubr.bf16.mxu0 0
      %3207 = vmatmul.mubr.bf16.gmra.mxu0 %v3009
      %v3208 = vpop.f32.mrf.mxu0
      %v3209 = vadd.f32 0.0, %v3208
      %v3210 = vpop.f32.mrf.mxu0
      %v3211 = vpop.f32.mrf.mxu0
      %v3212 = vadd.f32 0.0, %v3211
      %v3213 = vpop.f32.mrf.mxu0
      %3214 = vmatprep.mubr.bf16.mxu0 0
      %3215 = vmatmul.mubr.bf16.gmra.mxu0 %v3012
      %v3216 = vpop.f32.mrf.mxu0
      %v3217 = vpop.f32.mrf.mxu0
      %v3218 = vpop.f32.mrf.mxu0
      %v3219 = vadd.f32 0.0, %v3218
      %v3220 = vpop.f32.mrf.mxu0
      %3221 = vmatprep.mubr.bf16.mxu0 0
      %3222 = vmatmul.mubr.bf16.gmra.mxu0 %v3015
      %v3223 = vpop.f32.mrf.mxu0
      %v3224 = vadd.f32 0.0, %v3223
      %v3225 = vpop.f32.mrf.mxu0
      %v3226 = vpop.f32.mrf.mxu0
      %v3227 = vpop.f32.mrf.mxu0
      %3228 = vdwg.mxu0
      %v3229 = vadd.f32 %v2515, %v3055
      %v3230 = vadd.f32 %v2516, %v3058
      %v3231 = vadd.f32 %v2517, %v3065
      %v3232 = vadd.f32 %v2518, %v3070
      %v3233 = vadd.f32 %v2519, %v3077
      %v3234 = vadd.f32 %v2520, %v3080
      %v3235 = vadd.f32 %v2521, %v3087
      %v3236 = vadd.f32 %v2522, %v3092
      %v3237 = vadd.f32 %v2523, %v3099
      %v3238 = vadd.f32 %v2524, %v3102
      %v3239 = vadd.f32 %v2525, %v3109
      %v3240 = vadd.f32 %v2526, %v3114
      %v3241 = vadd.f32 %v2527, %v3121
      %v3242 = vadd.f32 %v2528, %v3124
      %v3243 = vadd.f32 %v2529, %v3131
      %v3244 = vadd.f32 %v2530, %v3136
      %v3245 = vadd.f32 %v2531, %v3143
      %v3246 = vadd.f32 %v2532, %v3146
      %v3247 = vadd.f32 %v2533, %v3153
      %v3248 = vadd.f32 %v2534, %v3158
      %v3249 = vadd.f32 %v2535, %v3165
      %v3250 = vadd.f32 %v2536, %v3168
      %v3251 = vadd.f32 %v2537, %v3175
      %v3252 = vadd.f32 %v2538, %v3180
      %v3253 = vadd.f32 %v2539, %v3187
      %v3254 = vadd.f32 %v2540, %v3190
      %v3255 = vadd.f32 %v2541, %v3197
      %v3256 = vadd.f32 %v2542, %v3202
      %v3257 = vadd.f32 %v2543, %v3209
      %v3258 = vadd.f32 %v2544, %v3212
      %v3259 = vadd.f32 %v2545, %v3219
      %v3260 = vadd.f32 %v2546, %v3224
      %s3261 = scalar_lea.vmem %s3, 8
      %v3262 = vld [vmem:[%s3261] sm:$0x3]
      %v3263 = vpack.c.b16 %v2649, %v2648
      %v3264 = vpack.c.b16 %v2651, %v2650
      %v3265 = vpack.c.b16 %v2653, %v2652
      %v3266 = vpack.c.b16 %v2655, %v2654
      %v3267 = vpack.c.b16 %v2657, %v2656
      %v3268 = vpack.c.b16 %v2659, %v2658
      %v3269 = vpack.c.b16 %v2661, %v2660
      %v3270 = vpack.c.b16 %v2663, %v2662
      %v3271 = vpack.c.b16 %v2665, %v2664
      %v3272 = vpack.c.b16 %v2667, %v2666
      %v3273 = vpack.c.b16 %v2669, %v2668
      %v3274 = vpack.c.b16 %v2671, %v2670
      %v3275 = vpack.c.b16 %v2673, %v2672
      %v3276 = vpack.c.b16 %v2675, %v2674
      %v3277 = vpack.c.b16 %v2677, %v2676
      %v3278 = vpack.c.b16 %v2679, %v2678
      %v3279 = vpack.c.b16 %v2681, %v2680
      %v3280 = vpack.c.b16 %v2683, %v2682
      %v3281 = vpack.c.b16 %v2685, %v2684
      %v3282 = vpack.c.b16 %v2687, %v2686
      %v3283 = vpack.c.b16 %v2689, %v2688
      %v3284 = vpack.c.b16 %v2691, %v2690
      %v3285 = vpack.c.b16 %v2693, %v2692
      %v3286 = vpack.c.b16 %v2695, %v2694
      %v3288 = vsel %vm1038, %v3263, 0
      %v3291 = vsel %vm1038, %v3264, 0
      %v3294 = vsel %vm1038, %v3265, 0
      %v3297 = vsel %vm1038, %v3266, 0
      %v3300 = vsel %vm1038, %v3267, 0
      %v3303 = vsel %vm1038, %v3268, 0
      %v3306 = vsel %vm1038, %v3269, 0
      %v3309 = vsel %vm1038, %v3270, 0
      %v3312 = vsel %vm1038, %v3271, 0
      %v3315 = vsel %vm1038, %v3272, 0
      %v3318 = vsel %vm1038, %v3273, 0
      %v3321 = vsel %vm1038, %v3274, 0
      %v3324 = vsel %vm1038, %v3275, 0
      %v3327 = vsel %vm1038, %v3276, 0
      %v3330 = vsel %vm1038, %v3277, 0
      %v3333 = vsel %vm1038, %v3278, 0
      %v3336 = vsel %vm1038, %v3279, 0
      %v3339 = vsel %vm1038, %v3280, 0
      %v3342 = vsel %vm1038, %v3281, 0
      %v3345 = vsel %vm1038, %v3282, 0
      %v3348 = vsel %vm1038, %v3283, 0
      %v3351 = vsel %vm1038, %v3284, 0
      %v3354 = vsel %vm1038, %v3285, 0
      %v3357 = vsel %vm1038, %v3286, 0
      %v3360 = vsel %vm1111, %v3262, 0
      %3362 = vmatprep.subr.bf16.mxu0 0
      %3363 = vmatpush1.bf16.msra.mxu0 0
      %3364 = vmatprep.subr.bf16.mxu0 0
      %3365 = vmatpush1.bf16.msra.mxu0 0
      %3366 = vmatprep.subr.bf16.mxu0 0
      %3367 = vmatpush1.bf16.msra.mxu0 0
      %3368 = vmatprep.subr.bf16.mxu0 0
      %3369 = vmatpush1.bf16.msra.mxu0 0
      %3370 = vmatprep.subr.bf16.mxu0 0
      %3371 = vmatpush1.bf16.msra.mxu0 0
      %3372 = vmatprep.subr.bf16.mxu0 0
      %3373 = vmatpush1.bf16.msra.mxu0 0
      %3374 = vmatprep.subr.bf16.mxu0 0
      %3375 = vmatpush1.bf16.msra.mxu0 0
      %3376 = vmatprep.subr.bf16.mxu0 0
      %3377 = vmatpush1.bf16.msra.mxu0 %v3360
      %3378 = vmatprep.subr.bf16.mxu0 0
      %3379 = vmatpush2.bf16.msra.mxu0 0
      %3380 = vmatprep.subr.bf16.mxu0 0
      %3381 = vmatpush2.bf16.msra.mxu0 0
      %3382 = vmatprep.subr.bf16.mxu0 0
      %3383 = vmatpush2.bf16.msra.mxu0 0
      %3384 = vmatprep.subr.bf16.mxu0 0
      %3385 = vmatpush2.bf16.msra.mxu0 0
      %3386 = vmatprep.subr.bf16.mxu0 0
      %3387 = vmatpush2.bf16.msra.mxu0 0
      %3388 = vmatprep.subr.bf16.mxu0 0
      %3389 = vmatpush2.bf16.msra.mxu0 0
      %3390 = vmatprep.subr.bf16.mxu0 0
      %3391 = vmatpush2.bf16.msra.mxu0 0
      %3392 = vmatprep.subr.bf16.mxu0 0
      %3393 = vmatpush2.bf16.msra.mxu0 0
      %3394 = vmatprep.mubr.bf16.mxu0 0
      %3395 = vmatmul.mubr.bf16.gmra.mxu0 %v3288
      %v3396 = vpop.f32.mrf.mxu0
      %v3397 = vadd.f32 0.0, %v3396
      %v3398 = vpop.f32.mrf.mxu0
      %v3399 = vpop.f32.mrf.mxu0
      %v3400 = vadd.f32 0.0, %v3399
      %v3401 = vpop.f32.mrf.mxu0
      %3402 = vmatprep.mubr.bf16.mxu0 0
      %3403 = vmatmul.mubr.bf16.gmra.mxu0 %v3291
      %v3404 = vpop.f32.mrf.mxu0
      %v3405 = vpop.f32.mrf.mxu0
      %v3406 = vpop.f32.mrf.mxu0
      %v3407 = vadd.f32 0.0, %v3406
      %v3408 = vpop.f32.mrf.mxu0
      %3409 = vmatprep.mubr.bf16.mxu0 0
      %3410 = vmatmul.mubr.bf16.gmra.mxu0 %v3294
      %v3411 = vpop.f32.mrf.mxu0
      %v3412 = vadd.f32 0.0, %v3411
      %v3413 = vpop.f32.mrf.mxu0
      %v3414 = vpop.f32.mrf.mxu0
      %v3415 = vpop.f32.mrf.mxu0
      %3416 = vmatprep.mubr.bf16.mxu0 0
      %3417 = vmatmul.mubr.bf16.gmra.mxu0 %v3297
      %v3418 = vpop.f32.mrf.mxu0
      %v3419 = vadd.f32 0.0, %v3418
      %v3420 = vpop.f32.mrf.mxu0
      %v3421 = vpop.f32.mrf.mxu0
      %v3422 = vadd.f32 0.0, %v3421
      %v3423 = vpop.f32.mrf.mxu0
      %3424 = vmatprep.mubr.bf16.mxu0 0
      %3425 = vmatmul.mubr.bf16.gmra.mxu0 %v3300
      %v3426 = vpop.f32.mrf.mxu0
      %v3427 = vpop.f32.mrf.mxu0
      %v3428 = vpop.f32.mrf.mxu0
      %v3429 = vadd.f32 0.0, %v3428
      %v3430 = vpop.f32.mrf.mxu0
      %3431 = vmatprep.mubr.bf16.mxu0 0
      %3432 = vmatmul.mubr.bf16.gmra.mxu0 %v3303
      %v3433 = vpop.f32.mrf.mxu0
      %v3434 = vadd.f32 0.0, %v3433
      %v3435 = vpop.f32.mrf.mxu0
      %v3436 = vpop.f32.mrf.mxu0
      %v3437 = vpop.f32.mrf.mxu0
      %3438 = vmatprep.mubr.bf16.mxu0 0
      %3439 = vmatmul.mubr.bf16.gmra.mxu0 %v3306
      %v3440 = vpop.f32.mrf.mxu0
      %v3441 = vadd.f32 0.0, %v3440
      %v3442 = vpop.f32.mrf.mxu0
      %v3443 = vpop.f32.mrf.mxu0
      %v3444 = vadd.f32 0.0, %v3443
      %v3445 = vpop.f32.mrf.mxu0
      %3446 = vmatprep.mubr.bf16.mxu0 0
      %3447 = vmatmul.mubr.bf16.gmra.mxu0 %v3309
      %v3448 = vpop.f32.mrf.mxu0
      %v3449 = vpop.f32.mrf.mxu0
      %v3450 = vpop.f32.mrf.mxu0
      %v3451 = vadd.f32 0.0, %v3450
      %v3452 = vpop.f32.mrf.mxu0
      %3453 = vmatprep.mubr.bf16.mxu0 0
      %3454 = vmatmul.mubr.bf16.gmra.mxu0 %v3312
      %v3455 = vpop.f32.mrf.mxu0
      %v3456 = vadd.f32 0.0, %v3455
      %v3457 = vpop.f32.mrf.mxu0
      %v3458 = vpop.f32.mrf.mxu0
      %v3459 = vpop.f32.mrf.mxu0
      %3460 = vmatprep.mubr.bf16.mxu0 0
      %3461 = vmatmul.mubr.bf16.gmra.mxu0 %v3315
      %v3462 = vpop.f32.mrf.mxu0
      %v3463 = vadd.f32 0.0, %v3462
      %v3464 = vpop.f32.mrf.mxu0
      %v3465 = vpop.f32.mrf.mxu0
      %v3466 = vadd.f32 0.0, %v3465
      %v3467 = vpop.f32.mrf.mxu0
      %3468 = vmatprep.mubr.bf16.mxu0 0
      %3469 = vmatmul.mubr.bf16.gmra.mxu0 %v3318
      %v3470 = vpop.f32.mrf.mxu0
      %v3471 = vpop.f32.mrf.mxu0
      %v3472 = vpop.f32.mrf.mxu0
      %v3473 = vadd.f32 0.0, %v3472
      %v3474 = vpop.f32.mrf.mxu0
      %3475 = vmatprep.mubr.bf16.mxu0 0
      %3476 = vmatmul.mubr.bf16.gmra.mxu0 %v3321
      %v3477 = vpop.f32.mrf.mxu0
      %v3478 = vadd.f32 0.0, %v3477
      %v3479 = vpop.f32.mrf.mxu0
      %v3480 = vpop.f32.mrf.mxu0
      %v3481 = vpop.f32.mrf.mxu0
      %3482 = vmatprep.mubr.bf16.mxu0 0
      %3483 = vmatmul.mubr.bf16.gmra.mxu0 %v3324
      %v3484 = vpop.f32.mrf.mxu0
      %v3485 = vadd.f32 0.0, %v3484
      %v3486 = vpop.f32.mrf.mxu0
      %v3487 = vpop.f32.mrf.mxu0
      %v3488 = vadd.f32 0.0, %v3487
      %v3489 = vpop.f32.mrf.mxu0
      %3490 = vmatprep.mubr.bf16.mxu0 0
      %3491 = vmatmul.mubr.bf16.gmra.mxu0 %v3327
      %v3492 = vpop.f32.mrf.mxu0
      %v3493 = vpop.f32.mrf.mxu0
      %v3494 = vpop.f32.mrf.mxu0
      %v3495 = vadd.f32 0.0, %v3494
      %v3496 = vpop.f32.mrf.mxu0
      %3497 = vmatprep.mubr.bf16.mxu0 0
      %3498 = vmatmul.mubr.bf16.gmra.mxu0 %v3330
      %v3499 = vpop.f32.mrf.mxu0
      %v3500 = vadd.f32 0.0, %v3499
      %v3501 = vpop.f32.mrf.mxu0
      %v3502 = vpop.f32.mrf.mxu0
      %v3503 = vpop.f32.mrf.mxu0
      %3504 = vmatprep.mubr.bf16.mxu0 0
      %3505 = vmatmul.mubr.bf16.gmra.mxu0 %v3333
      %v3506 = vpop.f32.mrf.mxu0
      %v3507 = vadd.f32 0.0, %v3506
      %v3508 = vpop.f32.mrf.mxu0
      %v3509 = vpop.f32.mrf.mxu0
      %v3510 = vadd.f32 0.0, %v3509
      %v3511 = vpop.f32.mrf.mxu0
      %3512 = vmatprep.mubr.bf16.mxu0 0
      %3513 = vmatmul.mubr.bf16.gmra.mxu0 %v3336
      %v3514 = vpop.f32.mrf.mxu0
      %v3515 = vpop.f32.mrf.mxu0
      %v3516 = vpop.f32.mrf.mxu0
      %v3517 = vadd.f32 0.0, %v3516
      %v3518 = vpop.f32.mrf.mxu0
      %3519 = vmatprep.mubr.bf16.mxu0 0
      %3520 = vmatmul.mubr.bf16.gmra.mxu0 %v3339
      %v3521 = vpop.f32.mrf.mxu0
      %v3522 = vadd.f32 0.0, %v3521
      %v3523 = vpop.f32.mrf.mxu0
      %v3524 = vpop.f32.mrf.mxu0
      %v3525 = vpop.f32.mrf.mxu0
      %3526 = vmatprep.mubr.bf16.mxu0 0
      %3527 = vmatmul.mubr.bf16.gmra.mxu0 %v3342
      %v3528 = vpop.f32.mrf.mxu0
      %v3529 = vadd.f32 0.0, %v3528
      %v3530 = vpop.f32.mrf.mxu0
      %v3531 = vpop.f32.mrf.mxu0
      %v3532 = vadd.f32 0.0, %v3531
      %v3533 = vpop.f32.mrf.mxu0
      %3534 = vmatprep.mubr.bf16.mxu0 0
      %3535 = vmatmul.mubr.bf16.gmra.mxu0 %v3345
      %v3536 = vpop.f32.mrf.mxu0
      %v3537 = vpop.f32.mrf.mxu0
      %v3538 = vpop.f32.mrf.mxu0
      %v3539 = vadd.f32 0.0, %v3538
      %v3540 = vpop.f32.mrf.mxu0
      %3541 = vmatprep.mubr.bf16.mxu0 0
      %3542 = vmatmul.mubr.bf16.gmra.mxu0 %v3348
      %v3543 = vpop.f32.mrf.mxu0
      %v3544 = vadd.f32 0.0, %v3543
      %v3545 = vpop.f32.mrf.mxu0
      %v3546 = vpop.f32.mrf.mxu0
      %v3547 = vpop.f32.mrf.mxu0
      %3548 = vmatprep.mubr.bf16.mxu0 0
      %3549 = vmatmul.mubr.bf16.gmra.mxu0 %v3351
      %v3550 = vpop.f32.mrf.mxu0
      %v3551 = vadd.f32 0.0, %v3550
      %v3552 = vpop.f32.mrf.mxu0
      %v3553 = vpop.f32.mrf.mxu0
      %v3554 = vadd.f32 0.0, %v3553
      %v3555 = vpop.f32.mrf.mxu0
      %3556 = vmatprep.mubr.bf16.mxu0 0
      %3557 = vmatmul.mubr.bf16.gmra.mxu0 %v3354
      %v3558 = vpop.f32.mrf.mxu0
      %v3559 = vpop.f32.mrf.mxu0
      %v3560 = vpop.f32.mrf.mxu0
      %v3561 = vadd.f32 0.0, %v3560
      %v3562 = vpop.f32.mrf.mxu0
      %3563 = vmatprep.mubr.bf16.mxu0 0
      %3564 = vmatmul.mubr.bf16.gmra.mxu0 %v3357
      %v3565 = vpop.f32.mrf.mxu0
      %v3566 = vadd.f32 0.0, %v3565
      %v3567 = vpop.f32.mrf.mxu0
      %v3568 = vpop.f32.mrf.mxu0
      %v3569 = vpop.f32.mrf.mxu0
      %3570 = vdwg.mxu0
      %v3571 = vadd.f32 %v3229, %v3397
      %v3572 = vadd.f32 %v3230, %v3400
      %v3573 = vadd.f32 %v3231, %v3407
      %v3574 = vadd.f32 %v3232, %v3412
      %v3575 = vadd.f32 %v3233, %v3419
      %v3576 = vadd.f32 %v3234, %v3422
      %v3577 = vadd.f32 %v3235, %v3429
      %v3578 = vadd.f32 %v3236, %v3434
      %v3579 = vadd.f32 %v3237, %v3441
      %v3580 = vadd.f32 %v3238, %v3444
      %v3581 = vadd.f32 %v3239, %v3451
      %v3582 = vadd.f32 %v3240, %v3456
      %v3583 = vadd.f32 %v3241, %v3463
      %v3584 = vadd.f32 %v3242, %v3466
      %v3585 = vadd.f32 %v3243, %v3473
      %v3586 = vadd.f32 %v3244, %v3478
      %v3587 = vadd.f32 %v3245, %v3485
      %v3588 = vadd.f32 %v3246, %v3488
      %v3589 = vadd.f32 %v3247, %v3495
      %v3590 = vadd.f32 %v3248, %v3500
      %v3591 = vadd.f32 %v3249, %v3507
      %v3592 = vadd.f32 %v3250, %v3510
      %v3593 = vadd.f32 %v3251, %v3517
      %v3594 = vadd.f32 %v3252, %v3522
      %v3595 = vadd.f32 %v3253, %v3529
      %v3596 = vadd.f32 %v3254, %v3532
      %v3597 = vadd.f32 %v3255, %v3539
      %v3598 = vadd.f32 %v3256, %v3544
      %v3599 = vadd.f32 %v3257, %v3551
      %v3600 = vadd.f32 %v3258, %v3554
      %v3601 = vadd.f32 %v3259, %v3561
      %v3602 = vadd.f32 %v3260, %v3566
      %v3603 = vld [vmem:[#allocation2 + $0x10] sm:$0xf]
      %v3604 = vld [vmem:[#allocation2 + $0x14] sm:$0xf]
      %v3605 = vld [vmem:[#allocation2 + $0x18] sm:$0xf]
      %v3606 = vld [vmem:[#allocation2 + $0x1c] sm:$0xf]
      %v3607 = vld [vmem:[#allocation2 + $0x20] sm:$0xf]
      %v3608 = vld [vmem:[#allocation2 + $0x24] sm:$0xf]
      %v3609 = vld [vmem:[#allocation2 + $0x28] sm:$0xf]
      %v3610 = vld [vmem:[#allocation2 + $0x2c] sm:$0xf]
      %v3611 = vld [vmem:[#allocation2 + $0x30] sm:$0xf]
      %v3612 = vld [vmem:[#allocation2 + $0x34] sm:$0xf]
      %v3613 = vld [vmem:[#allocation2 + $0x38] sm:$0xf]
      %v3614 = vld [vmem:[#allocation2 + $0x3c] sm:$0xf]
      %v3615 = vld [vmem:[#allocation2 + $0x40] sm:$0xf]
      %v3616 = vld [vmem:[#allocation2 + $0x44] sm:$0xf]
      %v3617 = vld [vmem:[#allocation2 + $0x48] sm:$0xf]
      %v3618 = vld [vmem:[#allocation2 + $0x4c] sm:$0xf]
      %v3619 = vld [vmem:[#allocation2 + $0x50] sm:$0xf]
      %v3620 = vld [vmem:[#allocation2 + $0x54] sm:$0xf]
      %v3621 = vld [vmem:[#allocation2 + $0x58] sm:$0xf]
      %v3622 = vld [vmem:[#allocation2 + $0x5c] sm:$0xf]
      %v3623 = vld [vmem:[#allocation2 + $0x60] sm:$0xf]
      %v3624 = vld [vmem:[#allocation2 + $0x64] sm:$0xf]
      %v3625 = vld [vmem:[#allocation2 + $0x68] sm:$0xf]
      %v3626 = vld [vmem:[#allocation2 + $0x6c] sm:$0xf]
      %v3627 = vld [vmem:[#allocation2 + $0x70] sm:$0xf]
      %v3628 = vld [vmem:[#allocation2 + $0x74] sm:$0xf]
      %v3629 = vld [vmem:[#allocation2 + $0x78] sm:$0xf]
      %v3630 = vld [vmem:[#allocation2 + $0x7c] sm:$0xf]
      %v3631 = vld [vmem:[#allocation2 + $0x80] sm:$0xf]
      %v3632 = vld [vmem:[#allocation2 + $0x84] sm:$0xf]
      %v3633 = vld [vmem:[#allocation2 + $0x88] sm:$0xf]
      %v3634 = vld [vmem:[#allocation2 + $0x8c] sm:$0xf]
      %v3635 = vld [vmem:[#allocation2 + $0x90] sm:$0xf]
      %v3636 = vld [vmem:[#allocation2 + $0x94] sm:$0xf]
      %v3637 = vld [vmem:[#allocation2 + $0x98] sm:$0xf]
      %v3638 = vld [vmem:[#allocation2 + $0x9c] sm:$0xf]
      %v3639 = vld [vmem:[#allocation2 + $0xa0] sm:$0xf]
      %v3640 = vld [vmem:[#allocation2 + $0xa4] sm:$0xf]
      %v3641 = vld [vmem:[#allocation2 + $0xa8] sm:$0xf]
      %v3642 = vld [vmem:[#allocation2 + $0xac] sm:$0xf]
      %v3643 = vld [vmem:[#allocation2 + $0xb0] sm:$0xf]
      %v3644 = vld [vmem:[#allocation2 + $0xb4] sm:$0xf]
      %v3645 = vld [vmem:[#allocation2 + $0xb8] sm:$0xf]
      %v3646 = vld [vmem:[#allocation2 + $0xbc] sm:$0xf]
      %v3647 = vld [vmem:[#allocation2 + $0xc0] sm:$0xf]
      %v3648 = vld [vmem:[#allocation2 + $0xc4] sm:$0xf]
      %v3649 = vld [vmem:[#allocation2 + $0xc8] sm:$0xf]
      %v3650 = vld [vmem:[#allocation2 + $0xcc] sm:$0xf]
      %v3651 = vld [vmem:[#allocation2 + $0xd0] sm:$0x1]
      %s3652 = scalar_lea.vmem %s3, 10
      %v3653 = vld [vmem:[%s3652] sm:$0x3]
      %v3703 = vunpack.c.l.b16 %v3603
      %v3704 = vunpack.c.l.b16 %v3604
      %v3705 = vunpack.c.l.b16 %v3605
      %v3706 = vunpack.c.l.b16 %v3606
      %v3707 = vunpack.c.l.b16 %v3607
      %v3708 = vunpack.c.l.b16 %v3608
      %v3709 = vunpack.c.l.b16 %v3609
      %v3710 = vunpack.c.l.b16 %v3610
      %v3711 = vunpack.c.l.b16 %v3611
      %v3712 = vunpack.c.l.b16 %v3612
      %v3713 = vunpack.c.l.b16 %v3613
      %v3714 = vunpack.c.l.b16 %v3614
      %v3715 = vunpack.c.l.b16 %v3615
      %v3716 = vunpack.c.l.b16 %v3616
      %v3717 = vunpack.c.l.b16 %v3617
      %v3718 = vunpack.c.l.b16 %v3618
      %v3719 = vunpack.c.l.b16 %v3619
      %v3720 = vunpack.c.l.b16 %v3620
      %v3721 = vunpack.c.l.b16 %v3621
      %v3722 = vunpack.c.l.b16 %v3622
      %v3723 = vunpack.c.l.b16 %v3623
      %v3724 = vunpack.c.l.b16 %v3624
      %v3725 = vunpack.c.l.b16 %v3625
      %v3726 = vunpack.c.l.b16 %v3626
      %v3727 = vunpack.c.l.b16 %v3627
      %v3728 = vunpack.c.l.b16 %v3628
      %v3729 = vunpack.c.l.b16 %v3629
      %v3730 = vunpack.c.l.b16 %v3630
      %v3731 = vunpack.c.l.b16 %v3631
      %v3732 = vunpack.c.l.b16 %v3632
      %v3733 = vunpack.c.l.b16 %v3633
      %v3734 = vunpack.c.l.b16 %v3634
      %v3735 = vunpack.c.l.b16 %v3635
      %v3736 = vunpack.c.l.b16 %v3636
      %v3737 = vunpack.c.l.b16 %v3637
      %v3738 = vunpack.c.l.b16 %v3638
      %v3739 = vunpack.c.l.b16 %v3639
      %v3740 = vunpack.c.l.b16 %v3640
      %v3741 = vunpack.c.l.b16 %v3641
      %v3742 = vunpack.c.l.b16 %v3642
      %v3743 = vunpack.c.l.b16 %v3643
      %v3744 = vunpack.c.l.b16 %v3644
      %v3745 = vunpack.c.l.b16 %v3645
      %v3746 = vunpack.c.l.b16 %v3646
      %v3747 = vunpack.c.l.b16 %v3647
      %v3748 = vunpack.c.l.b16 %v3648
      %v3749 = vunpack.c.l.b16 %v3649
      %v3750 = vunpack.c.l.b16 %v3650
      %v3751 = vunpack.c.l.b16 %v3651
      %v3752 = vpack.c.b16 %v3704, %v3703
      %v3753 = vpack.c.b16 %v3706, %v3705
      %v3754 = vpack.c.b16 %v3708, %v3707
      %v3755 = vpack.c.b16 %v3710, %v3709
      %v3756 = vpack.c.b16 %v3712, %v3711
      %v3757 = vpack.c.b16 %v3714, %v3713
      %v3758 = vpack.c.b16 %v3716, %v3715
      %v3759 = vpack.c.b16 %v3718, %v3717
      %v3760 = vpack.c.b16 %v3720, %v3719
      %v3761 = vpack.c.b16 %v3722, %v3721
      %v3762 = vpack.c.b16 %v3724, %v3723
      %v3763 = vpack.c.b16 %v3726, %v3725
      %v3764 = vpack.c.b16 %v3728, %v3727
      %v3765 = vpack.c.b16 %v3730, %v3729
      %v3766 = vpack.c.b16 %v3732, %v3731
      %v3767 = vpack.c.b16 %v3734, %v3733
      %v3768 = vpack.c.b16 %v3736, %v3735
      %v3769 = vpack.c.b16 %v3738, %v3737
      %v3770 = vpack.c.b16 %v3740, %v3739
      %v3771 = vpack.c.b16 %v3742, %v3741
      %v3772 = vpack.c.b16 %v3744, %v3743
      %v3773 = vpack.c.b16 %v3746, %v3745
      %v3774 = vpack.c.b16 %v3748, %v3747
      %v3775 = vpack.c.b16 %v3750, %v3749
      %v3776 = vpack.c.b16 %v3751, %v3751
      %v3778 = vshrl.u32 %v3752, 16
      %v3780 = vshll.u32 %v3752, 16
      %v3782 = vrot.slane %v3780, 1
      %v3783 = vor.u32 %v3778, %v3782
      %v3785 = vshll.u32 %v3753, 16
      %v3787 = vrot.slane %v3785, 1
      %v3788 = vsel %vm2034, %v3783, %v3787
      %v3789 = vshrl.u32 %v3753, 16
      %v3791 = vor.u32 %v3789, %v3787
      %v3793 = vshll.u32 %v3754, 16
      %v3795 = vrot.slane %v3793, 1
      %v3796 = vsel %vm2034, %v3791, %v3795
      %v3797 = vshrl.u32 %v3754, 16
      %v3799 = vor.u32 %v3797, %v3795
      %v3801 = vshll.u32 %v3755, 16
      %v3803 = vrot.slane %v3801, 1
      %v3804 = vsel %vm2034, %v3799, %v3803
      %v3805 = vshrl.u32 %v3755, 16
      %v3807 = vor.u32 %v3805, %v3803
      %v3809 = vshll.u32 %v3756, 16
      %v3811 = vrot.slane %v3809, 1
      %v3812 = vsel %vm2034, %v3807, %v3811
      %v3813 = vshrl.u32 %v3756, 16
      %v3815 = vor.u32 %v3813, %v3811
      %v3817 = vshll.u32 %v3757, 16
      %v3819 = vrot.slane %v3817, 1
      %v3820 = vsel %vm2034, %v3815, %v3819
      %v3821 = vshrl.u32 %v3757, 16
      %v3823 = vor.u32 %v3821, %v3819
      %v3825 = vshll.u32 %v3758, 16
      %v3827 = vrot.slane %v3825, 1
      %v3828 = vsel %vm2034, %v3823, %v3827
      %v3829 = vshrl.u32 %v3758, 16
      %v3831 = vor.u32 %v3829, %v3827
      %v3833 = vshll.u32 %v3759, 16
      %v3835 = vrot.slane %v3833, 1
      %v3836 = vsel %vm2034, %v3831, %v3835
      %v3837 = vshrl.u32 %v3759, 16
      %v3839 = vor.u32 %v3837, %v3835
      %v3841 = vshll.u32 %v3760, 16
      %v3843 = vrot.slane %v3841, 1
      %v3844 = vsel %vm2034, %v3839, %v3843
      %v3845 = vshrl.u32 %v3760, 16
      %v3847 = vor.u32 %v3845, %v3843
      %v3849 = vshll.u32 %v3761, 16
      %v3851 = vrot.slane %v3849, 1
      %v3852 = vsel %vm2034, %v3847, %v3851
      %v3853 = vshrl.u32 %v3761, 16
      %v3855 = vor.u32 %v3853, %v3851
      %v3857 = vshll.u32 %v3762, 16
      %v3859 = vrot.slane %v3857, 1
      %v3860 = vsel %vm2034, %v3855, %v3859
      %v3861 = vshrl.u32 %v3762, 16
      %v3863 = vor.u32 %v3861, %v3859
      %v3865 = vshll.u32 %v3763, 16
      %v3867 = vrot.slane %v3865, 1
      %v3868 = vsel %vm2034, %v3863, %v3867
      %v3869 = vshrl.u32 %v3763, 16
      %v3871 = vor.u32 %v3869, %v3867
      %v3873 = vshll.u32 %v3764, 16
      %v3875 = vrot.slane %v3873, 1
      %v3876 = vsel %vm2034, %v3871, %v3875
      %v3877 = vshrl.u32 %v3764, 16
      %v3879 = vor.u32 %v3877, %v3875
      %v3881 = vshll.u32 %v3765, 16
      %v3883 = vrot.slane %v3881, 1
      %v3884 = vsel %vm2034, %v3879, %v3883
      %v3885 = vshrl.u32 %v3765, 16
      %v3887 = vor.u32 %v3885, %v3883
      %v3889 = vshll.u32 %v3766, 16
      %v3891 = vrot.slane %v3889, 1
      %v3892 = vsel %vm2034, %v3887, %v3891
      %v3893 = vshrl.u32 %v3766, 16
      %v3895 = vor.u32 %v3893, %v3891
      %v3897 = vshll.u32 %v3767, 16
      %v3899 = vrot.slane %v3897, 1
      %v3900 = vsel %vm2034, %v3895, %v3899
      %v3901 = vshrl.u32 %v3767, 16
      %v3903 = vor.u32 %v3901, %v3899
      %v3905 = vshll.u32 %v3768, 16
      %v3907 = vrot.slane %v3905, 1
      %v3908 = vsel %vm2034, %v3903, %v3907
      %v3909 = vshrl.u32 %v3768, 16
      %v3911 = vor.u32 %v3909, %v3907
      %v3913 = vshll.u32 %v3769, 16
      %v3915 = vrot.slane %v3913, 1
      %v3916 = vsel %vm2034, %v3911, %v3915
      %v3917 = vshrl.u32 %v3769, 16
      %v3919 = vor.u32 %v3917, %v3915
      %v3921 = vshll.u32 %v3770, 16
      %v3923 = vrot.slane %v3921, 1
      %v3924 = vsel %vm2034, %v3919, %v3923
      %v3925 = vshrl.u32 %v3770, 16
      %v3927 = vor.u32 %v3925, %v3923
      %v3929 = vshll.u32 %v3771, 16
      %v3931 = vrot.slane %v3929, 1
      %v3932 = vsel %vm2034, %v3927, %v3931
      %v3933 = vshrl.u32 %v3771, 16
      %v3935 = vor.u32 %v3933, %v3931
      %v3937 = vshll.u32 %v3772, 16
      %v3939 = vrot.slane %v3937, 1
      %v3940 = vsel %vm2034, %v3935, %v3939
      %v3941 = vshrl.u32 %v3772, 16
      %v3943 = vor.u32 %v3941, %v3939
      %v3945 = vshll.u32 %v3773, 16
      %v3947 = vrot.slane %v3945, 1
      %v3948 = vsel %vm2034, %v3943, %v3947
      %v3949 = vshrl.u32 %v3773, 16
      %v3951 = vor.u32 %v3949, %v3947
      %v3953 = vshll.u32 %v3774, 16
      %v3955 = vrot.slane %v3953, 1
      %v3956 = vsel %vm2034, %v3951, %v3955
      %v3957 = vshrl.u32 %v3774, 16
      %v3959 = vor.u32 %v3957, %v3955
      %v3961 = vshll.u32 %v3775, 16
      %v3963 = vrot.slane %v3961, 1
      %v3964 = vsel %vm2034, %v3959, %v3963
      %v3965 = vshrl.u32 %v3775, 16
      %v3967 = vor.u32 %v3965, %v3963
      %v3969 = vshll.u32 %v3776, 16
      %v3971 = vrot.slane %v3969, 1
      %v3972 = vsel %vm2034, %v3967, %v3971
      %v3974 = vsel %vm1038, %v3788, 0
      %v3977 = vsel %vm1038, %v3796, 0
      %v3980 = vsel %vm1038, %v3804, 0
      %v3983 = vsel %vm1038, %v3812, 0
      %v3986 = vsel %vm1038, %v3820, 0
      %v3989 = vsel %vm1038, %v3828, 0
      %v3992 = vsel %vm1038, %v3836, 0
      %v3995 = vsel %vm1038, %v3844, 0
      %v3998 = vsel %vm1038, %v3852, 0
      %v4001 = vsel %vm1038, %v3860, 0
      %v4004 = vsel %vm1038, %v3868, 0
      %v4007 = vsel %vm1038, %v3876, 0
      %v4010 = vsel %vm1038, %v3884, 0
      %v4013 = vsel %vm1038, %v3892, 0
      %v4016 = vsel %vm1038, %v3900, 0
      %v4019 = vsel %vm1038, %v3908, 0
      %v4022 = vsel %vm1038, %v3916, 0
      %v4025 = vsel %vm1038, %v3924, 0
      %v4028 = vsel %vm1038, %v3932, 0
      %v4031 = vsel %vm1038, %v3940, 0
      %v4034 = vsel %vm1038, %v3948, 0
      %v4037 = vsel %vm1038, %v3956, 0
      %v4040 = vsel %vm1038, %v3964, 0
      %v4043 = vsel %vm1038, %v3972, 0
      %v4046 = vsel %vm1111, %v3653, 0
      %4048 = vmatprep.subr.bf16.mxu0 0
      %4049 = vmatpush1.bf16.msra.mxu0 0
      %4050 = vmatprep.subr.bf16.mxu0 0
      %4051 = vmatpush1.bf16.msra.mxu0 0
      %4052 = vmatprep.subr.bf16.mxu0 0
      %4053 = vmatpush1.bf16.msra.mxu0 0
      %4054 = vmatprep.subr.bf16.mxu0 0
      %4055 = vmatpush1.bf16.msra.mxu0 0
      %4056 = vmatprep.subr.bf16.mxu0 0
      %4057 = vmatpush1.bf16.msra.mxu0 0
      %4058 = vmatprep.subr.bf16.mxu0 0
      %4059 = vmatpush1.bf16.msra.mxu0 0
      %4060 = vmatprep.subr.bf16.mxu0 0
      %4061 = vmatpush1.bf16.msra.mxu0 0
      %4062 = vmatprep.subr.bf16.mxu0 0
      %4063 = vmatpush1.bf16.msra.mxu0 %v4046
      %4064 = vmatprep.subr.bf16.mxu0 0
      %4065 = vmatpush2.bf16.msra.mxu0 0
      %4066 = vmatprep.subr.bf16.mxu0 0
      %4067 = vmatpush2.bf16.msra.mxu0 0
      %4068 = vmatprep.subr.bf16.mxu0 0
      %4069 = vmatpush2.bf16.msra.mxu0 0
      %4070 = vmatprep.subr.bf16.mxu0 0
      %4071 = vmatpush2.bf16.msra.mxu0 0
      %4072 = vmatprep.subr.bf16.mxu0 0
      %4073 = vmatpush2.bf16.msra.mxu0 0
      %4074 = vmatprep.subr.bf16.mxu0 0
      %4075 = vmatpush2.bf16.msra.mxu0 0
      %4076 = vmatprep.subr.bf16.mxu0 0
      %4077 = vmatpush2.bf16.msra.mxu0 0
      %4078 = vmatprep.subr.bf16.mxu0 0
      %4079 = vmatpush2.bf16.msra.mxu0 0
      %4080 = vmatprep.mubr.bf16.mxu0 0
      %4081 = vmatmul.mubr.bf16.gmra.mxu0 %v3974
      %v4082 = vpop.f32.mrf.mxu0
      %v4083 = vadd.f32 0.0, %v4082
      %v4084 = vpop.f32.mrf.mxu0
      %v4085 = vpop.f32.mrf.mxu0
      %v4086 = vadd.f32 0.0, %v4085
      %v4087 = vpop.f32.mrf.mxu0
      %4088 = vmatprep.mubr.bf16.mxu0 0
      %4089 = vmatmul.mubr.bf16.gmra.mxu0 %v3977
      %v4090 = vpop.f32.mrf.mxu0
      %v4091 = vpop.f32.mrf.mxu0
      %v4092 = vpop.f32.mrf.mxu0
      %v4093 = vadd.f32 0.0, %v4092
      %v4094 = vpop.f32.mrf.mxu0
      %4095 = vmatprep.mubr.bf16.mxu0 0
      %4096 = vmatmul.mubr.bf16.gmra.mxu0 %v3980
      %v4097 = vpop.f32.mrf.mxu0
      %v4098 = vadd.f32 0.0, %v4097
      %v4099 = vpop.f32.mrf.mxu0
      %v4100 = vpop.f32.mrf.mxu0
      %v4101 = vpop.f32.mrf.mxu0
      %4102 = vmatprep.mubr.bf16.mxu0 0
      %4103 = vmatmul.mubr.bf16.gmra.mxu0 %v3983
      %v4104 = vpop.f32.mrf.mxu0
      %v4105 = vadd.f32 0.0, %v4104
      %v4106 = vpop.f32.mrf.mxu0
      %v4107 = vpop.f32.mrf.mxu0
      %v4108 = vadd.f32 0.0, %v4107
      %v4109 = vpop.f32.mrf.mxu0
      %4110 = vmatprep.mubr.bf16.mxu0 0
      %4111 = vmatmul.mubr.bf16.gmra.mxu0 %v3986
      %v4112 = vpop.f32.mrf.mxu0
      %v4113 = vpop.f32.mrf.mxu0
      %v4114 = vpop.f32.mrf.mxu0
      %v4115 = vadd.f32 0.0, %v4114
      %v4116 = vpop.f32.mrf.mxu0
      %4117 = vmatprep.mubr.bf16.mxu0 0
      %4118 = vmatmul.mubr.bf16.gmra.mxu0 %v3989
      %v4119 = vpop.f32.mrf.mxu0
      %v4120 = vadd.f32 0.0, %v4119
      %v4121 = vpop.f32.mrf.mxu0
      %v4122 = vpop.f32.mrf.mxu0
      %v4123 = vpop.f32.mrf.mxu0
      %4124 = vmatprep.mubr.bf16.mxu0 0
      %4125 = vmatmul.mubr.bf16.gmra.mxu0 %v3992
      %v4126 = vpop.f32.mrf.mxu0
      %v4127 = vadd.f32 0.0, %v4126
      %v4128 = vpop.f32.mrf.mxu0
      %v4129 = vpop.f32.mrf.mxu0
      %v4130 = vadd.f32 0.0, %v4129
      %v4131 = vpop.f32.mrf.mxu0
      %4132 = vmatprep.mubr.bf16.mxu0 0
      %4133 = vmatmul.mubr.bf16.gmra.mxu0 %v3995
      %v4134 = vpop.f32.mrf.mxu0
      %v4135 = vpop.f32.mrf.mxu0
      %v4136 = vpop.f32.mrf.mxu0
      %v4137 = vadd.f32 0.0, %v4136
      %v4138 = vpop.f32.mrf.mxu0
      %4139 = vmatprep.mubr.bf16.mxu0 0
      %4140 = vmatmul.mubr.bf16.gmra.mxu0 %v3998
      %v4141 = vpop.f32.mrf.mxu0
      %v4142 = vadd.f32 0.0, %v4141
      %v4143 = vpop.f32.mrf.mxu0
      %v4144 = vpop.f32.mrf.mxu0
      %v4145 = vpop.f32.mrf.mxu0
      %4146 = vmatprep.mubr.bf16.mxu0 0
      %4147 = vmatmul.mubr.bf16.gmra.mxu0 %v4001
      %v4148 = vpop.f32.mrf.mxu0
      %v4149 = vadd.f32 0.0, %v4148
      %v4150 = vpop.f32.mrf.mxu0
      %v4151 = vpop.f32.mrf.mxu0
      %v4152 = vadd.f32 0.0, %v4151
      %v4153 = vpop.f32.mrf.mxu0
      %4154 = vmatprep.mubr.bf16.mxu0 0
      %4155 = vmatmul.mubr.bf16.gmra.mxu0 %v4004
      %v4156 = vpop.f32.mrf.mxu0
      %v4157 = vpop.f32.mrf.mxu0
      %v4158 = vpop.f32.mrf.mxu0
      %v4159 = vadd.f32 0.0, %v4158
      %v4160 = vpop.f32.mrf.mxu0
      %4161 = vmatprep.mubr.bf16.mxu0 0
      %4162 = vmatmul.mubr.bf16.gmra.mxu0 %v4007
      %v4163 = vpop.f32.mrf.mxu0
      %v4164 = vadd.f32 0.0, %v4163
      %v4165 = vpop.f32.mrf.mxu0
      %v4166 = vpop.f32.mrf.mxu0
      %v4167 = vpop.f32.mrf.mxu0
      %4168 = vmatprep.mubr.bf16.mxu0 0
      %4169 = vmatmul.mubr.bf16.gmra.mxu0 %v4010
      %v4170 = vpop.f32.mrf.mxu0
      %v4171 = vadd.f32 0.0, %v4170
      %v4172 = vpop.f32.mrf.mxu0
      %v4173 = vpop.f32.mrf.mxu0
      %v4174 = vadd.f32 0.0, %v4173
      %v4175 = vpop.f32.mrf.mxu0
      %4176 = vmatprep.mubr.bf16.mxu0 0
      %4177 = vmatmul.mubr.bf16.gmra.mxu0 %v4013
      %v4178 = vpop.f32.mrf.mxu0
      %v4179 = vpop.f32.mrf.mxu0
      %v4180 = vpop.f32.mrf.mxu0
      %v4181 = vadd.f32 0.0, %v4180
      %v4182 = vpop.f32.mrf.mxu0
      %4183 = vmatprep.mubr.bf16.mxu0 0
      %4184 = vmatmul.mubr.bf16.gmra.mxu0 %v4016
      %v4185 = vpop.f32.mrf.mxu0
      %v4186 = vadd.f32 0.0, %v4185
      %v4187 = vpop.f32.mrf.mxu0
      %v4188 = vpop.f32.mrf.mxu0
      %v4189 = vpop.f32.mrf.mxu0
      %4190 = vmatprep.mubr.bf16.mxu0 0
      %4191 = vmatmul.mubr.bf16.gmra.mxu0 %v4019
      %v4192 = vpop.f32.mrf.mxu0
      %v4193 = vadd.f32 0.0, %v4192
      %v4194 = vpop.f32.mrf.mxu0
      %v4195 = vpop.f32.mrf.mxu0
      %v4196 = vadd.f32 0.0, %v4195
      %v4197 = vpop.f32.mrf.mxu0
      %4198 = vmatprep.mubr.bf16.mxu0 0
      %4199 = vmatmul.mubr.bf16.gmra.mxu0 %v4022
      %v4200 = vpop.f32.mrf.mxu0
      %v4201 = vpop.f32.mrf.mxu0
      %v4202 = vpop.f32.mrf.mxu0
      %v4203 = vadd.f32 0.0, %v4202
      %v4204 = vpop.f32.mrf.mxu0
      %4205 = vmatprep.mubr.bf16.mxu0 0
      %4206 = vmatmul.mubr.bf16.gmra.mxu0 %v4025
      %v4207 = vpop.f32.mrf.mxu0
      %v4208 = vadd.f32 0.0, %v4207
      %v4209 = vpop.f32.mrf.mxu0
      %v4210 = vpop.f32.mrf.mxu0
      %v4211 = vpop.f32.mrf.mxu0
      %4212 = vmatprep.mubr.bf16.mxu0 0
      %4213 = vmatmul.mubr.bf16.gmra.mxu0 %v4028
      %v4214 = vpop.f32.mrf.mxu0
      %v4215 = vadd.f32 0.0, %v4214
      %v4216 = vpop.f32.mrf.mxu0
      %v4217 = vpop.f32.mrf.mxu0
      %v4218 = vadd.f32 0.0, %v4217
      %v4219 = vpop.f32.mrf.mxu0
      %4220 = vmatprep.mubr.bf16.mxu0 0
      %4221 = vmatmul.mubr.bf16.gmra.mxu0 %v4031
      %v4222 = vpop.f32.mrf.mxu0
      %v4223 = vpop.f32.mrf.mxu0
      %v4224 = vpop.f32.mrf.mxu0
      %v4225 = vadd.f32 0.0, %v4224
      %v4226 = vpop.f32.mrf.mxu0
      %4227 = vmatprep.mubr.bf16.mxu0 0
      %4228 = vmatmul.mubr.bf16.gmra.mxu0 %v4034
      %v4229 = vpop.f32.mrf.mxu0
      %v4230 = vadd.f32 0.0, %v4229
      %v4231 = vpop.f32.mrf.mxu0
      %v4232 = vpop.f32.mrf.mxu0
      %v4233 = vpop.f32.mrf.mxu0
      %4234 = vmatprep.mubr.bf16.mxu0 0
      %4235 = vmatmul.mubr.bf16.gmra.mxu0 %v4037
      %v4236 = vpop.f32.mrf.mxu0
      %v4237 = vadd.f32 0.0, %v4236
      %v4238 = vpop.f32.mrf.mxu0
      %v4239 = vpop.f32.mrf.mxu0
      %v4240 = vadd.f32 0.0, %v4239
      %v4241 = vpop.f32.mrf.mxu0
      %4242 = vmatprep.mubr.bf16.mxu0 0
      %4243 = vmatmul.mubr.bf16.gmra.mxu0 %v4040
      %v4244 = vpop.f32.mrf.mxu0
      %v4245 = vpop.f32.mrf.mxu0
      %v4246 = vpop.f32.mrf.mxu0
      %v4247 = vadd.f32 0.0, %v4246
      %v4248 = vpop.f32.mrf.mxu0
      %4249 = vmatprep.mubr.bf16.mxu0 0
      %4250 = vmatmul.mubr.bf16.gmra.mxu0 %v4043
      %v4251 = vpop.f32.mrf.mxu0
      %v4252 = vadd.f32 0.0, %v4251
      %v4253 = vpop.f32.mrf.mxu0
      %v4254 = vpop.f32.mrf.mxu0
      %v4255 = vpop.f32.mrf.mxu0
      %4256 = vdwg.mxu0
      %v4257 = vadd.f32 %v3571, %v4083
      %v4258 = vadd.f32 %v3572, %v4086
      %v4259 = vadd.f32 %v3573, %v4093
      %v4260 = vadd.f32 %v3574, %v4098
      %v4261 = vadd.f32 %v3575, %v4105
      %v4262 = vadd.f32 %v3576, %v4108
      %v4263 = vadd.f32 %v3577, %v4115
      %v4264 = vadd.f32 %v3578, %v4120
      %v4265 = vadd.f32 %v3579, %v4127
      %v4266 = vadd.f32 %v3580, %v4130
      %v4267 = vadd.f32 %v3581, %v4137
      %v4268 = vadd.f32 %v3582, %v4142
      %v4269 = vadd.f32 %v3583, %v4149
      %v4270 = vadd.f32 %v3584, %v4152
      %v4271 = vadd.f32 %v3585, %v4159
      %v4272 = vadd.f32 %v3586, %v4164
      %v4273 = vadd.f32 %v3587, %v4171
      %v4274 = vadd.f32 %v3588, %v4174
      %v4275 = vadd.f32 %v3589, %v4181
      %v4276 = vadd.f32 %v3590, %v4186
      %v4277 = vadd.f32 %v3591, %v4193
      %v4278 = vadd.f32 %v3592, %v4196
      %v4279 = vadd.f32 %v3593, %v4203
      %v4280 = vadd.f32 %v3594, %v4208
      %v4281 = vadd.f32 %v3595, %v4215
      %v4282 = vadd.f32 %v3596, %v4218
      %v4283 = vadd.f32 %v3597, %v4225
      %v4284 = vadd.f32 %v3598, %v4230
      %v4285 = vadd.f32 %v3599, %v4237
      %v4286 = vadd.f32 %v3600, %v4240
      %v4287 = vadd.f32 %v3601, %v4247
      %v4288 = vadd.f32 %v3602, %v4252
      %v4289 = vld [vmem:[#allocation2 + $0x18] sm:$0x8]
      %v4290 = vld [vmem:[#allocation2 + $0x1c] sm:$0xf]
      %v4291 = vld [vmem:[#allocation2 + $0x20] sm:$0xf]
      %v4292 = vld [vmem:[#allocation2 + $0x24] sm:$0xf]
      %v4293 = vld [vmem:[#allocation2 + $0x28] sm:$0xf]
      %v4294 = vld [vmem:[#allocation2 + $0x2c] sm:$0xf]
      %v4295 = vld [vmem:[#allocation2 + $0x30] sm:$0xf]
      %v4296 = vld [vmem:[#allocation2 + $0x34] sm:$0xf]
      %v4297 = vld [vmem:[#allocation2 + $0x38] sm:$0xf]
      %v4298 = vld [vmem:[#allocation2 + $0x3c] sm:$0xf]
      %v4299 = vld [vmem:[#allocation2 + $0x40] sm:$0xf]
      %v4300 = vld [vmem:[#allocation2 + $0x44] sm:$0xf]
      %v4301 = vld [vmem:[#allocation2 + $0x48] sm:$0xf]
      %v4302 = vld [vmem:[#allocation2 + $0x4c] sm:$0xf]
      %v4303 = vld [vmem:[#allocation2 + $0x50] sm:$0xf]
      %v4304 = vld [vmem:[#allocation2 + $0x54] sm:$0xf]
      %v4305 = vld [vmem:[#allocation2 + $0x58] sm:$0xf]
      %v4306 = vld [vmem:[#allocation2 + $0x5c] sm:$0xf]
      %v4307 = vld [vmem:[#allocation2 + $0x60] sm:$0xf]
      %v4308 = vld [vmem:[#allocation2 + $0x64] sm:$0xf]
      %v4309 = vld [vmem:[#allocation2 + $0x68] sm:$0xf]
      %v4310 = vld [vmem:[#allocation2 + $0x6c] sm:$0xf]
      %v4311 = vld [vmem:[#allocation2 + $0x70] sm:$0xf]
      %v4312 = vld [vmem:[#allocation2 + $0x74] sm:$0xf]
      %v4313 = vld [vmem:[#allocation2 + $0x78] sm:$0xf]
      %v4314 = vld [vmem:[#allocation2 + $0x7c] sm:$0xf]
      %v4315 = vld [vmem:[#allocation2 + $0x80] sm:$0xf]
      %v4316 = vld [vmem:[#allocation2 + $0x84] sm:$0xf]
      %v4317 = vld [vmem:[#allocation2 + $0x88] sm:$0xf]
      %v4318 = vld [vmem:[#allocation2 + $0x8c] sm:$0xf]
      %v4319 = vld [vmem:[#allocation2 + $0x90] sm:$0xf]
      %v4320 = vld [vmem:[#allocation2 + $0x94] sm:$0xf]
      %v4321 = vld [vmem:[#allocation2 + $0x98] sm:$0xf]
      %v4322 = vld [vmem:[#allocation2 + $0x9c] sm:$0xf]
      %v4323 = vld [vmem:[#allocation2 + $0xa0] sm:$0xf]
      %v4324 = vld [vmem:[#allocation2 + $0xa4] sm:$0xf]
      %v4325 = vld [vmem:[#allocation2 + $0xa8] sm:$0xf]
      %v4326 = vld [vmem:[#allocation2 + $0xac] sm:$0xf]
      %v4327 = vld [vmem:[#allocation2 + $0xb0] sm:$0xf]
      %v4328 = vld [vmem:[#allocation2 + $0xb4] sm:$0xf]
      %v4329 = vld [vmem:[#allocation2 + $0xb8] sm:$0xf]
      %v4330 = vld [vmem:[#allocation2 + $0xbc] sm:$0xf]
      %v4331 = vld [vmem:[#allocation2 + $0xc0] sm:$0xf]
      %v4332 = vld [vmem:[#allocation2 + $0xc4] sm:$0xf]
      %v4333 = vld [vmem:[#allocation2 + $0xc8] sm:$0xf]
      %v4334 = vld [vmem:[#allocation2 + $0xcc] sm:$0xf]
      %v4335 = vld [vmem:[#allocation2 + $0xd0] sm:$0xf]
      %v4336 = vld [vmem:[#allocation2 + $0xd4] sm:$0xf]
      %v4337 = vld [vmem:[#allocation2 + $0xd8] sm:$0xf]
      %s4338 = scalar_lea.vmem %s3, 12
      %v4339 = vld [vmem:[%s4338] sm:$0x3]
      %v4389 = vunpack.c.l.b16 %v4289
      %v4390 = vunpack.c.l.b16 %v4290
      %v4391 = vunpack.c.l.b16 %v4291
      %v4392 = vunpack.c.l.b16 %v4292
      %v4393 = vunpack.c.l.b16 %v4293
      %v4394 = vunpack.c.l.b16 %v4294
      %v4395 = vunpack.c.l.b16 %v4295
      %v4396 = vunpack.c.l.b16 %v4296
      %v4397 = vunpack.c.l.b16 %v4297
      %v4398 = vunpack.c.l.b16 %v4298
      %v4399 = vunpack.c.l.b16 %v4299
      %v4400 = vunpack.c.l.b16 %v4300
      %v4401 = vunpack.c.l.b16 %v4301
      %v4402 = vunpack.c.l.b16 %v4302
      %v4403 = vunpack.c.l.b16 %v4303
      %v4404 = vunpack.c.l.b16 %v4304
      %v4405 = vunpack.c.l.b16 %v4305
      %v4406 = vunpack.c.l.b16 %v4306
      %v4407 = vunpack.c.l.b16 %v4307
      %v4408 = vunpack.c.l.b16 %v4308
      %v4409 = vunpack.c.l.b16 %v4309
      %v4410 = vunpack.c.l.b16 %v4310
      %v4411 = vunpack.c.l.b16 %v4311
      %v4412 = vunpack.c.l.b16 %v4312
      %v4413 = vunpack.c.l.b16 %v4313
      %v4414 = vunpack.c.l.b16 %v4314
      %v4415 = vunpack.c.l.b16 %v4315
      %v4416 = vunpack.c.l.b16 %v4316
      %v4417 = vunpack.c.l.b16 %v4317
      %v4418 = vunpack.c.l.b16 %v4318
      %v4419 = vunpack.c.l.b16 %v4319
      %v4420 = vunpack.c.l.b16 %v4320
      %v4421 = vunpack.c.l.b16 %v4321
      %v4422 = vunpack.c.l.b16 %v4322
      %v4423 = vunpack.c.l.b16 %v4323
      %v4424 = vunpack.c.l.b16 %v4324
      %v4425 = vunpack.c.l.b16 %v4325
      %v4426 = vunpack.c.l.b16 %v4326
      %v4427 = vunpack.c.l.b16 %v4327
      %v4428 = vunpack.c.l.b16 %v4328
      %v4429 = vunpack.c.l.b16 %v4329
      %v4430 = vunpack.c.l.b16 %v4330
      %v4431 = vunpack.c.l.b16 %v4331
      %v4432 = vunpack.c.l.b16 %v4332
      %v4433 = vunpack.c.l.b16 %v4333
      %v4434 = vunpack.c.l.b16 %v4334
      %v4435 = vunpack.c.l.b16 %v4335
      %v4436 = vunpack.c.l.b16 %v4336
      %v4437 = vunpack.c.l.b16 %v4337
      %v4438 = vpack.c.b16 %v4390, %v4389
      %v4439 = vpack.c.b16 %v4392, %v4391
      %v4440 = vpack.c.b16 %v4394, %v4393
      %v4441 = vpack.c.b16 %v4396, %v4395
      %v4442 = vpack.c.b16 %v4398, %v4397
      %v4443 = vpack.c.b16 %v4400, %v4399
      %v4444 = vpack.c.b16 %v4402, %v4401
      %v4445 = vpack.c.b16 %v4404, %v4403
      %v4446 = vpack.c.b16 %v4406, %v4405
      %v4447 = vpack.c.b16 %v4408, %v4407
      %v4448 = vpack.c.b16 %v4410, %v4409
      %v4449 = vpack.c.b16 %v4412, %v4411
      %v4450 = vpack.c.b16 %v4414, %v4413
      %v4451 = vpack.c.b16 %v4416, %v4415
      %v4452 = vpack.c.b16 %v4418, %v4417
      %v4453 = vpack.c.b16 %v4420, %v4419
      %v4454 = vpack.c.b16 %v4422, %v4421
      %v4455 = vpack.c.b16 %v4424, %v4423
      %v4456 = vpack.c.b16 %v4426, %v4425
      %v4457 = vpack.c.b16 %v4428, %v4427
      %v4458 = vpack.c.b16 %v4430, %v4429
      %v4459 = vpack.c.b16 %v4432, %v4431
      %v4460 = vpack.c.b16 %v4434, %v4433
      %v4461 = vpack.c.b16 %v4436, %v4435
      %v4462 = vpack.c.b16 %v4437, %v4437
      %v4464 = vshrl.u32 %v4438, 16
      %v4466 = vrot.slane %v4464, 3
      %v4467 = vshll.u32 %v4438, 16
      %v4469 = vrot.slane %v4467, 4
      %v4470 = vor.u32 %v4466, %v4469
      %v4472 = vshrl.u32 %v4439, 16
      %v4474 = vrot.slane %v4472, 3
      %v4475 = vshll.u32 %v4439, 16
      %v4477 = vrot.slane %v4475, 4
      %v4478 = vor.u32 %v4474, %v4477
      %v4479 = vsel %vm1351, %v4470, %v4478
      %v4481 = vshrl.u32 %v4440, 16
      %v4483 = vrot.slane %v4481, 3
      %v4484 = vshll.u32 %v4440, 16
      %v4486 = vrot.slane %v4484, 4
      %v4487 = vor.u32 %v4483, %v4486
      %v4488 = vsel %vm1351, %v4478, %v4487
      %v4490 = vshrl.u32 %v4441, 16
      %v4492 = vrot.slane %v4490, 3
      %v4493 = vshll.u32 %v4441, 16
      %v4495 = vrot.slane %v4493, 4
      %v4496 = vor.u32 %v4492, %v4495
      %v4497 = vsel %vm1351, %v4487, %v4496
      %v4499 = vshrl.u32 %v4442, 16
      %v4501 = vrot.slane %v4499, 3
      %v4502 = vshll.u32 %v4442, 16
      %v4504 = vrot.slane %v4502, 4
      %v4505 = vor.u32 %v4501, %v4504
      %v4506 = vsel %vm1351, %v4496, %v4505
      %v4508 = vshrl.u32 %v4443, 16
      %v4510 = vrot.slane %v4508, 3
      %v4511 = vshll.u32 %v4443, 16
      %v4513 = vrot.slane %v4511, 4
      %v4514 = vor.u32 %v4510, %v4513
      %v4515 = vsel %vm1351, %v4505, %v4514
      %v4517 = vshrl.u32 %v4444, 16
      %v4519 = vrot.slane %v4517, 3
      %v4520 = vshll.u32 %v4444, 16
      %v4522 = vrot.slane %v4520, 4
      %v4523 = vor.u32 %v4519, %v4522
      %v4524 = vsel %vm1351, %v4514, %v4523
      %v4526 = vshrl.u32 %v4445, 16
      %v4528 = vrot.slane %v4526, 3
      %v4529 = vshll.u32 %v4445, 16
      %v4531 = vrot.slane %v4529, 4
      %v4532 = vor.u32 %v4528, %v4531
      %v4533 = vsel %vm1351, %v4523, %v4532
      %v4535 = vshrl.u32 %v4446, 16
      %v4537 = vrot.slane %v4535, 3
      %v4538 = vshll.u32 %v4446, 16
      %v4540 = vrot.slane %v4538, 4
      %v4541 = vor.u32 %v4537, %v4540
      %v4542 = vsel %vm1351, %v4532, %v4541
      %v4544 = vshrl.u32 %v4447, 16
      %v4546 = vrot.slane %v4544, 3
      %v4547 = vshll.u32 %v4447, 16
      %v4549 = vrot.slane %v4547, 4
      %v4550 = vor.u32 %v4546, %v4549
      %v4551 = vsel %vm1351, %v4541, %v4550
      %v4553 = vshrl.u32 %v4448, 16
      %v4555 = vrot.slane %v4553, 3
      %v4556 = vshll.u32 %v4448, 16
      %v4558 = vrot.slane %v4556, 4
      %v4559 = vor.u32 %v4555, %v4558
      %v4560 = vsel %vm1351, %v4550, %v4559
      %v4562 = vshrl.u32 %v4449, 16
      %v4564 = vrot.slane %v4562, 3
      %v4565 = vshll.u32 %v4449, 16
      %v4567 = vrot.slane %v4565, 4
      %v4568 = vor.u32 %v4564, %v4567
      %v4569 = vsel %vm1351, %v4559, %v4568
      %v4571 = vshrl.u32 %v4450, 16
      %v4573 = vrot.slane %v4571, 3
      %v4574 = vshll.u32 %v4450, 16
      %v4576 = vrot.slane %v4574, 4
      %v4577 = vor.u32 %v4573, %v4576
      %v4578 = vsel %vm1351, %v4568, %v4577
      %v4580 = vshrl.u32 %v4451, 16
      %v4582 = vrot.slane %v4580, 3
      %v4583 = vshll.u32 %v4451, 16
      %v4585 = vrot.slane %v4583, 4
      %v4586 = vor.u32 %v4582, %v4585
      %v4587 = vsel %vm1351, %v4577, %v4586
      %v4589 = vshrl.u32 %v4452, 16
      %v4591 = vrot.slane %v4589, 3
      %v4592 = vshll.u32 %v4452, 16
      %v4594 = vrot.slane %v4592, 4
      %v4595 = vor.u32 %v4591, %v4594
      %v4596 = vsel %vm1351, %v4586, %v4595
      %v4598 = vshrl.u32 %v4453, 16
      %v4600 = vrot.slane %v4598, 3
      %v4601 = vshll.u32 %v4453, 16
      %v4603 = vrot.slane %v4601, 4
      %v4604 = vor.u32 %v4600, %v4603
      %v4605 = vsel %vm1351, %v4595, %v4604
      %v4607 = vshrl.u32 %v4454, 16
      %v4609 = vrot.slane %v4607, 3
      %v4610 = vshll.u32 %v4454, 16
      %v4612 = vrot.slane %v4610, 4
      %v4613 = vor.u32 %v4609, %v4612
      %v4614 = vsel %vm1351, %v4604, %v4613
      %v4616 = vshrl.u32 %v4455, 16
      %v4618 = vrot.slane %v4616, 3
      %v4619 = vshll.u32 %v4455, 16
      %v4621 = vrot.slane %v4619, 4
      %v4622 = vor.u32 %v4618, %v4621
      %v4623 = vsel %vm1351, %v4613, %v4622
      %v4625 = vshrl.u32 %v4456, 16
      %v4627 = vrot.slane %v4625, 3
      %v4628 = vshll.u32 %v4456, 16
      %v4630 = vrot.slane %v4628, 4
      %v4631 = vor.u32 %v4627, %v4630
      %v4632 = vsel %vm1351, %v4622, %v4631
      %v4634 = vshrl.u32 %v4457, 16
      %v4636 = vrot.slane %v4634, 3
      %v4637 = vshll.u32 %v4457, 16
      %v4639 = vrot.slane %v4637, 4
      %v4640 = vor.u32 %v4636, %v4639
      %v4641 = vsel %vm1351, %v4631, %v4640
      %v4643 = vshrl.u32 %v4458, 16
      %v4645 = vrot.slane %v4643, 3
      %v4646 = vshll.u32 %v4458, 16
      %v4648 = vrot.slane %v4646, 4
      %v4649 = vor.u32 %v4645, %v4648
      %v4650 = vsel %vm1351, %v4640, %v4649
      %v4652 = vshrl.u32 %v4459, 16
      %v4654 = vrot.slane %v4652, 3
      %v4655 = vshll.u32 %v4459, 16
      %v4657 = vrot.slane %v4655, 4
      %v4658 = vor.u32 %v4654, %v4657
      %v4659 = vsel %vm1351, %v4649, %v4658
      %v4661 = vshrl.u32 %v4460, 16
      %v4663 = vrot.slane %v4661, 3
      %v4664 = vshll.u32 %v4460, 16
      %v4666 = vrot.slane %v4664, 4
      %v4667 = vor.u32 %v4663, %v4666
      %v4668 = vsel %vm1351, %v4658, %v4667
      %v4670 = vshrl.u32 %v4461, 16
      %v4672 = vrot.slane %v4670, 3
      %v4673 = vshll.u32 %v4461, 16
      %v4675 = vrot.slane %v4673, 4
      %v4676 = vor.u32 %v4672, %v4675
      %v4677 = vsel %vm1351, %v4667, %v4676
      %v4679 = vshrl.u32 %v4462, 16
      %v4681 = vrot.slane %v4679, 3
      %v4682 = vshll.u32 %v4462, 16
      %v4684 = vrot.slane %v4682, 4
      %v4685 = vor.u32 %v4681, %v4684
      %v4686 = vsel %vm1351, %v4676, %v4685
      %v4688 = vsel %vm1038, %v4479, 0
      %v4691 = vsel %vm1038, %v4488, 0
      %v4694 = vsel %vm1038, %v4497, 0
      %v4697 = vsel %vm1038, %v4506, 0
      %v4700 = vsel %vm1038, %v4515, 0
      %v4703 = vsel %vm1038, %v4524, 0
      %v4706 = vsel %vm1038, %v4533, 0
      %v4709 = vsel %vm1038, %v4542, 0
      %v4712 = vsel %vm1038, %v4551, 0
      %v4715 = vsel %vm1038, %v4560, 0
      %v4718 = vsel %vm1038, %v4569, 0
      %v4721 = vsel %vm1038, %v4578, 0
      %v4724 = vsel %vm1038, %v4587, 0
      %v4727 = vsel %vm1038, %v4596, 0
      %v4730 = vsel %vm1038, %v4605, 0
      %v4733 = vsel %vm1038, %v4614, 0
      %v4736 = vsel %vm1038, %v4623, 0
      %v4739 = vsel %vm1038, %v4632, 0
      %v4742 = vsel %vm1038, %v4641, 0
      %v4745 = vsel %vm1038, %v4650, 0
      %v4748 = vsel %vm1038, %v4659, 0
      %v4751 = vsel %vm1038, %v4668, 0
      %v4754 = vsel %vm1038, %v4677, 0
      %v4757 = vsel %vm1038, %v4686, 0
      %v4760 = vsel %vm1111, %v4339, 0
      %4762 = vmatprep.subr.bf16.mxu0 0
      %4763 = vmatpush1.bf16.msra.mxu0 0
      %4764 = vmatprep.subr.bf16.mxu0 0
      %4765 = vmatpush1.bf16.msra.mxu0 0
      %4766 = vmatprep.subr.bf16.mxu0 0
      %4767 = vmatpush1.bf16.msra.mxu0 0
      %4768 = vmatprep.subr.bf16.mxu0 0
      %4769 = vmatpush1.bf16.msra.mxu0 0
      %4770 = vmatprep.subr.bf16.mxu0 0
      %4771 = vmatpush1.bf16.msra.mxu0 0
      %4772 = vmatprep.subr.bf16.mxu0 0
      %4773 = vmatpush1.bf16.msra.mxu0 0
      %4774 = vmatprep.subr.bf16.mxu0 0
      %4775 = vmatpush1.bf16.msra.mxu0 0
      %4776 = vmatprep.subr.bf16.mxu0 0
      %4777 = vmatpush1.bf16.msra.mxu0 %v4760
      %4778 = vmatprep.subr.bf16.mxu0 0
      %4779 = vmatpush2.bf16.msra.mxu0 0
      %4780 = vmatprep.subr.bf16.mxu0 0
      %4781 = vmatpush2.bf16.msra.mxu0 0
      %4782 = vmatprep.subr.bf16.mxu0 0
      %4783 = vmatpush2.bf16.msra.mxu0 0
      %4784 = vmatprep.subr.bf16.mxu0 0
      %4785 = vmatpush2.bf16.msra.mxu0 0
      %4786 = vmatprep.subr.bf16.mxu0 0
      %4787 = vmatpush2.bf16.msra.mxu0 0
      %4788 = vmatprep.subr.bf16.mxu0 0
      %4789 = vmatpush2.bf16.msra.mxu0 0
      %4790 = vmatprep.subr.bf16.mxu0 0
      %4791 = vmatpush2.bf16.msra.mxu0 0
      %4792 = vmatprep.subr.bf16.mxu0 0
      %4793 = vmatpush2.bf16.msra.mxu0 0
      %4794 = vmatprep.mubr.bf16.mxu0 0
      %4795 = vmatmul.mubr.bf16.gmra.mxu0 %v4688
      %v4796 = vpop.f32.mrf.mxu0
      %v4797 = vadd.f32 0.0, %v4796
      %v4798 = vpop.f32.mrf.mxu0
      %v4799 = vpop.f32.mrf.mxu0
      %v4800 = vadd.f32 0.0, %v4799
      %v4801 = vpop.f32.mrf.mxu0
      %4802 = vmatprep.mubr.bf16.mxu0 0
      %4803 = vmatmul.mubr.bf16.gmra.mxu0 %v4691
      %v4804 = vpop.f32.mrf.mxu0
      %v4805 = vpop.f32.mrf.mxu0
      %v4806 = vpop.f32.mrf.mxu0
      %v4807 = vadd.f32 0.0, %v4806
      %v4808 = vpop.f32.mrf.mxu0
      %4809 = vmatprep.mubr.bf16.mxu0 0
      %4810 = vmatmul.mubr.bf16.gmra.mxu0 %v4694
      %v4811 = vpop.f32.mrf.mxu0
      %v4812 = vadd.f32 0.0, %v4811
      %v4813 = vpop.f32.mrf.mxu0
      %v4814 = vpop.f32.mrf.mxu0
      %v4815 = vpop.f32.mrf.mxu0
      %4816 = vmatprep.mubr.bf16.mxu0 0
      %4817 = vmatmul.mubr.bf16.gmra.mxu0 %v4697
      %v4818 = vpop.f32.mrf.mxu0
      %v4819 = vadd.f32 0.0, %v4818
      %v4820 = vpop.f32.mrf.mxu0
      %v4821 = vpop.f32.mrf.mxu0
      %v4822 = vadd.f32 0.0, %v4821
      %v4823 = vpop.f32.mrf.mxu0
      %4824 = vmatprep.mubr.bf16.mxu0 0
      %4825 = vmatmul.mubr.bf16.gmra.mxu0 %v4700
      %v4826 = vpop.f32.mrf.mxu0
      %v4827 = vpop.f32.mrf.mxu0
      %v4828 = vpop.f32.mrf.mxu0
      %v4829 = vadd.f32 0.0, %v4828
      %v4830 = vpop.f32.mrf.mxu0
      %4831 = vmatprep.mubr.bf16.mxu0 0
      %4832 = vmatmul.mubr.bf16.gmra.mxu0 %v4703
      %v4833 = vpop.f32.mrf.mxu0
      %v4834 = vadd.f32 0.0, %v4833
      %v4835 = vpop.f32.mrf.mxu0
      %v4836 = vpop.f32.mrf.mxu0
      %v4837 = vpop.f32.mrf.mxu0
      %4838 = vmatprep.mubr.bf16.mxu0 0
      %4839 = vmatmul.mubr.bf16.gmra.mxu0 %v4706
      %v4840 = vpop.f32.mrf.mxu0
      %v4841 = vadd.f32 0.0, %v4840
      %v4842 = vpop.f32.mrf.mxu0
      %v4843 = vpop.f32.mrf.mxu0
      %v4844 = vadd.f32 0.0, %v4843
      %v4845 = vpop.f32.mrf.mxu0
      %4846 = vmatprep.mubr.bf16.mxu0 0
      %4847 = vmatmul.mubr.bf16.gmra.mxu0 %v4709
      %v4848 = vpop.f32.mrf.mxu0
      %v4849 = vpop.f32.mrf.mxu0
      %v4850 = vpop.f32.mrf.mxu0
      %v4851 = vadd.f32 0.0, %v4850
      %v4852 = vpop.f32.mrf.mxu0
      %4853 = vmatprep.mubr.bf16.mxu0 0
      %4854 = vmatmul.mubr.bf16.gmra.mxu0 %v4712
      %v4855 = vpop.f32.mrf.mxu0
      %v4856 = vadd.f32 0.0, %v4855
      %v4857 = vpop.f32.mrf.mxu0
      %v4858 = vpop.f32.mrf.mxu0
      %v4859 = vpop.f32.mrf.mxu0
      %4860 = vmatprep.mubr.bf16.mxu0 0
      %4861 = vmatmul.mubr.bf16.gmra.mxu0 %v4715
      %v4862 = vpop.f32.mrf.mxu0
      %v4863 = vadd.f32 0.0, %v4862
      %v4864 = vpop.f32.mrf.mxu0
      %v4865 = vpop.f32.mrf.mxu0
      %v4866 = vadd.f32 0.0, %v4865
      %v4867 = vpop.f32.mrf.mxu0
      %4868 = vmatprep.mubr.bf16.mxu0 0
      %4869 = vmatmul.mubr.bf16.gmra.mxu0 %v4718
      %v4870 = vpop.f32.mrf.mxu0
      %v4871 = vpop.f32.mrf.mxu0
      %v4872 = vpop.f32.mrf.mxu0
      %v4873 = vadd.f32 0.0, %v4872
      %v4874 = vpop.f32.mrf.mxu0
      %4875 = vmatprep.mubr.bf16.mxu0 0
      %4876 = vmatmul.mubr.bf16.gmra.mxu0 %v4721
      %v4877 = vpop.f32.mrf.mxu0
      %v4878 = vadd.f32 0.0, %v4877
      %v4879 = vpop.f32.mrf.mxu0
      %v4880 = vpop.f32.mrf.mxu0
      %v4881 = vpop.f32.mrf.mxu0
      %4882 = vmatprep.mubr.bf16.mxu0 0
      %4883 = vmatmul.mubr.bf16.gmra.mxu0 %v4724
      %v4884 = vpop.f32.mrf.mxu0
      %v4885 = vadd.f32 0.0, %v4884
      %v4886 = vpop.f32.mrf.mxu0
      %v4887 = vpop.f32.mrf.mxu0
      %v4888 = vadd.f32 0.0, %v4887
      %v4889 = vpop.f32.mrf.mxu0
      %4890 = vmatprep.mubr.bf16.mxu0 0
      %4891 = vmatmul.mubr.bf16.gmra.mxu0 %v4727
      %v4892 = vpop.f32.mrf.mxu0
      %v4893 = vpop.f32.mrf.mxu0
      %v4894 = vpop.f32.mrf.mxu0
      %v4895 = vadd.f32 0.0, %v4894
      %v4896 = vpop.f32.mrf.mxu0
      %4897 = vmatprep.mubr.bf16.mxu0 0
      %4898 = vmatmul.mubr.bf16.gmra.mxu0 %v4730
      %v4899 = vpop.f32.mrf.mxu0
      %v4900 = vadd.f32 0.0, %v4899
      %v4901 = vpop.f32.mrf.mxu0
      %v4902 = vpop.f32.mrf.mxu0
      %v4903 = vpop.f32.mrf.mxu0
      %4904 = vmatprep.mubr.bf16.mxu0 0
      %4905 = vmatmul.mubr.bf16.gmra.mxu0 %v4733
      %v4906 = vpop.f32.mrf.mxu0
      %v4907 = vadd.f32 0.0, %v4906
      %v4908 = vpop.f32.mrf.mxu0
      %v4909 = vpop.f32.mrf.mxu0
      %v4910 = vadd.f32 0.0, %v4909
      %v4911 = vpop.f32.mrf.mxu0
      %4912 = vmatprep.mubr.bf16.mxu0 0
      %4913 = vmatmul.mubr.bf16.gmra.mxu0 %v4736
      %v4914 = vpop.f32.mrf.mxu0
      %v4915 = vpop.f32.mrf.mxu0
      %v4916 = vpop.f32.mrf.mxu0
      %v4917 = vadd.f32 0.0, %v4916
      %v4918 = vpop.f32.mrf.mxu0
      %4919 = vmatprep.mubr.bf16.mxu0 0
      %4920 = vmatmul.mubr.bf16.gmra.mxu0 %v4739
      %v4921 = vpop.f32.mrf.mxu0
      %v4922 = vadd.f32 0.0, %v4921
      %v4923 = vpop.f32.mrf.mxu0
      %v4924 = vpop.f32.mrf.mxu0
      %v4925 = vpop.f32.mrf.mxu0
      %4926 = vmatprep.mubr.bf16.mxu0 0
      %4927 = vmatmul.mubr.bf16.gmra.mxu0 %v4742
      %v4928 = vpop.f32.mrf.mxu0
      %v4929 = vadd.f32 0.0, %v4928
      %v4930 = vpop.f32.mrf.mxu0
      %v4931 = vpop.f32.mrf.mxu0
      %v4932 = vadd.f32 0.0, %v4931
      %v4933 = vpop.f32.mrf.mxu0
      %4934 = vmatprep.mubr.bf16.mxu0 0
      %4935 = vmatmul.mubr.bf16.gmra.mxu0 %v4745
      %v4936 = vpop.f32.mrf.mxu0
      %v4937 = vpop.f32.mrf.mxu0
      %v4938 = vpop.f32.mrf.mxu0
      %v4939 = vadd.f32 0.0, %v4938
      %v4940 = vpop.f32.mrf.mxu0
      %4941 = vmatprep.mubr.bf16.mxu0 0
      %4942 = vmatmul.mubr.bf16.gmra.mxu0 %v4748
      %v4943 = vpop.f32.mrf.mxu0
      %v4944 = vadd.f32 0.0, %v4943
      %v4945 = vpop.f32.mrf.mxu0
      %v4946 = vpop.f32.mrf.mxu0
      %v4947 = vpop.f32.mrf.mxu0
      %4948 = vmatprep.mubr.bf16.mxu0 0
      %4949 = vmatmul.mubr.bf16.gmra.mxu0 %v4751
      %v4950 = vpop.f32.mrf.mxu0
      %v4951 = vadd.f32 0.0, %v4950
      %v4952 = vpop.f32.mrf.mxu0
      %v4953 = vpop.f32.mrf.mxu0
      %v4954 = vadd.f32 0.0, %v4953
      %v4955 = vpop.f32.mrf.mxu0
      %4956 = vmatprep.mubr.bf16.mxu0 0
      %4957 = vmatmul.mubr.bf16.gmra.mxu0 %v4754
      %v4958 = vpop.f32.mrf.mxu0
      %v4959 = vpop.f32.mrf.mxu0
      %v4960 = vpop.f32.mrf.mxu0
      %v4961 = vadd.f32 0.0, %v4960
      %v4962 = vpop.f32.mrf.mxu0
      %4963 = vmatprep.mubr.bf16.mxu0 0
      %4964 = vmatmul.mubr.bf16.gmra.mxu0 %v4757
      %v4965 = vpop.f32.mrf.mxu0
      %v4966 = vadd.f32 0.0, %v4965
      %v4967 = vpop.f32.mrf.mxu0
      %v4968 = vpop.f32.mrf.mxu0
      %v4969 = vpop.f32.mrf.mxu0
      %4970 = vdwg.mxu0
      %v4971 = vadd.f32 %v4257, %v4797
      %v4972 = vadd.f32 %v4258, %v4800
      %v4973 = vadd.f32 %v4259, %v4807
      %v4974 = vadd.f32 %v4260, %v4812
      %v4975 = vadd.f32 %v4261, %v4819
      %v4976 = vadd.f32 %v4262, %v4822
      %v4977 = vadd.f32 %v4263, %v4829
      %v4978 = vadd.f32 %v4264, %v4834
      %v4979 = vadd.f32 %v4265, %v4841
      %v4980 = vadd.f32 %v4266, %v4844
      %v4981 = vadd.f32 %v4267, %v4851
      %v4982 = vadd.f32 %v4268, %v4856
      %v4983 = vadd.f32 %v4269, %v4863
      %v4984 = vadd.f32 %v4270, %v4866
      %v4985 = vadd.f32 %v4271, %v4873
      %v4986 = vadd.f32 %v4272, %v4878
      %v4987 = vadd.f32 %v4273, %v4885
      %v4988 = vadd.f32 %v4274, %v4888
      %v4989 = vadd.f32 %v4275, %v4895
      %v4990 = vadd.f32 %v4276, %v4900
      %v4991 = vadd.f32 %v4277, %v4907
      %v4992 = vadd.f32 %v4278, %v4910
      %v4993 = vadd.f32 %v4279, %v4917
      %v4994 = vadd.f32 %v4280, %v4922
      %v4995 = vadd.f32 %v4281, %v4929
      %v4996 = vadd.f32 %v4282, %v4932
      %v4997 = vadd.f32 %v4283, %v4939
      %v4998 = vadd.f32 %v4284, %v4944
      %v4999 = vadd.f32 %v4285, %v4951
      %v5000 = vadd.f32 %v4286, %v4954
      %v5001 = vadd.f32 %v4287, %v4961
      %v5002 = vadd.f32 %v4288, %v4966
      %s5003 = scalar_lea.vmem %s3, 14
      %v5004 = vld [vmem:[%s5003] sm:$0x3]
      %v5005 = vpack.c.b16 %v4391, %v4390
      %v5006 = vpack.c.b16 %v4393, %v4392
      %v5007 = vpack.c.b16 %v4395, %v4394
      %v5008 = vpack.c.b16 %v4397, %v4396
      %v5009 = vpack.c.b16 %v4399, %v4398
      %v5010 = vpack.c.b16 %v4401, %v4400
      %v5011 = vpack.c.b16 %v4403, %v4402
      %v5012 = vpack.c.b16 %v4405, %v4404
      %v5013 = vpack.c.b16 %v4407, %v4406
      %v5014 = vpack.c.b16 %v4409, %v4408
      %v5015 = vpack.c.b16 %v4411, %v4410
      %v5016 = vpack.c.b16 %v4413, %v4412
      %v5017 = vpack.c.b16 %v4415, %v4414
      %v5018 = vpack.c.b16 %v4417, %v4416
      %v5019 = vpack.c.b16 %v4419, %v4418
      %v5020 = vpack.c.b16 %v4421, %v4420
      %v5021 = vpack.c.b16 %v4423, %v4422
      %v5022 = vpack.c.b16 %v4425, %v4424
      %v5023 = vpack.c.b16 %v4427, %v4426
      %v5024 = vpack.c.b16 %v4429, %v4428
      %v5025 = vpack.c.b16 %v4431, %v4430
      %v5026 = vpack.c.b16 %v4433, %v4432
      %v5027 = vpack.c.b16 %v4435, %v4434
      %v5028 = vpack.c.b16 %v4437, %v4436
      %v5030 = vsel %vm1038, %v5005, 0
      %v5033 = vsel %vm1038, %v5006, 0
      %v5036 = vsel %vm1038, %v5007, 0
      %v5039 = vsel %vm1038, %v5008, 0
      %v5042 = vsel %vm1038, %v5009, 0
      %v5045 = vsel %vm1038, %v5010, 0
      %v5048 = vsel %vm1038, %v5011, 0
      %v5051 = vsel %vm1038, %v5012, 0
      %v5054 = vsel %vm1038, %v5013, 0
      %v5057 = vsel %vm1038, %v5014, 0
      %v5060 = vsel %vm1038, %v5015, 0
      %v5063 = vsel %vm1038, %v5016, 0
      %v5066 = vsel %vm1038, %v5017, 0
      %v5069 = vsel %vm1038, %v5018, 0
      %v5072 = vsel %vm1038, %v5019, 0
      %v5075 = vsel %vm1038, %v5020, 0
      %v5078 = vsel %vm1038, %v5021, 0
      %v5081 = vsel %vm1038, %v5022, 0
      %v5084 = vsel %vm1038, %v5023, 0
      %v5087 = vsel %vm1038, %v5024, 0
      %v5090 = vsel %vm1038, %v5025, 0
      %v5093 = vsel %vm1038, %v5026, 0
      %v5096 = vsel %vm1038, %v5027, 0
      %v5099 = vsel %vm1038, %v5028, 0
      %v5102 = vsel %vm1111, %v5004, 0
      %5104 = vmatprep.subr.bf16.mxu0 0
      %5105 = vmatpush1.bf16.msra.mxu0 0
      %5106 = vmatprep.subr.bf16.mxu0 0
      %5107 = vmatpush1.bf16.msra.mxu0 0
      %5108 = vmatprep.subr.bf16.mxu0 0
      %5109 = vmatpush1.bf16.msra.mxu0 0
      %5110 = vmatprep.subr.bf16.mxu0 0
      %5111 = vmatpush1.bf16.msra.mxu0 0
      %5112 = vmatprep.subr.bf16.mxu0 0
      %5113 = vmatpush1.bf16.msra.mxu0 0
      %5114 = vmatprep.subr.bf16.mxu0 0
      %5115 = vmatpush1.bf16.msra.mxu0 0
      %5116 = vmatprep.subr.bf16.mxu0 0
      %5117 = vmatpush1.bf16.msra.mxu0 0
      %5118 = vmatprep.subr.bf16.mxu0 0
      %5119 = vmatpush1.bf16.msra.mxu0 %v5102
      %5120 = vmatprep.subr.bf16.mxu0 0
      %5121 = vmatpush2.bf16.msra.mxu0 0
      %5122 = vmatprep.subr.bf16.mxu0 0
      %5123 = vmatpush2.bf16.msra.mxu0 0
      %5124 = vmatprep.subr.bf16.mxu0 0
      %5125 = vmatpush2.bf16.msra.mxu0 0
      %5126 = vmatprep.subr.bf16.mxu0 0
      %5127 = vmatpush2.bf16.msra.mxu0 0
      %5128 = vmatprep.subr.bf16.mxu0 0
      %5129 = vmatpush2.bf16.msra.mxu0 0
      %5130 = vmatprep.subr.bf16.mxu0 0
      %5131 = vmatpush2.bf16.msra.mxu0 0
      %5132 = vmatprep.subr.bf16.mxu0 0
      %5133 = vmatpush2.bf16.msra.mxu0 0
      %5134 = vmatprep.subr.bf16.mxu0 0
      %5135 = vmatpush2.bf16.msra.mxu0 0
      %5136 = vmatprep.mubr.bf16.mxu0 0
      %5137 = vmatmul.mubr.bf16.gmra.mxu0 %v5030
      %v5138 = vpop.f32.mrf.mxu0
      %v5139 = vadd.f32 0.0, %v5138
      %v5140 = vpop.f32.mrf.mxu0
      %v5141 = vpop.f32.mrf.mxu0
      %v5142 = vadd.f32 0.0, %v5141
      %v5143 = vpop.f32.mrf.mxu0
      %5144 = vmatprep.mubr.bf16.mxu0 0
      %5145 = vmatmul.mubr.bf16.gmra.mxu0 %v5033
      %v5146 = vpop.f32.mrf.mxu0
      %v5147 = vpop.f32.mrf.mxu0
      %v5148 = vpop.f32.mrf.mxu0
      %v5149 = vadd.f32 0.0, %v5148
      %v5150 = vpop.f32.mrf.mxu0
      %5151 = vmatprep.mubr.bf16.mxu0 0
      %5152 = vmatmul.mubr.bf16.gmra.mxu0 %v5036
      %v5153 = vpop.f32.mrf.mxu0
      %v5154 = vadd.f32 0.0, %v5153
      %v5155 = vpop.f32.mrf.mxu0
      %v5156 = vpop.f32.mrf.mxu0
      %v5157 = vpop.f32.mrf.mxu0
      %5158 = vmatprep.mubr.bf16.mxu0 0
      %5159 = vmatmul.mubr.bf16.gmra.mxu0 %v5039
      %v5160 = vpop.f32.mrf.mxu0
      %v5161 = vadd.f32 0.0, %v5160
      %v5162 = vpop.f32.mrf.mxu0
      %v5163 = vpop.f32.mrf.mxu0
      %v5164 = vadd.f32 0.0, %v5163
      %v5165 = vpop.f32.mrf.mxu0
      %5166 = vmatprep.mubr.bf16.mxu0 0
      %5167 = vmatmul.mubr.bf16.gmra.mxu0 %v5042
      %v5168 = vpop.f32.mrf.mxu0
      %v5169 = vpop.f32.mrf.mxu0
      %v5170 = vpop.f32.mrf.mxu0
      %v5171 = vadd.f32 0.0, %v5170
      %v5172 = vpop.f32.mrf.mxu0
      %5173 = vmatprep.mubr.bf16.mxu0 0
      %5174 = vmatmul.mubr.bf16.gmra.mxu0 %v5045
      %v5175 = vpop.f32.mrf.mxu0
      %v5176 = vadd.f32 0.0, %v5175
      %v5177 = vpop.f32.mrf.mxu0
      %v5178 = vpop.f32.mrf.mxu0
      %v5179 = vpop.f32.mrf.mxu0
      %5180 = vmatprep.mubr.bf16.mxu0 0
      %5181 = vmatmul.mubr.bf16.gmra.mxu0 %v5048
      %v5182 = vpop.f32.mrf.mxu0
      %v5183 = vadd.f32 0.0, %v5182
      %v5184 = vpop.f32.mrf.mxu0
      %v5185 = vpop.f32.mrf.mxu0
      %v5186 = vadd.f32 0.0, %v5185
      %v5187 = vpop.f32.mrf.mxu0
      %5188 = vmatprep.mubr.bf16.mxu0 0
      %5189 = vmatmul.mubr.bf16.gmra.mxu0 %v5051
      %v5190 = vpop.f32.mrf.mxu0
      %v5191 = vpop.f32.mrf.mxu0
      %v5192 = vpop.f32.mrf.mxu0
      %v5193 = vadd.f32 0.0, %v5192
      %v5194 = vpop.f32.mrf.mxu0
      %5195 = vmatprep.mubr.bf16.mxu0 0
      %5196 = vmatmul.mubr.bf16.gmra.mxu0 %v5054
      %v5197 = vpop.f32.mrf.mxu0
      %v5198 = vadd.f32 0.0, %v5197
      %v5199 = vpop.f32.mrf.mxu0
      %v5200 = vpop.f32.mrf.mxu0
      %v5201 = vpop.f32.mrf.mxu0
      %5202 = vmatprep.mubr.bf16.mxu0 0
      %5203 = vmatmul.mubr.bf16.gmra.mxu0 %v5057
      %v5204 = vpop.f32.mrf.mxu0
      %v5205 = vadd.f32 0.0, %v5204
      %v5206 = vpop.f32.mrf.mxu0
      %v5207 = vpop.f32.mrf.mxu0
      %v5208 = vadd.f32 0.0, %v5207
      %v5209 = vpop.f32.mrf.mxu0
      %5210 = vmatprep.mubr.bf16.mxu0 0
      %5211 = vmatmul.mubr.bf16.gmra.mxu0 %v5060
      %v5212 = vpop.f32.mrf.mxu0
      %v5213 = vpop.f32.mrf.mxu0
      %v5214 = vpop.f32.mrf.mxu0
      %v5215 = vadd.f32 0.0, %v5214
      %v5216 = vpop.f32.mrf.mxu0
      %5217 = vmatprep.mubr.bf16.mxu0 0
      %5218 = vmatmul.mubr.bf16.gmra.mxu0 %v5063
      %v5219 = vpop.f32.mrf.mxu0
      %v5220 = vadd.f32 0.0, %v5219
      %v5221 = vpop.f32.mrf.mxu0
      %v5222 = vpop.f32.mrf.mxu0
      %v5223 = vpop.f32.mrf.mxu0
      %5224 = vmatprep.mubr.bf16.mxu0 0
      %5225 = vmatmul.mubr.bf16.gmra.mxu0 %v5066
      %v5226 = vpop.f32.mrf.mxu0
      %v5227 = vadd.f32 0.0, %v5226
      %v5228 = vpop.f32.mrf.mxu0
      %v5229 = vpop.f32.mrf.mxu0
      %v5230 = vadd.f32 0.0, %v5229
      %v5231 = vpop.f32.mrf.mxu0
      %5232 = vmatprep.mubr.bf16.mxu0 0
      %5233 = vmatmul.mubr.bf16.gmra.mxu0 %v5069
      %v5234 = vpop.f32.mrf.mxu0
      %v5235 = vpop.f32.mrf.mxu0
      %v5236 = vpop.f32.mrf.mxu0
      %v5237 = vadd.f32 0.0, %v5236
      %v5238 = vpop.f32.mrf.mxu0
      %5239 = vmatprep.mubr.bf16.mxu0 0
      %5240 = vmatmul.mubr.bf16.gmra.mxu0 %v5072
      %v5241 = vpop.f32.mrf.mxu0
      %v5242 = vadd.f32 0.0, %v5241
      %v5243 = vpop.f32.mrf.mxu0
      %v5244 = vpop.f32.mrf.mxu0
      %v5245 = vpop.f32.mrf.mxu0
      %5246 = vmatprep.mubr.bf16.mxu0 0
      %5247 = vmatmul.mubr.bf16.gmra.mxu0 %v5075
      %v5248 = vpop.f32.mrf.mxu0
      %v5249 = vadd.f32 0.0, %v5248
      %v5250 = vpop.f32.mrf.mxu0
      %v5251 = vpop.f32.mrf.mxu0
      %v5252 = vadd.f32 0.0, %v5251
      %v5253 = vpop.f32.mrf.mxu0
      %5254 = vmatprep.mubr.bf16.mxu0 0
      %5255 = vmatmul.mubr.bf16.gmra.mxu0 %v5078
      %v5256 = vpop.f32.mrf.mxu0
      %v5257 = vpop.f32.mrf.mxu0
      %v5258 = vpop.f32.mrf.mxu0
      %v5259 = vadd.f32 0.0, %v5258
      %v5260 = vpop.f32.mrf.mxu0
      %5261 = vmatprep.mubr.bf16.mxu0 0
      %5262 = vmatmul.mubr.bf16.gmra.mxu0 %v5081
      %v5263 = vpop.f32.mrf.mxu0
      %v5264 = vadd.f32 0.0, %v5263
      %v5265 = vpop.f32.mrf.mxu0
      %v5266 = vpop.f32.mrf.mxu0
      %v5267 = vpop.f32.mrf.mxu0
      %5268 = vmatprep.mubr.bf16.mxu0 0
      %5269 = vmatmul.mubr.bf16.gmra.mxu0 %v5084
      %v5270 = vpop.f32.mrf.mxu0
      %v5271 = vadd.f32 0.0, %v5270
      %v5272 = vpop.f32.mrf.mxu0
      %v5273 = vpop.f32.mrf.mxu0
      %v5274 = vadd.f32 0.0, %v5273
      %v5275 = vpop.f32.mrf.mxu0
      %5276 = vmatprep.mubr.bf16.mxu0 0
      %5277 = vmatmul.mubr.bf16.gmra.mxu0 %v5087
      %v5278 = vpop.f32.mrf.mxu0
      %v5279 = vpop.f32.mrf.mxu0
      %v5280 = vpop.f32.mrf.mxu0
      %v5281 = vadd.f32 0.0, %v5280
      %v5282 = vpop.f32.mrf.mxu0
      %5283 = vmatprep.mubr.bf16.mxu0 0
      %5284 = vmatmul.mubr.bf16.gmra.mxu0 %v5090
      %v5285 = vpop.f32.mrf.mxu0
      %v5286 = vadd.f32 0.0, %v5285
      %v5287 = vpop.f32.mrf.mxu0
      %v5288 = vpop.f32.mrf.mxu0
      %v5289 = vpop.f32.mrf.mxu0
      %5290 = vmatprep.mubr.bf16.mxu0 0
      %5291 = vmatmul.mubr.bf16.gmra.mxu0 %v5093
      %v5292 = vpop.f32.mrf.mxu0
      %v5293 = vadd.f32 0.0, %v5292
      %v5294 = vpop.f32.mrf.mxu0
      %v5295 = vpop.f32.mrf.mxu0
      %v5296 = vadd.f32 0.0, %v5295
      %v5297 = vpop.f32.mrf.mxu0
      %5298 = vmatprep.mubr.bf16.mxu0 0
      %5299 = vmatmul.mubr.bf16.gmra.mxu0 %v5096
      %v5300 = vpop.f32.mrf.mxu0
      %v5301 = vpop.f32.mrf.mxu0
      %v5302 = vpop.f32.mrf.mxu0
      %v5303 = vadd.f32 0.0, %v5302
      %v5304 = vpop.f32.mrf.mxu0
      %5305 = vmatprep.mubr.bf16.mxu0 0
      %5306 = vmatmul.mubr.bf16.gmra.mxu0 %v5099
      %v5307 = vpop.f32.mrf.mxu0
      %v5308 = vadd.f32 0.0, %v5307
      %v5309 = vpop.f32.mrf.mxu0
      %v5310 = vpop.f32.mrf.mxu0
      %v5311 = vpop.f32.mrf.mxu0
      %5312 = vdwg.mxu0
      %v5313 = vadd.f32 %v4971, %v5139
      %v5314 = vadd.f32 %v4972, %v5142
      %v5315 = vadd.f32 %v4973, %v5149
      %v5316 = vadd.f32 %v4974, %v5154
      %v5317 = vadd.f32 %v4975, %v5161
      %v5318 = vadd.f32 %v4976, %v5164
      %v5319 = vadd.f32 %v4977, %v5171
      %v5320 = vadd.f32 %v4978, %v5176
      %v5321 = vadd.f32 %v4979, %v5183
      %v5322 = vadd.f32 %v4980, %v5186
      %v5323 = vadd.f32 %v4981, %v5193
      %v5324 = vadd.f32 %v4982, %v5198
      %v5325 = vadd.f32 %v4983, %v5205
      %v5326 = vadd.f32 %v4984, %v5208
      %v5327 = vadd.f32 %v4985, %v5215
      %v5328 = vadd.f32 %v4986, %v5220
      %v5329 = vadd.f32 %v4987, %v5227
      %v5330 = vadd.f32 %v4988, %v5230
      %v5331 = vadd.f32 %v4989, %v5237
      %v5332 = vadd.f32 %v4990, %v5242
      %v5333 = vadd.f32 %v4991, %v5249
      %v5334 = vadd.f32 %v4992, %v5252
      %v5335 = vadd.f32 %v4993, %v5259
      %v5336 = vadd.f32 %v4994, %v5264
      %v5337 = vadd.f32 %v4995, %v5271
      %v5338 = vadd.f32 %v4996, %v5274
      %v5339 = vadd.f32 %v4997, %v5281
      %v5340 = vadd.f32 %v4998, %v5286
      %v5341 = vadd.f32 %v4999, %v5293
      %v5342 = vadd.f32 %v5000, %v5296
      %v5343 = vadd.f32 %v5001, %v5303
      %v5344 = vadd.f32 %v5002, %v5308
      %v5345 = vld [vmem:[#allocation2 + $0x1c] sm:$0xf]
      %v5346 = vld [vmem:[#allocation2 + $0x20] sm:$0xf]
      %v5347 = vld [vmem:[#allocation2 + $0x24] sm:$0xf]
      %v5348 = vld [vmem:[#allocation2 + $0x28] sm:$0xf]
      %v5349 = vld [vmem:[#allocation2 + $0x2c] sm:$0xf]
      %v5350 = vld [vmem:[#allocation2 + $0x30] sm:$0xf]
      %v5351 = vld [vmem:[#allocation2 + $0x34] sm:$0xf]
      %v5352 = vld [vmem:[#allocation2 + $0x38] sm:$0xf]
      %v5353 = vld [vmem:[#allocation2 + $0x3c] sm:$0xf]
      %v5354 = vld [vmem:[#allocation2 + $0x40] sm:$0xf]
      %v5355 = vld [vmem:[#allocation2 + $0x44] sm:$0xf]
      %v5356 = vld [vmem:[#allocation2 + $0x48] sm:$0xf]
      %v5357 = vld [vmem:[#allocation2 + $0x4c] sm:$0xf]
      %v5358 = vld [vmem:[#allocation2 + $0x50] sm:$0xf]
      %v5359 = vld [vmem:[#allocation2 + $0x54] sm:$0xf]
      %v5360 = vld [vmem:[#allocation2 + $0x58] sm:$0xf]
      %v5361 = vld [vmem:[#allocation2 + $0x5c] sm:$0xf]
      %v5362 = vld [vmem:[#allocation2 + $0x60] sm:$0xf]
      %v5363 = vld [vmem:[#allocation2 + $0x64] sm:$0xf]
      %v5364 = vld [vmem:[#allocation2 + $0x68] sm:$0xf]
      %v5365 = vld [vmem:[#allocation2 + $0x6c] sm:$0xf]
      %v5366 = vld [vmem:[#allocation2 + $0x70] sm:$0xf]
      %v5367 = vld [vmem:[#allocation2 + $0x74] sm:$0xf]
      %v5368 = vld [vmem:[#allocation2 + $0x78] sm:$0xf]
      %v5369 = vld [vmem:[#allocation2 + $0x7c] sm:$0xf]
      %v5370 = vld [vmem:[#allocation2 + $0x80] sm:$0xf]
      %v5371 = vld [vmem:[#allocation2 + $0x84] sm:$0xf]
      %v5372 = vld [vmem:[#allocation2 + $0x88] sm:$0xf]
      %v5373 = vld [vmem:[#allocation2 + $0x8c] sm:$0xf]
      %v5374 = vld [vmem:[#allocation2 + $0x90] sm:$0xf]
      %v5375 = vld [vmem:[#allocation2 + $0x94] sm:$0xf]
      %v5376 = vld [vmem:[#allocation2 + $0x98] sm:$0xf]
      %v5377 = vld [vmem:[#allocation2 + $0x9c] sm:$0xf]
      %v5378 = vld [vmem:[#allocation2 + $0xa0] sm:$0xf]
      %v5379 = vld [vmem:[#allocation2 + $0xa4] sm:$0xf]
      %v5380 = vld [vmem:[#allocation2 + $0xa8] sm:$0xf]
      %v5381 = vld [vmem:[#allocation2 + $0xac] sm:$0xf]
      %v5382 = vld [vmem:[#allocation2 + $0xb0] sm:$0xf]
      %v5383 = vld [vmem:[#allocation2 + $0xb4] sm:$0xf]
      %v5384 = vld [vmem:[#allocation2 + $0xb8] sm:$0xf]
      %v5385 = vld [vmem:[#allocation2 + $0xbc] sm:$0xf]
      %v5386 = vld [vmem:[#allocation2 + $0xc0] sm:$0xf]
      %v5387 = vld [vmem:[#allocation2 + $0xc4] sm:$0xf]
      %v5388 = vld [vmem:[#allocation2 + $0xc8] sm:$0xf]
      %v5389 = vld [vmem:[#allocation2 + $0xcc] sm:$0xf]
      %v5390 = vld [vmem:[#allocation2 + $0xd0] sm:$0xf]
      %v5391 = vld [vmem:[#allocation2 + $0xd4] sm:$0xf]
      %v5392 = vld [vmem:[#allocation2 + $0xd8] sm:$0xf]
      %v5393 = vld [vmem:[#allocation2 + $0xdc] sm:$0x1]
      %s5394 = scalar_lea.vmem %s3, 16
      %v5395 = vld [vmem:[%s5394] sm:$0x3]
      %v5445 = vunpack.c.l.b16 %v5345
      %v5446 = vunpack.c.l.b16 %v5346
      %v5447 = vunpack.c.l.b16 %v5347
      %v5448 = vunpack.c.l.b16 %v5348
      %v5449 = vunpack.c.l.b16 %v5349
      %v5450 = vunpack.c.l.b16 %v5350
      %v5451 = vunpack.c.l.b16 %v5351
      %v5452 = vunpack.c.l.b16 %v5352
      %v5453 = vunpack.c.l.b16 %v5353
      %v5454 = vunpack.c.l.b16 %v5354
      %v5455 = vunpack.c.l.b16 %v5355
      %v5456 = vunpack.c.l.b16 %v5356
      %v5457 = vunpack.c.l.b16 %v5357
      %v5458 = vunpack.c.l.b16 %v5358
      %v5459 = vunpack.c.l.b16 %v5359
      %v5460 = vunpack.c.l.b16 %v5360
      %v5461 = vunpack.c.l.b16 %v5361
      %v5462 = vunpack.c.l.b16 %v5362
      %v5463 = vunpack.c.l.b16 %v5363
      %v5464 = vunpack.c.l.b16 %v5364
      %v5465 = vunpack.c.l.b16 %v5365
      %v5466 = vunpack.c.l.b16 %v5366
      %v5467 = vunpack.c.l.b16 %v5367
      %v5468 = vunpack.c.l.b16 %v5368
      %v5469 = vunpack.c.l.b16 %v5369
      %v5470 = vunpack.c.l.b16 %v5370
      %v5471 = vunpack.c.l.b16 %v5371
      %v5472 = vunpack.c.l.b16 %v5372
      %v5473 = vunpack.c.l.b16 %v5373
      %v5474 = vunpack.c.l.b16 %v5374
      %v5475 = vunpack.c.l.b16 %v5375
      %v5476 = vunpack.c.l.b16 %v5376
      %v5477 = vunpack.c.l.b16 %v5377
      %v5478 = vunpack.c.l.b16 %v5378
      %v5479 = vunpack.c.l.b16 %v5379
      %v5480 = vunpack.c.l.b16 %v5380
      %v5481 = vunpack.c.l.b16 %v5381
      %v5482 = vunpack.c.l.b16 %v5382
      %v5483 = vunpack.c.l.b16 %v5383
      %v5484 = vunpack.c.l.b16 %v5384
      %v5485 = vunpack.c.l.b16 %v5385
      %v5486 = vunpack.c.l.b16 %v5386
      %v5487 = vunpack.c.l.b16 %v5387
      %v5488 = vunpack.c.l.b16 %v5388
      %v5489 = vunpack.c.l.b16 %v5389
      %v5490 = vunpack.c.l.b16 %v5390
      %v5491 = vunpack.c.l.b16 %v5391
      %v5492 = vunpack.c.l.b16 %v5392
      %v5493 = vunpack.c.l.b16 %v5393
      %v5494 = vpack.c.b16 %v5446, %v5445
      %v5495 = vpack.c.b16 %v5448, %v5447
      %v5496 = vpack.c.b16 %v5450, %v5449
      %v5497 = vpack.c.b16 %v5452, %v5451
      %v5498 = vpack.c.b16 %v5454, %v5453
      %v5499 = vpack.c.b16 %v5456, %v5455
      %v5500 = vpack.c.b16 %v5458, %v5457
      %v5501 = vpack.c.b16 %v5460, %v5459
      %v5502 = vpack.c.b16 %v5462, %v5461
      %v5503 = vpack.c.b16 %v5464, %v5463
      %v5504 = vpack.c.b16 %v5466, %v5465
      %v5505 = vpack.c.b16 %v5468, %v5467
      %v5506 = vpack.c.b16 %v5470, %v5469
      %v5507 = vpack.c.b16 %v5472, %v5471
      %v5508 = vpack.c.b16 %v5474, %v5473
      %v5509 = vpack.c.b16 %v5476, %v5475
      %v5510 = vpack.c.b16 %v5478, %v5477
      %v5511 = vpack.c.b16 %v5480, %v5479
      %v5512 = vpack.c.b16 %v5482, %v5481
      %v5513 = vpack.c.b16 %v5484, %v5483
      %v5514 = vpack.c.b16 %v5486, %v5485
      %v5515 = vpack.c.b16 %v5488, %v5487
      %v5516 = vpack.c.b16 %v5490, %v5489
      %v5517 = vpack.c.b16 %v5492, %v5491
      %v5518 = vpack.c.b16 %v5493, %v5493
      %v5520 = vshrl.u32 %v5494, 16
      %v5522 = vshll.u32 %v5494, 16
      %v5524 = vrot.slane %v5522, 1
      %v5525 = vor.u32 %v5520, %v5524
      %v5527 = vshll.u32 %v5495, 16
      %v5529 = vrot.slane %v5527, 1
      %v5530 = vsel %vm2034, %v5525, %v5529
      %v5531 = vshrl.u32 %v5495, 16
      %v5533 = vor.u32 %v5531, %v5529
      %v5535 = vshll.u32 %v5496, 16
      %v5537 = vrot.slane %v5535, 1
      %v5538 = vsel %vm2034, %v5533, %v5537
      %v5539 = vshrl.u32 %v5496, 16
      %v5541 = vor.u32 %v5539, %v5537
      %v5543 = vshll.u32 %v5497, 16
      %v5545 = vrot.slane %v5543, 1
      %v5546 = vsel %vm2034, %v5541, %v5545
      %v5547 = vshrl.u32 %v5497, 16
      %v5549 = vor.u32 %v5547, %v5545
      %v5551 = vshll.u32 %v5498, 16
      %v5553 = vrot.slane %v5551, 1
      %v5554 = vsel %vm2034, %v5549, %v5553
      %v5555 = vshrl.u32 %v5498, 16
      %v5557 = vor.u32 %v5555, %v5553
      %v5559 = vshll.u32 %v5499, 16
      %v5561 = vrot.slane %v5559, 1
      %v5562 = vsel %vm2034, %v5557, %v5561
      %v5563 = vshrl.u32 %v5499, 16
      %v5565 = vor.u32 %v5563, %v5561
      %v5567 = vshll.u32 %v5500, 16
      %v5569 = vrot.slane %v5567, 1
      %v5570 = vsel %vm2034, %v5565, %v5569
      %v5571 = vshrl.u32 %v5500, 16
      %v5573 = vor.u32 %v5571, %v5569
      %v5575 = vshll.u32 %v5501, 16
      %v5577 = vrot.slane %v5575, 1
      %v5578 = vsel %vm2034, %v5573, %v5577
      %v5579 = vshrl.u32 %v5501, 16
      %v5581 = vor.u32 %v5579, %v5577
      %v5583 = vshll.u32 %v5502, 16
      %v5585 = vrot.slane %v5583, 1
      %v5586 = vsel %vm2034, %v5581, %v5585
      %v5587 = vshrl.u32 %v5502, 16
      %v5589 = vor.u32 %v5587, %v5585
      %v5591 = vshll.u32 %v5503, 16
      %v5593 = vrot.slane %v5591, 1
      %v5594 = vsel %vm2034, %v5589, %v5593
      %v5595 = vshrl.u32 %v5503, 16
      %v5597 = vor.u32 %v5595, %v5593
      %v5599 = vshll.u32 %v5504, 16
      %v5601 = vrot.slane %v5599, 1
      %v5602 = vsel %vm2034, %v5597, %v5601
      %v5603 = vshrl.u32 %v5504, 16
      %v5605 = vor.u32 %v5603, %v5601
      %v5607 = vshll.u32 %v5505, 16
      %v5609 = vrot.slane %v5607, 1
      %v5610 = vsel %vm2034, %v5605, %v5609
      %v5611 = vshrl.u32 %v5505, 16
      %v5613 = vor.u32 %v5611, %v5609
      %v5615 = vshll.u32 %v5506, 16
      %v5617 = vrot.slane %v5615, 1
      %v5618 = vsel %vm2034, %v5613, %v5617
      %v5619 = vshrl.u32 %v5506, 16
      %v5621 = vor.u32 %v5619, %v5617
      %v5623 = vshll.u32 %v5507, 16
      %v5625 = vrot.slane %v5623, 1
      %v5626 = vsel %vm2034, %v5621, %v5625
      %v5627 = vshrl.u32 %v5507, 16
      %v5629 = vor.u32 %v5627, %v5625
      %v5631 = vshll.u32 %v5508, 16
      %v5633 = vrot.slane %v5631, 1
      %v5634 = vsel %vm2034, %v5629, %v5633
      %v5635 = vshrl.u32 %v5508, 16
      %v5637 = vor.u32 %v5635, %v5633
      %v5639 = vshll.u32 %v5509, 16
      %v5641 = vrot.slane %v5639, 1
      %v5642 = vsel %vm2034, %v5637, %v5641
      %v5643 = vshrl.u32 %v5509, 16
      %v5645 = vor.u32 %v5643, %v5641
      %v5647 = vshll.u32 %v5510, 16
      %v5649 = vrot.slane %v5647, 1
      %v5650 = vsel %vm2034, %v5645, %v5649
      %v5651 = vshrl.u32 %v5510, 16
      %v5653 = vor.u32 %v5651, %v5649
      %v5655 = vshll.u32 %v5511, 16
      %v5657 = vrot.slane %v5655, 1
      %v5658 = vsel %vm2034, %v5653, %v5657
      %v5659 = vshrl.u32 %v5511, 16
      %v5661 = vor.u32 %v5659, %v5657
      %v5663 = vshll.u32 %v5512, 16
      %v5665 = vrot.slane %v5663, 1
      %v5666 = vsel %vm2034, %v5661, %v5665
      %v5667 = vshrl.u32 %v5512, 16
      %v5669 = vor.u32 %v5667, %v5665
      %v5671 = vshll.u32 %v5513, 16
      %v5673 = vrot.slane %v5671, 1
      %v5674 = vsel %vm2034, %v5669, %v5673
      %v5675 = vshrl.u32 %v5513, 16
      %v5677 = vor.u32 %v5675, %v5673
      %v5679 = vshll.u32 %v5514, 16
      %v5681 = vrot.slane %v5679, 1
      %v5682 = vsel %vm2034, %v5677, %v5681
      %v5683 = vshrl.u32 %v5514, 16
      %v5685 = vor.u32 %v5683, %v5681
      %v5687 = vshll.u32 %v5515, 16
      %v5689 = vrot.slane %v5687, 1
      %v5690 = vsel %vm2034, %v5685, %v5689
      %v5691 = vshrl.u32 %v5515, 16
      %v5693 = vor.u32 %v5691, %v5689
      %v5695 = vshll.u32 %v5516, 16
      %v5697 = vrot.slane %v5695, 1
      %v5698 = vsel %vm2034, %v5693, %v5697
      %v5699 = vshrl.u32 %v5516, 16
      %v5701 = vor.u32 %v5699, %v5697
      %v5703 = vshll.u32 %v5517, 16
      %v5705 = vrot.slane %v5703, 1
      %v5706 = vsel %vm2034, %v5701, %v5705
      %v5707 = vshrl.u32 %v5517, 16
      %v5709 = vor.u32 %v5707, %v5705
      %v5711 = vshll.u32 %v5518, 16
      %v5713 = vrot.slane %v5711, 1
      %v5714 = vsel %vm2034, %v5709, %v5713
      %v5716 = vsel %vm1038, %v5530, 0
      %v5719 = vsel %vm1038, %v5538, 0
      %v5722 = vsel %vm1038, %v5546, 0
      %v5725 = vsel %vm1038, %v5554, 0
      %v5728 = vsel %vm1038, %v5562, 0
      %v5731 = vsel %vm1038, %v5570, 0
      %v5734 = vsel %vm1038, %v5578, 0
      %v5737 = vsel %vm1038, %v5586, 0
      %v5740 = vsel %vm1038, %v5594, 0
      %v5743 = vsel %vm1038, %v5602, 0
      %v5746 = vsel %vm1038, %v5610, 0
      %v5749 = vsel %vm1038, %v5618, 0
      %v5752 = vsel %vm1038, %v5626, 0
      %v5755 = vsel %vm1038, %v5634, 0
      %v5758 = vsel %vm1038, %v5642, 0
      %v5761 = vsel %vm1038, %v5650, 0
      %v5764 = vsel %vm1038, %v5658, 0
      %v5767 = vsel %vm1038, %v5666, 0
      %v5770 = vsel %vm1038, %v5674, 0
      %v5773 = vsel %vm1038, %v5682, 0
      %v5776 = vsel %vm1038, %v5690, 0
      %v5779 = vsel %vm1038, %v5698, 0
      %v5782 = vsel %vm1038, %v5706, 0
      %v5785 = vsel %vm1038, %v5714, 0
      %v5788 = vsel %vm1111, %v5395, 0
      %5790 = vmatprep.subr.bf16.mxu0 0
      %5791 = vmatpush1.bf16.msra.mxu0 0
      %5792 = vmatprep.subr.bf16.mxu0 0
      %5793 = vmatpush1.bf16.msra.mxu0 0
      %5794 = vmatprep.subr.bf16.mxu0 0
      %5795 = vmatpush1.bf16.msra.mxu0 0
      %5796 = vmatprep.subr.bf16.mxu0 0
      %5797 = vmatpush1.bf16.msra.mxu0 0
      %5798 = vmatprep.subr.bf16.mxu0 0
      %5799 = vmatpush1.bf16.msra.mxu0 0
      %5800 = vmatprep.subr.bf16.mxu0 0
      %5801 = vmatpush1.bf16.msra.mxu0 0
      %5802 = vmatprep.subr.bf16.mxu0 0
      %5803 = vmatpush1.bf16.msra.mxu0 0
      %5804 = vmatprep.subr.bf16.mxu0 0
      %5805 = vmatpush1.bf16.msra.mxu0 %v5788
      %5806 = vmatprep.subr.bf16.mxu0 0
      %5807 = vmatpush2.bf16.msra.mxu0 0
      %5808 = vmatprep.subr.bf16.mxu0 0
      %5809 = vmatpush2.bf16.msra.mxu0 0
      %5810 = vmatprep.subr.bf16.mxu0 0
      %5811 = vmatpush2.bf16.msra.mxu0 0
      %5812 = vmatprep.subr.bf16.mxu0 0
      %5813 = vmatpush2.bf16.msra.mxu0 0
      %5814 = vmatprep.subr.bf16.mxu0 0
      %5815 = vmatpush2.bf16.msra.mxu0 0
      %5816 = vmatprep.subr.bf16.mxu0 0
      %5817 = vmatpush2.bf16.msra.mxu0 0
      %5818 = vmatprep.subr.bf16.mxu0 0
      %5819 = vmatpush2.bf16.msra.mxu0 0
      %5820 = vmatprep.subr.bf16.mxu0 0
      %5821 = vmatpush2.bf16.msra.mxu0 0
      %5822 = vmatprep.mubr.bf16.mxu0 0
      %5823 = vmatmul.mubr.bf16.gmra.mxu0 %v5716
      %v5824 = vpop.f32.mrf.mxu0
      %v5825 = vadd.f32 0.0, %v5824
      %v5826 = vpop.f32.mrf.mxu0
      %v5827 = vpop.f32.mrf.mxu0
      %v5828 = vadd.f32 0.0, %v5827
      %v5829 = vpop.f32.mrf.mxu0
      %5830 = vmatprep.mubr.bf16.mxu0 0
      %5831 = vmatmul.mubr.bf16.gmra.mxu0 %v5719
      %v5832 = vpop.f32.mrf.mxu0
      %v5833 = vpop.f32.mrf.mxu0
      %v5834 = vpop.f32.mrf.mxu0
      %v5835 = vadd.f32 0.0, %v5834
      %v5836 = vpop.f32.mrf.mxu0
      %5837 = vmatprep.mubr.bf16.mxu0 0
      %5838 = vmatmul.mubr.bf16.gmra.mxu0 %v5722
      %v5839 = vpop.f32.mrf.mxu0
      %v5840 = vadd.f32 0.0, %v5839
      %v5841 = vpop.f32.mrf.mxu0
      %v5842 = vpop.f32.mrf.mxu0
      %v5843 = vpop.f32.mrf.mxu0
      %5844 = vmatprep.mubr.bf16.mxu0 0
      %5845 = vmatmul.mubr.bf16.gmra.mxu0 %v5725
      %v5846 = vpop.f32.mrf.mxu0
      %v5847 = vadd.f32 0.0, %v5846
      %v5848 = vpop.f32.mrf.mxu0
      %v5849 = vpop.f32.mrf.mxu0
      %v5850 = vadd.f32 0.0, %v5849
      %v5851 = vpop.f32.mrf.mxu0
      %5852 = vmatprep.mubr.bf16.mxu0 0
      %5853 = vmatmul.mubr.bf16.gmra.mxu0 %v5728
      %v5854 = vpop.f32.mrf.mxu0
      %v5855 = vpop.f32.mrf.mxu0
      %v5856 = vpop.f32.mrf.mxu0
      %v5857 = vadd.f32 0.0, %v5856
      %v5858 = vpop.f32.mrf.mxu0
      %5859 = vmatprep.mubr.bf16.mxu0 0
      %5860 = vmatmul.mubr.bf16.gmra.mxu0 %v5731
      %v5861 = vpop.f32.mrf.mxu0
      %v5862 = vadd.f32 0.0, %v5861
      %v5863 = vpop.f32.mrf.mxu0
      %v5864 = vpop.f32.mrf.mxu0
      %v5865 = vpop.f32.mrf.mxu0
      %5866 = vmatprep.mubr.bf16.mxu0 0
      %5867 = vmatmul.mubr.bf16.gmra.mxu0 %v5734
      %v5868 = vpop.f32.mrf.mxu0
      %v5869 = vadd.f32 0.0, %v5868
      %v5870 = vpop.f32.mrf.mxu0
      %v5871 = vpop.f32.mrf.mxu0
      %v5872 = vadd.f32 0.0, %v5871
      %v5873 = vpop.f32.mrf.mxu0
      %5874 = vmatprep.mubr.bf16.mxu0 0
      %5875 = vmatmul.mubr.bf16.gmra.mxu0 %v5737
      %v5876 = vpop.f32.mrf.mxu0
      %v5877 = vpop.f32.mrf.mxu0
      %v5878 = vpop.f32.mrf.mxu0
      %v5879 = vadd.f32 0.0, %v5878
      %v5880 = vpop.f32.mrf.mxu0
      %5881 = vmatprep.mubr.bf16.mxu0 0
      %5882 = vmatmul.mubr.bf16.gmra.mxu0 %v5740
      %v5883 = vpop.f32.mrf.mxu0
      %v5884 = vadd.f32 0.0, %v5883
      %v5885 = vpop.f32.mrf.mxu0
      %v5886 = vpop.f32.mrf.mxu0
      %v5887 = vpop.f32.mrf.mxu0
      %5888 = vmatprep.mubr.bf16.mxu0 0
      %5889 = vmatmul.mubr.bf16.gmra.mxu0 %v5743
      %v5890 = vpop.f32.mrf.mxu0
      %v5891 = vadd.f32 0.0, %v5890
      %v5892 = vpop.f32.mrf.mxu0
      %v5893 = vpop.f32.mrf.mxu0
      %v5894 = vadd.f32 0.0, %v5893
      %v5895 = vpop.f32.mrf.mxu0
      %5896 = vmatprep.mubr.bf16.mxu0 0
      %5897 = vmatmul.mubr.bf16.gmra.mxu0 %v5746
      %v5898 = vpop.f32.mrf.mxu0
      %v5899 = vpop.f32.mrf.mxu0
      %v5900 = vpop.f32.mrf.mxu0
      %v5901 = vadd.f32 0.0, %v5900
      %v5902 = vpop.f32.mrf.mxu0
      %5903 = vmatprep.mubr.bf16.mxu0 0
      %5904 = vmatmul.mubr.bf16.gmra.mxu0 %v5749
      %v5905 = vpop.f32.mrf.mxu0
      %v5906 = vadd.f32 0.0, %v5905
      %v5907 = vpop.f32.mrf.mxu0
      %v5908 = vpop.f32.mrf.mxu0
      %v5909 = vpop.f32.mrf.mxu0
      %5910 = vmatprep.mubr.bf16.mxu0 0
      %5911 = vmatmul.mubr.bf16.gmra.mxu0 %v5752
      %v5912 = vpop.f32.mrf.mxu0
      %v5913 = vadd.f32 0.0, %v5912
      %v5914 = vpop.f32.mrf.mxu0
      %v5915 = vpop.f32.mrf.mxu0
      %v5916 = vadd.f32 0.0, %v5915
      %v5917 = vpop.f32.mrf.mxu0
      %5918 = vmatprep.mubr.bf16.mxu0 0
      %5919 = vmatmul.mubr.bf16.gmra.mxu0 %v5755
      %v5920 = vpop.f32.mrf.mxu0
      %v5921 = vpop.f32.mrf.mxu0
      %v5922 = vpop.f32.mrf.mxu0
      %v5923 = vadd.f32 0.0, %v5922
      %v5924 = vpop.f32.mrf.mxu0
      %5925 = vmatprep.mubr.bf16.mxu0 0
      %5926 = vmatmul.mubr.bf16.gmra.mxu0 %v5758
      %v5927 = vpop.f32.mrf.mxu0
      %v5928 = vadd.f32 0.0, %v5927
      %v5929 = vpop.f32.mrf.mxu0
      %v5930 = vpop.f32.mrf.mxu0
      %v5931 = vpop.f32.mrf.mxu0
      %5932 = vmatprep.mubr.bf16.mxu0 0
      %5933 = vmatmul.mubr.bf16.gmra.mxu0 %v5761
      %v5934 = vpop.f32.mrf.mxu0
      %v5935 = vadd.f32 0.0, %v5934
      %v5936 = vpop.f32.mrf.mxu0
      %v5937 = vpop.f32.mrf.mxu0
      %v5938 = vadd.f32 0.0, %v5937
      %v5939 = vpop.f32.mrf.mxu0
      %5940 = vmatprep.mubr.bf16.mxu0 0
      %5941 = vmatmul.mubr.bf16.gmra.mxu0 %v5764
      %v5942 = vpop.f32.mrf.mxu0
      %v5943 = vpop.f32.mrf.mxu0
      %v5944 = vpop.f32.mrf.mxu0
      %v5945 = vadd.f32 0.0, %v5944
      %v5946 = vpop.f32.mrf.mxu0
      %5947 = vmatprep.mubr.bf16.mxu0 0
      %5948 = vmatmul.mubr.bf16.gmra.mxu0 %v5767
      %v5949 = vpop.f32.mrf.mxu0
      %v5950 = vadd.f32 0.0, %v5949
      %v5951 = vpop.f32.mrf.mxu0
      %v5952 = vpop.f32.mrf.mxu0
      %v5953 = vpop.f32.mrf.mxu0
      %5954 = vmatprep.mubr.bf16.mxu0 0
      %5955 = vmatmul.mubr.bf16.gmra.mxu0 %v5770
      %v5956 = vpop.f32.mrf.mxu0
      %v5957 = vadd.f32 0.0, %v5956
      %v5958 = vpop.f32.mrf.mxu0
      %v5959 = vpop.f32.mrf.mxu0
      %v5960 = vadd.f32 0.0, %v5959
      %v5961 = vpop.f32.mrf.mxu0
      %5962 = vmatprep.mubr.bf16.mxu0 0
      %5963 = vmatmul.mubr.bf16.gmra.mxu0 %v5773
      %v5964 = vpop.f32.mrf.mxu0
      %v5965 = vpop.f32.mrf.mxu0
      %v5966 = vpop.f32.mrf.mxu0
      %v5967 = vadd.f32 0.0, %v5966
      %v5968 = vpop.f32.mrf.mxu0
      %5969 = vmatprep.mubr.bf16.mxu0 0
      %5970 = vmatmul.mubr.bf16.gmra.mxu0 %v5776
      %v5971 = vpop.f32.mrf.mxu0
      %v5972 = vadd.f32 0.0, %v5971
      %v5973 = vpop.f32.mrf.mxu0
      %v5974 = vpop.f32.mrf.mxu0
      %v5975 = vpop.f32.mrf.mxu0
      %5976 = vmatprep.mubr.bf16.mxu0 0
      %5977 = vmatmul.mubr.bf16.gmra.mxu0 %v5779
      %v5978 = vpop.f32.mrf.mxu0
      %v5979 = vadd.f32 0.0, %v5978
      %v5980 = vpop.f32.mrf.mxu0
      %v5981 = vpop.f32.mrf.mxu0
      %v5982 = vadd.f32 0.0, %v5981
      %v5983 = vpop.f32.mrf.mxu0
      %5984 = vmatprep.mubr.bf16.mxu0 0
      %5985 = vmatmul.mubr.bf16.gmra.mxu0 %v5782
      %v5986 = vpop.f32.mrf.mxu0
      %v5987 = vpop.f32.mrf.mxu0
      %v5988 = vpop.f32.mrf.mxu0
      %v5989 = vadd.f32 0.0, %v5988
      %v5990 = vpop.f32.mrf.mxu0
      %5991 = vmatprep.mubr.bf16.mxu0 0
      %5992 = vmatmul.mubr.bf16.gmra.mxu0 %v5785
      %v5993 = vpop.f32.mrf.mxu0
      %v5994 = vadd.f32 0.0, %v5993
      %v5995 = vpop.f32.mrf.mxu0
      %v5996 = vpop.f32.mrf.mxu0
      %v5997 = vpop.f32.mrf.mxu0
      %5998 = vdwg.mxu0
      %v5999 = vadd.f32 %v5313, %v5825
      %v6000 = vadd.f32 %v5314, %v5828
      %v6001 = vadd.f32 %v5315, %v5835
      %v6002 = vadd.f32 %v5316, %v5840
      %v6003 = vadd.f32 %v5317, %v5847
      %v6004 = vadd.f32 %v5318, %v5850
      %v6005 = vadd.f32 %v5319, %v5857
      %v6006 = vadd.f32 %v5320, %v5862
      %v6007 = vadd.f32 %v5321, %v5869
      %v6008 = vadd.f32 %v5322, %v5872
      %v6009 = vadd.f32 %v5323, %v5879
      %v6010 = vadd.f32 %v5324, %v5884
      %v6011 = vadd.f32 %v5325, %v5891
      %v6012 = vadd.f32 %v5326, %v5894
      %v6013 = vadd.f32 %v5327, %v5901
      %v6014 = vadd.f32 %v5328, %v5906
      %v6015 = vadd.f32 %v5329, %v5913
      %v6016 = vadd.f32 %v5330, %v5916
      %v6017 = vadd.f32 %v5331, %v5923
      %v6018 = vadd.f32 %v5332, %v5928
      %v6019 = vadd.f32 %v5333, %v5935
      %v6020 = vadd.f32 %v5334, %v5938
      %v6021 = vadd.f32 %v5335, %v5945
      %v6022 = vadd.f32 %v5336, %v5950
      %v6023 = vadd.f32 %v5337, %v5957
      %v6024 = vadd.f32 %v5338, %v5960
      %v6025 = vadd.f32 %v5339, %v5967
      %v6026 = vadd.f32 %v5340, %v5972
      %v6027 = vadd.f32 %v5341, %v5979
      %v6028 = vadd.f32 %v5342, %v5982
      %v6029 = vadd.f32 %v5343, %v5989
      %v6030 = vadd.f32 %v5344, %v5994
      %v6031 = vld [vmem:[%s4] sm:$0x1]
      %v6033 = vlaneseq
      %v6034 = vshrl.u32 %v6033, 7
      %v6035 = vsub.s32 0, %v6034
      %v6036 = vrot.slane %v6031, %v6035
      %v6038 = vadd.f32 %v5999, %v6036
      %v6039 = vadd.f32 %v6000, %v6036
      %v6040 = vadd.f32 %v6001, %v6036
      %v6041 = vadd.f32 %v6002, %v6036
      %v6042 = vadd.f32 %v6003, %v6036
      %v6043 = vadd.f32 %v6004, %v6036
      %v6044 = vadd.f32 %v6005, %v6036
      %v6045 = vadd.f32 %v6006, %v6036
      %v6046 = vadd.f32 %v6007, %v6036
      %v6047 = vadd.f32 %v6008, %v6036
      %v6048 = vadd.f32 %v6009, %v6036
      %v6049 = vadd.f32 %v6010, %v6036
      %v6050 = vadd.f32 %v6011, %v6036
      %v6051 = vadd.f32 %v6012, %v6036
      %v6052 = vadd.f32 %v6013, %v6036
      %v6053 = vadd.f32 %v6014, %v6036
      %v6054 = vadd.f32 %v6015, %v6036
      %v6055 = vadd.f32 %v6016, %v6036
      %v6056 = vadd.f32 %v6017, %v6036
      %v6057 = vadd.f32 %v6018, %v6036
      %v6058 = vadd.f32 %v6019, %v6036
      %v6059 = vadd.f32 %v6020, %v6036
      %v6060 = vadd.f32 %v6021, %v6036
      %v6061 = vadd.f32 %v6022, %v6036
      %v6062 = vadd.f32 %v6023, %v6036
      %v6063 = vadd.f32 %v6024, %v6036
      %v6064 = vadd.f32 %v6025, %v6036
      %v6065 = vadd.f32 %v6026, %v6036
      %v6066 = vadd.f32 %v6027, %v6036
      %v6067 = vadd.f32 %v6028, %v6036
      %v6068 = vadd.f32 %v6029, %v6036
      %v6069 = vadd.f32 %v6030, %v6036
      %v6070 = vmax.f32 %v6038, 0.0
      %v6071 = vmax.f32 %v6039, 0.0
      %v6072 = vmax.f32 %v6040, 0.0
      %v6073 = vmax.f32 %v6041, 0.0
      %v6074 = vmax.f32 %v6042, 0.0
      %v6075 = vmax.f32 %v6043, 0.0
      %v6076 = vmax.f32 %v6044, 0.0
      %v6077 = vmax.f32 %v6045, 0.0
      %v6078 = vmax.f32 %v6046, 0.0
      %v6079 = vmax.f32 %v6047, 0.0
      %v6080 = vmax.f32 %v6048, 0.0
      %v6081 = vmax.f32 %v6049, 0.0
      %v6082 = vmax.f32 %v6050, 0.0
      %v6083 = vmax.f32 %v6051, 0.0
      %v6084 = vmax.f32 %v6052, 0.0
      %v6085 = vmax.f32 %v6053, 0.0
      %v6086 = vmax.f32 %v6054, 0.0
      %v6087 = vmax.f32 %v6055, 0.0
      %v6088 = vmax.f32 %v6056, 0.0
      %v6089 = vmax.f32 %v6057, 0.0
      %v6090 = vmax.f32 %v6058, 0.0
      %v6091 = vmax.f32 %v6059, 0.0
      %v6092 = vmax.f32 %v6060, 0.0
      %v6093 = vmax.f32 %v6061, 0.0
      %v6094 = vmax.f32 %v6062, 0.0
      %v6095 = vmax.f32 %v6063, 0.0
      %v6096 = vmax.f32 %v6064, 0.0
      %v6097 = vmax.f32 %v6065, 0.0
      %v6098 = vmax.f32 %v6066, 0.0
      %v6099 = vmax.f32 %v6067, 0.0
      %v6100 = vmax.f32 %v6068, 0.0
      %v6101 = vmax.f32 %v6069, 0.0
      %v6102 = vpack.c.bf16 %v6071, %v6070
      %v6103 = vpack.c.bf16 %v6073, %v6072
      %v6104 = vpack.c.bf16 %v6075, %v6074
      %v6105 = vpack.c.bf16 %v6077, %v6076
      %v6106 = vpack.c.bf16 %v6079, %v6078
      %v6107 = vpack.c.bf16 %v6081, %v6080
      %v6108 = vpack.c.bf16 %v6083, %v6082
      %v6109 = vpack.c.bf16 %v6085, %v6084
      %v6110 = vpack.c.bf16 %v6087, %v6086
      %v6111 = vpack.c.bf16 %v6089, %v6088
      %v6112 = vpack.c.bf16 %v6091, %v6090
      %v6113 = vpack.c.bf16 %v6093, %v6092
      %v6114 = vpack.c.bf16 %v6095, %v6094
      %v6115 = vpack.c.bf16 %v6097, %v6096
      %v6116 = vpack.c.bf16 %v6099, %v6098
      %v6117 = vpack.c.bf16 %v6101, %v6100
      %v6118 = vld [vmem:[%s5] sm:$0x3]
      %v6119 = vld [vmem:[%s6] sm:$0x1]
      %v6121 = vlaneseq
      %v6122 = vshrl.u32 %v6121, 7
      %v6123 = vsub.s32 0, %v6122
      %v6124 = vrot.slane %v6119, %v6123
      %v6127 = vsel %vm1038, %v6102, 0
      %v6130 = vsel %vm1038, %v6103, 0
      %v6133 = vsel %vm1038, %v6104, 0
      %v6136 = vsel %vm1038, %v6105, 0
      %v6139 = vsel %vm1038, %v6106, 0
      %v6142 = vsel %vm1038, %v6107, 0
      %v6145 = vsel %vm1038, %v6108, 0
      %v6148 = vsel %vm1038, %v6109, 0
      %v6151 = vsel %vm1038, %v6110, 0
      %v6154 = vsel %vm1038, %v6111, 0
      %v6157 = vsel %vm1038, %v6112, 0
      %v6160 = vsel %vm1038, %v6113, 0
      %v6163 = vsel %vm1038, %v6114, 0
      %v6166 = vsel %vm1038, %v6115, 0
      %v6169 = vsel %vm1038, %v6116, 0
      %v6172 = vsel %vm1038, %v6117, 0
      %v6175 = vsel %vm1111, %v6118, 0
      %6177 = vmatprep.subr.bf16.mxu0 0
      %6178 = vmatpush1.bf16.msra.mxu0 0
      %6179 = vmatprep.subr.bf16.mxu0 0
      %6180 = vmatpush1.bf16.msra.mxu0 0
      %6181 = vmatprep.subr.bf16.mxu0 0
      %6182 = vmatpush1.bf16.msra.mxu0 0
      %6183 = vmatprep.subr.bf16.mxu0 0
      %6184 = vmatpush1.bf16.msra.mxu0 0
      %6185 = vmatprep.subr.bf16.mxu0 0
      %6186 = vmatpush1.bf16.msra.mxu0 0
      %6187 = vmatprep.subr.bf16.mxu0 0
      %6188 = vmatpush1.bf16.msra.mxu0 0
      %6189 = vmatprep.subr.bf16.mxu0 0
      %6190 = vmatpush1.bf16.msra.mxu0 0
      %6191 = vmatprep.subr.bf16.mxu0 0
      %6192 = vmatpush1.bf16.msra.mxu0 %v6175
      %6193 = vmatprep.subr.bf16.mxu0 0
      %6194 = vmatpush2.bf16.msra.mxu0 0
      %6195 = vmatprep.subr.bf16.mxu0 0
      %6196 = vmatpush2.bf16.msra.mxu0 0
      %6197 = vmatprep.subr.bf16.mxu0 0
      %6198 = vmatpush2.bf16.msra.mxu0 0
      %6199 = vmatprep.subr.bf16.mxu0 0
      %6200 = vmatpush2.bf16.msra.mxu0 0
      %6201 = vmatprep.subr.bf16.mxu0 0
      %6202 = vmatpush2.bf16.msra.mxu0 0
      %6203 = vmatprep.subr.bf16.mxu0 0
      %6204 = vmatpush2.bf16.msra.mxu0 0
      %6205 = vmatprep.subr.bf16.mxu0 0
      %6206 = vmatpush2.bf16.msra.mxu0 0
      %6207 = vmatprep.subr.bf16.mxu0 0
      %6208 = vmatpush2.bf16.msra.mxu0 0
      %6209 = vmatprep.mubr.bf16.mxu0 0
      %6210 = vmatmul.mubr.bf16.gmra.mxu0 %v6127
      %v6211 = vpop.f32.mrf.mxu0
      %v6212 = vadd.f32 %v6124, %v6211
      %v6213 = vpop.f32.mrf.mxu0
      %v6214 = vpop.f32.mrf.mxu0
      %v6215 = vadd.f32 %v6124, %v6214
      %v6216 = vpop.f32.mrf.mxu0
      %6217 = vmatprep.mubr.bf16.mxu0 0
      %6218 = vmatmul.mubr.bf16.gmra.mxu0 %v6130
      %v6219 = vpop.f32.mrf.mxu0
      %v6220 = vadd.f32 %v6124, %v6219
      %v6221 = vpop.f32.mrf.mxu0
      %v6222 = vpop.f32.mrf.mxu0
      %v6223 = vadd.f32 %v6124, %v6222
      %v6224 = vpop.f32.mrf.mxu0
      %6225 = vmatprep.mubr.bf16.mxu0 0
      %6226 = vmatmul.mubr.bf16.gmra.mxu0 %v6133
      %v6227 = vpop.f32.mrf.mxu0
      %v6228 = vadd.f32 %v6124, %v6227
      %v6229 = vpop.f32.mrf.mxu0
      %v6230 = vpop.f32.mrf.mxu0
      %v6231 = vadd.f32 %v6124, %v6230
      %v6232 = vpop.f32.mrf.mxu0
      %6233 = vmatprep.mubr.bf16.mxu0 0
      %6234 = vmatmul.mubr.bf16.gmra.mxu0 %v6136
      %v6235 = vpop.f32.mrf.mxu0
      %v6236 = vadd.f32 %v6124, %v6235
      %v6237 = vpop.f32.mrf.mxu0
      %v6238 = vpop.f32.mrf.mxu0
      %v6239 = vadd.f32 %v6124, %v6238
      %v6240 = vpop.f32.mrf.mxu0
      %6241 = vmatprep.mubr.bf16.mxu0 0
      %6242 = vmatmul.mubr.bf16.gmra.mxu0 %v6139
      %v6243 = vpop.f32.mrf.mxu0
      %v6244 = vadd.f32 %v6124, %v6243
      %v6245 = vpop.f32.mrf.mxu0
      %v6246 = vpop.f32.mrf.mxu0
      %v6247 = vadd.f32 %v6124, %v6246
      %v6248 = vpop.f32.mrf.mxu0
      %6249 = vmatprep.mubr.bf16.mxu0 0
      %6250 = vmatmul.mubr.bf16.gmra.mxu0 %v6142
      %v6251 = vpop.f32.mrf.mxu0
      %v6252 = vadd.f32 %v6124, %v6251
      %v6253 = vpop.f32.mrf.mxu0
      %v6254 = vpop.f32.mrf.mxu0
      %v6255 = vadd.f32 %v6124, %v6254
      %v6256 = vpop.f32.mrf.mxu0
      %6257 = vmatprep.mubr.bf16.mxu0 0
      %6258 = vmatmul.mubr.bf16.gmra.mxu0 %v6145
      %v6259 = vpop.f32.mrf.mxu0
      %v6260 = vadd.f32 %v6124, %v6259
      %v6261 = vpop.f32.mrf.mxu0
      %v6262 = vpop.f32.mrf.mxu0
      %v6263 = vadd.f32 %v6124, %v6262
      %v6264 = vpop.f32.mrf.mxu0
      %6265 = vmatprep.mubr.bf16.mxu0 0
      %6266 = vmatmul.mubr.bf16.gmra.mxu0 %v6148
      %v6267 = vpop.f32.mrf.mxu0
      %v6268 = vadd.f32 %v6124, %v6267
      %v6269 = vpop.f32.mrf.mxu0
      %v6270 = vpop.f32.mrf.mxu0
      %v6271 = vadd.f32 %v6124, %v6270
      %v6272 = vpop.f32.mrf.mxu0
      %6273 = vmatprep.mubr.bf16.mxu0 0
      %6274 = vmatmul.mubr.bf16.gmra.mxu0 %v6151
      %v6275 = vpop.f32.mrf.mxu0
      %v6276 = vadd.f32 %v6124, %v6275
      %v6277 = vpop.f32.mrf.mxu0
      %v6278 = vpop.f32.mrf.mxu0
      %v6279 = vadd.f32 %v6124, %v6278
      %v6280 = vpop.f32.mrf.mxu0
      %6281 = vmatprep.mubr.bf16.mxu0 0
      %6282 = vmatmul.mubr.bf16.gmra.mxu0 %v6154
      %v6283 = vpop.f32.mrf.mxu0
      %v6284 = vadd.f32 %v6124, %v6283
      %v6285 = vpop.f32.mrf.mxu0
      %v6286 = vpop.f32.mrf.mxu0
      %v6287 = vadd.f32 %v6124, %v6286
      %v6288 = vpop.f32.mrf.mxu0
      %6289 = vmatprep.mubr.bf16.mxu0 0
      %6290 = vmatmul.mubr.bf16.gmra.mxu0 %v6157
      %v6291 = vpop.f32.mrf.mxu0
      %v6292 = vadd.f32 %v6124, %v6291
      %v6293 = vpop.f32.mrf.mxu0
      %v6294 = vpop.f32.mrf.mxu0
      %v6295 = vadd.f32 %v6124, %v6294
      %v6296 = vpop.f32.mrf.mxu0
      %6297 = vmatprep.mubr.bf16.mxu0 0
      %6298 = vmatmul.mubr.bf16.gmra.mxu0 %v6160
      %v6299 = vpop.f32.mrf.mxu0
      %v6300 = vadd.f32 %v6124, %v6299
      %v6301 = vpop.f32.mrf.mxu0
      %v6302 = vpop.f32.mrf.mxu0
      %v6303 = vadd.f32 %v6124, %v6302
      %v6304 = vpop.f32.mrf.mxu0
      %6305 = vmatprep.mubr.bf16.mxu0 0
      %6306 = vmatmul.mubr.bf16.gmra.mxu0 %v6163
      %v6307 = vpop.f32.mrf.mxu0
      %v6308 = vadd.f32 %v6124, %v6307
      %v6309 = vpop.f32.mrf.mxu0
      %v6310 = vpop.f32.mrf.mxu0
      %v6311 = vadd.f32 %v6124, %v6310
      %v6312 = vpop.f32.mrf.mxu0
      %6313 = vmatprep.mubr.bf16.mxu0 0
      %6314 = vmatmul.mubr.bf16.gmra.mxu0 %v6166
      %v6315 = vpop.f32.mrf.mxu0
      %v6316 = vadd.f32 %v6124, %v6315
      %v6317 = vpop.f32.mrf.mxu0
      %v6318 = vpop.f32.mrf.mxu0
      %v6319 = vadd.f32 %v6124, %v6318
      %v6320 = vpop.f32.mrf.mxu0
      %6321 = vmatprep.mubr.bf16.mxu0 0
      %6322 = vmatmul.mubr.bf16.gmra.mxu0 %v6169
      %v6323 = vpop.f32.mrf.mxu0
      %v6324 = vadd.f32 %v6124, %v6323
      %v6325 = vpop.f32.mrf.mxu0
      %v6326 = vpop.f32.mrf.mxu0
      %v6327 = vadd.f32 %v6124, %v6326
      %v6328 = vpop.f32.mrf.mxu0
      %6329 = vmatprep.mubr.bf16.mxu0 0
      %6330 = vmatmul.mubr.bf16.gmra.mxu0 %v6172
      %v6331 = vpop.f32.mrf.mxu0
      %v6332 = vadd.f32 %v6124, %v6331
      %v6333 = vpop.f32.mrf.mxu0
      %v6334 = vpop.f32.mrf.mxu0
      %v6335 = vadd.f32 %v6124, %v6334
      %v6336 = vpop.f32.mrf.mxu0
      %6337 = vdwg.mxu0
      %v6338 = vunpack.c.l.bf16 %v280
      %v6339 = vunpack.c.l.bf16 %v281
      %v6340 = vunpack.c.l.bf16 %v282
      %v6341 = vunpack.c.l.bf16 %v283
      %v6342 = vunpack.c.l.bf16 %v284
      %v6343 = vunpack.c.l.bf16 %v285
      %v6344 = vunpack.c.l.bf16 %v286
      %v6345 = vunpack.c.l.bf16 %v287
      %v6346 = vunpack.c.l.bf16 %v288
      %v6347 = vunpack.c.l.bf16 %v289
      %v6348 = vunpack.c.l.bf16 %v290
      %v6349 = vunpack.c.l.bf16 %v291
      %v6350 = vunpack.c.l.bf16 %v292
      %v6351 = vunpack.c.l.bf16 %v293
      %v6352 = vunpack.c.l.bf16 %v294
      %v6353 = vunpack.c.l.bf16 %v295
      %v6354 = vunpack.c.l.bf16 %v296
      %v6355 = vunpack.c.l.bf16 %v297
      %v6356 = vunpack.c.l.bf16 %v298
      %v6357 = vunpack.c.l.bf16 %v299
      %v6358 = vunpack.c.l.bf16 %v300
      %v6359 = vunpack.c.l.bf16 %v301
      %v6360 = vunpack.c.l.bf16 %v302
      %v6361 = vunpack.c.l.bf16 %v303
      %v6362 = vunpack.c.l.bf16 %v304
      %v6363 = vunpack.c.l.bf16 %v305
      %v6364 = vunpack.c.l.bf16 %v306
      %v6365 = vunpack.c.l.bf16 %v307
      %v6366 = vunpack.c.l.bf16 %v308
      %v6367 = vunpack.c.l.bf16 %v309
      %v6368 = vunpack.c.l.bf16 %v310
      %v6369 = vunpack.c.l.bf16 %v311
      %v6370 = vadd.f32 %v6212, %v6338
      %v6371 = vadd.f32 %v6215, %v6339
      %v6372 = vadd.f32 %v6220, %v6340
      %v6373 = vadd.f32 %v6223, %v6341
      %v6374 = vadd.f32 %v6228, %v6342
      %v6375 = vadd.f32 %v6231, %v6343
      %v6376 = vadd.f32 %v6236, %v6344
      %v6377 = vadd.f32 %v6239, %v6345
      %v6378 = vadd.f32 %v6244, %v6346
      %v6379 = vadd.f32 %v6247, %v6347
      %v6380 = vadd.f32 %v6252, %v6348
      %v6381 = vadd.f32 %v6255, %v6349
      %v6382 = vadd.f32 %v6260, %v6350
      %v6383 = vadd.f32 %v6263, %v6351
      %v6384 = vadd.f32 %v6268, %v6352
      %v6385 = vadd.f32 %v6271, %v6353
      %v6386 = vadd.f32 %v6276, %v6354
      %v6387 = vadd.f32 %v6279, %v6355
      %v6388 = vadd.f32 %v6284, %v6356
      %v6389 = vadd.f32 %v6287, %v6357
      %v6390 = vadd.f32 %v6292, %v6358
      %v6391 = vadd.f32 %v6295, %v6359
      %v6392 = vadd.f32 %v6300, %v6360
      %v6393 = vadd.f32 %v6303, %v6361
      %v6394 = vadd.f32 %v6308, %v6362
      %v6395 = vadd.f32 %v6311, %v6363
      %v6396 = vadd.f32 %v6316, %v6364
      %v6397 = vadd.f32 %v6319, %v6365
      %v6398 = vadd.f32 %v6324, %v6366
      %v6399 = vadd.f32 %v6327, %v6367
      %v6400 = vadd.f32 %v6332, %v6368
      %v6401 = vadd.f32 %v6335, %v6369
      %v6402 = vmax.f32 %v6370, 0.0
      %v6403 = vmax.f32 %v6371, 0.0
      %v6404 = vmax.f32 %v6372, 0.0
      %v6405 = vmax.f32 %v6373, 0.0
      %v6406 = vmax.f32 %v6374, 0.0
      %v6407 = vmax.f32 %v6375, 0.0
      %v6408 = vmax.f32 %v6376, 0.0
      %v6409 = vmax.f32 %v6377, 0.0
      %v6410 = vmax.f32 %v6378, 0.0
      %v6411 = vmax.f32 %v6379, 0.0
      %v6412 = vmax.f32 %v6380, 0.0
      %v6413 = vmax.f32 %v6381, 0.0
      %v6414 = vmax.f32 %v6382, 0.0
      %v6415 = vmax.f32 %v6383, 0.0
      %v6416 = vmax.f32 %v6384, 0.0
      %v6417 = vmax.f32 %v6385, 0.0
      %v6418 = vmax.f32 %v6386, 0.0
      %v6419 = vmax.f32 %v6387, 0.0
      %v6420 = vmax.f32 %v6388, 0.0
      %v6421 = vmax.f32 %v6389, 0.0
      %v6422 = vmax.f32 %v6390, 0.0
      %v6423 = vmax.f32 %v6391, 0.0
      %v6424 = vmax.f32 %v6392, 0.0
      %v6425 = vmax.f32 %v6393, 0.0
      %v6426 = vmax.f32 %v6394, 0.0
      %v6427 = vmax.f32 %v6395, 0.0
      %v6428 = vmax.f32 %v6396, 0.0
      %v6429 = vmax.f32 %v6397, 0.0
      %v6430 = vmax.f32 %v6398, 0.0
      %v6431 = vmax.f32 %v6399, 0.0
      %v6432 = vmax.f32 %v6400, 0.0
      %v6433 = vmax.f32 %v6401, 0.0
      %v6434 = vpack.c.bf16 %v6403, %v6402
      %v6435 = vpack.c.bf16 %v6405, %v6404
      %v6436 = vpack.c.bf16 %v6407, %v6406
      %v6437 = vpack.c.bf16 %v6409, %v6408
      %v6438 = vpack.c.bf16 %v6411, %v6410
      %v6439 = vpack.c.bf16 %v6413, %v6412
      %v6440 = vpack.c.bf16 %v6415, %v6414
      %v6441 = vpack.c.bf16 %v6417, %v6416
      %v6442 = vpack.c.bf16 %v6419, %v6418
      %v6443 = vpack.c.bf16 %v6421, %v6420
      %v6444 = vpack.c.bf16 %v6423, %v6422
      %v6445 = vpack.c.bf16 %v6425, %v6424
      %v6446 = vpack.c.bf16 %v6427, %v6426
      %v6447 = vpack.c.bf16 %v6429, %v6428
      %v6448 = vpack.c.bf16 %v6431, %v6430
      %v6449 = vpack.c.bf16 %v6433, %v6432
      %v6466 = vunpack.c.l.b16 %v6434
      %v6467 = vunpack.c.h.b16 %v6434
      %v6468 = vunpack.c.l.b16 %v6435
      %v6469 = vunpack.c.h.b16 %v6435
      %v6470 = vunpack.c.l.b16 %v6436
      %v6471 = vunpack.c.h.b16 %v6436
      %v6472 = vunpack.c.l.b16 %v6437
      %v6473 = vunpack.c.h.b16 %v6437
      %v6474 = vunpack.c.l.b16 %v6438
      %v6475 = vunpack.c.h.b16 %v6438
      %v6476 = vunpack.c.l.b16 %v6439
      %v6477 = vunpack.c.h.b16 %v6439
      %v6478 = vunpack.c.l.b16 %v6440
      %v6479 = vunpack.c.h.b16 %v6440
      %v6480 = vunpack.c.l.b16 %v6441
      %v6481 = vunpack.c.h.b16 %v6441
      %v6482 = vunpack.c.l.b16 %v6442
      %v6483 = vunpack.c.h.b16 %v6442
      %v6484 = vunpack.c.l.b16 %v6443
      %v6485 = vunpack.c.h.b16 %v6443
      %v6486 = vunpack.c.l.b16 %v6444
      %v6487 = vunpack.c.h.b16 %v6444
      %v6488 = vunpack.c.l.b16 %v6445
      %v6489 = vunpack.c.h.b16 %v6445
      %v6490 = vunpack.c.l.b16 %v6446
      %v6491 = vunpack.c.h.b16 %v6446
      %v6492 = vunpack.c.l.b16 %v6447
      %v6493 = vunpack.c.h.b16 %v6447
      %v6494 = vunpack.c.l.b16 %v6448
      %v6495 = vunpack.c.h.b16 %v6448
      %v6496 = vunpack.c.l.b16 %v6449
      %v6497 = vunpack.c.h.b16 %v6449
      %v6498 = vpack.c.b16 %v6466, %v6466
      %v6499 = vpack.c.b16 %v6467, %v6467
      %v6500 = vpack.c.b16 %v6468, %v6468
      %v6501 = vpack.c.b16 %v6469, %v6469
      %v6502 = vpack.c.b16 %v6470, %v6470
      %v6503 = vpack.c.b16 %v6471, %v6471
      %v6504 = vpack.c.b16 %v6472, %v6472
      %v6505 = vpack.c.b16 %v6473, %v6473
      %v6506 = vpack.c.b16 %v6474, %v6474
      %v6507 = vpack.c.b16 %v6475, %v6475
      %v6508 = vpack.c.b16 %v6476, %v6476
      %v6509 = vpack.c.b16 %v6477, %v6477
      %v6510 = vpack.c.b16 %v6478, %v6478
      %v6511 = vpack.c.b16 %v6479, %v6479
      %v6512 = vpack.c.b16 %v6480, %v6480
      %v6513 = vpack.c.b16 %v6481, %v6481
      %v6514 = vpack.c.b16 %v6482, %v6482
      %v6515 = vpack.c.b16 %v6483, %v6483
      %v6516 = vpack.c.b16 %v6484, %v6484
      %v6517 = vpack.c.b16 %v6485, %v6485
      %v6518 = vpack.c.b16 %v6486, %v6486
      %v6519 = vpack.c.b16 %v6487, %v6487
      %v6520 = vpack.c.b16 %v6488, %v6488
      %v6521 = vpack.c.b16 %v6489, %v6489
      %v6522 = vpack.c.b16 %v6490, %v6490
      %v6523 = vpack.c.b16 %v6491, %v6491
      %v6524 = vpack.c.b16 %v6492, %v6492
      %v6525 = vpack.c.b16 %v6493, %v6493
      %v6526 = vpack.c.b16 %v6494, %v6494
      %v6527 = vpack.c.b16 %v6495, %v6495
      %v6528 = vpack.c.b16 %v6496, %v6496
      %v6529 = vpack.c.b16 %v6497, %v6497
      %vm6562 = vcmask 125952
      %6563 = vst.msk [vmem:[%s278] sm:$0xf] %vm6562, %v6498
      %6564 = vst.msk [vmem:[%s278 + $0x4] sm:$0xf] %vm6562, %v6499
      %6565 = vst.msk [vmem:[%s278 + $0x8] sm:$0xf] %vm6562, %v6500
      %6566 = vst.msk [vmem:[%s278 + $0xc] sm:$0xf] %vm6562, %v6501
      %6567 = vst.msk [vmem:[%s278 + $0x10] sm:$0xf] %vm6562, %v6502
      %6568 = vst.msk [vmem:[%s278 + $0x14] sm:$0xf] %vm6562, %v6503
      %6569 = vst.msk [vmem:[%s278 + $0x18] sm:$0xf] %vm6562, %v6504
      %6570 = vst.msk [vmem:[%s278 + $0x1c] sm:$0xf] %vm6562, %v6505
      %6571 = vst.msk [vmem:[%s278 + $0x20] sm:$0xf] %vm6562, %v6506
      %6572 = vst.msk [vmem:[%s278 + $0x24] sm:$0xf] %vm6562, %v6507
      %6573 = vst.msk [vmem:[%s278 + $0x28] sm:$0xf] %vm6562, %v6508
      %6574 = vst.msk [vmem:[%s278 + $0x2c] sm:$0xf] %vm6562, %v6509
      %6575 = vst.msk [vmem:[%s278 + $0x30] sm:$0xf] %vm6562, %v6510
      %6576 = vst.msk [vmem:[%s278 + $0x34] sm:$0xf] %vm6562, %v6511
      %6577 = vst.msk [vmem:[%s278 + $0x38] sm:$0xf] %vm6562, %v6512
      %6578 = vst.msk [vmem:[%s278 + $0x3c] sm:$0xf] %vm6562, %v6513
      %6579 = vst.msk [vmem:[%s278 + $0x40] sm:$0xf] %vm6562, %v6514
      %6580 = vst.msk [vmem:[%s278 + $0x44] sm:$0xf] %vm6562, %v6515
      %6581 = vst.msk [vmem:[%s278 + $0x48] sm:$0xf] %vm6562, %v6516
      %6582 = vst.msk [vmem:[%s278 + $0x4c] sm:$0xf] %vm6562, %v6517
      %6583 = vst.msk [vmem:[%s278 + $0x50] sm:$0xf] %vm6562, %v6518
      %6584 = vst.msk [vmem:[%s278 + $0x54] sm:$0xf] %vm6562, %v6519
      %6585 = vst.msk [vmem:[%s278 + $0x58] sm:$0xf] %vm6562, %v6520
      %6586 = vst.msk [vmem:[%s278 + $0x5c] sm:$0xf] %vm6562, %v6521
      %6587 = vst.msk [vmem:[%s278 + $0x60] sm:$0xf] %vm6562, %v6522
      %6588 = vst.msk [vmem:[%s278 + $0x64] sm:$0xf] %vm6562, %v6523
      %6589 = vst.msk [vmem:[%s278 + $0x68] sm:$0xf] %vm6562, %v6524
      %6590 = vst.msk [vmem:[%s278 + $0x6c] sm:$0xf] %vm6562, %v6525
      %6591 = vst.msk [vmem:[%s278 + $0x70] sm:$0xf] %vm6562, %v6526
      %6592 = vst.msk [vmem:[%s278 + $0x74] sm:$0xf] %vm6562, %v6527
      %6593 = vst.msk [vmem:[%s278 + $0x78] sm:$0xf] %vm6562, %v6528
      %6594 = vst.msk [vmem:[%s278 + $0x7c] sm:$0xf] %vm6562, %v6529
      %p6595 = scmp.lt.s32.totalorder %s18, 1
      %s6596 = scalar_select %p6595, %s18, 1
      %s6597 = smul.addr %s6596, 32
      %s6598 = smul.addr %s6597, 4
      %s6599 = scalar_lea.vmem %s7, %s6598
      // Predicated region
      $region49: #{bottleneck_forward.1} parent=47 // pred_check
        %p6600 = pneg %p188
      $region50: #{bottleneck_forward.1} parent=47 // pred_check_branch
        %6602 = sbr.rel (%p6600) target = $region52
      $region51: #{bottleneck_forward.1} parent=47 // pred_region
        _
      $region52: #{bottleneck_forward.1} parent=47 // pred_fallthru
        _
    $region48: #{bottleneck_forward.1} parent=5 // pred_fallthru
      _
    %p6603 = scmp.le.s32.totalorder 2, %s13
    // Predicated region
    $region53: #{bottleneck_forward.1} parent=5 // pred_check
      %p6604 = pneg %p6603
    $region54: #{bottleneck_forward.1} parent=5 // pred_check_branch
      %6606 = sbr.rel (%p6604) target = $region56
    $region55: #{bottleneck_forward.1} parent=5 // pred_region
      %s6607 = ssub.s32 %s13, 2
      // Predicated region
      $region57: #{bottleneck_forward.1} parent=55 // pred_check
        %p6608 = pneg %p194
      $region58: #{bottleneck_forward.1} parent=55 // pred_check_branch
        %6610 = sbr.rel (%p6608) target = $region60
      $region59: #{bottleneck_forward.1} parent=55 // pred_region
        %p6611 = scmp.lt.s32.totalorder %s19, 1
        %s6612 = scalar_select %p6611, %s19, 1
        %s6613 = smul.addr %s6612, 32
        %s6614 = smul.addr %s6613, 4
        %s6615 = scalar_lea.vmem %s7, %s6614
      $region60: #{bottleneck_forward.1} parent=55 // pred_fallthru
        _
    $region56: #{bottleneck_forward.1} parent=5 // pred_fallthru
      _
  $region6: #{bottleneck_forward.1} parent=0 // loop_footer
    %s17 = sadd.s32 1, %s13
  $region7: #{bottleneck_forward.1} parent=0 // loop_footer_branch
    %12 = sbr.rel target = $region3
  $region8: #{bottleneck_forward.1} parent=0 // loop_exit
    _

</llo_original>
